<compile_context>
chip_gen: v6e
topology: v6e:2x2x1
jax: 0.10.0
libtpu: 0.0.40
codegen_flags: <defaults>
</compile_context>

<pallas_src>
import math
import functools

import jax
import jax.numpy as jnp
from jax.experimental import pallas as pl
from jax.experimental.pallas import tpu as pltpu

LN_EPS = 1e-5      # torch.nn.LayerNorm default eps
NEG_INF = -1e9     # additive mask value (stand-in for -inf)


# ---------------------------------------------------------------------------
# Shared math helpers
# ---------------------------------------------------------------------------
def _layernorm(v, g, b):
    mu = jnp.mean(v, axis=-1, keepdims=True)
    var = jnp.mean((v - mu) ** 2, axis=-1, keepdims=True)
    return (v - mu) * jax.lax.rsqrt(var + LN_EPS) * g + b


def _heads_attention(q, k, v, wo, mask_add, scale):
    """Head-batched attention core (runs inside the kernel).

    q: (H, Lq, hd), k/v: (H, Lk, hd), wo: (H, hd, D),
    mask_add: additive float broadcastable to (H, Lq, Lk).  Returns (Lq, D).
    """
    s = jnp.einsum('hqe,hke->hqk', q, k,
                   preferred_element_type=jnp.float32) * scale + mask_add
    s = s - jnp.max(s, axis=-1, keepdims=True)
    p = jnp.exp(s)
    p = p * pl.reciprocal(jnp.sum(p, axis=-1, keepdims=True), approx=False)
    ctx = jnp.einsum('hqk,hke->hqe', p, v, preferred_element_type=jnp.float32)
    out_h = jnp.einsum('hqe,hed->hqd', ctx, wo, preferred_element_type=jnp.float32)
    return jnp.sum(out_h, axis=0)              # (Lq, D)


# ---------------------------------------------------------------------------
# Pallas kernel: full decoder layer for one batch element per grid step
# ---------------------------------------------------------------------------
def _decoder_kernel(num_heads, head_dim,
                    x_ref, enc_ref, tmask_ref, smask_ref,
                    wqkv_sa_ref, bqkv_sa_ref, wo_sa_ref,
                    wq_ca_ref, bq_ca_ref, wkv_ca_ref, bkv_ca_ref, wo_ca_ref,
                    l1w_ref, l2w_ref, norms_ref, bvec_ref,
                    o_ref):
    H = num_heads
    scale = 1.0 / math.sqrt(head_dim)

    x = x_ref[0]                      # (L, D)
    enc = enc_ref[0]                  # (S, D)
    L, D = x.shape
    S = enc.shape[0]
    tmask = tmask_ref[...]            # (L, L) additive
    smask = smask_ref[0]              # (1, S) additive, broadcasts over queries

    # packed small parameters
    n1g, n1b = norms_ref[0:1, :], norms_ref[1:2, :]
    n2g, n2b = norms_ref[2:3, :], norms_ref[3:4, :]
    n3g, n3b = norms_ref[4:5, :], norms_ref[5:6, :]
    sa_ob, ca_ob = bvec_ref[0:1, :], bvec_ref[1:2, :]
    l1b, l2b = bvec_ref[2:3, :], bvec_ref[3:4, :]

    # --- self attention (fused, head-batched QKV projection) + add & norm ---
    xb = jnp.broadcast_to(x, (3 * H, L, D))
    qkv = jnp.einsum('hld,hde->hle', xb, wqkv_sa_ref[...],
                     preferred_element_type=jnp.float32) + bqkv_sa_ref[...]
    sa = _heads_attention(qkv[:H], qkv[H:2 * H], qkv[2 * H:],
                          wo_sa_ref[...], tmask, scale) + sa_ob
    x2 = _layernorm(sa + x, n1g, n1b)

    # --- cross attention (fused K/V projection) + add & norm ---
    x2b = jnp.broadcast_to(x2, (H, L, D))
    qc = jnp.einsum('hld,hde->hle', x2b, wq_ca_ref[...],
                    preferred_element_type=jnp.float32) + bq_ca_ref[...]
    eb = jnp.broadcast_to(enc, (2 * H, S, D))
    kvc = jnp.einsum('hld,hde->hle', eb, wkv_ca_ref[...],
                     preferred_element_type=jnp.float32) + bkv_ca_ref[...]
    ca = _heads_attention(qc, kvc[:H], kvc[H:],
                          wo_ca_ref[...], smask, scale) + ca_ob
    x3 = _layernorm(ca + x2, n2g, n2b)

    # --- feed-forward (weights pre-transposed; relu; dropout=identity) ---
    h = jnp.dot(x3, l1w_ref[...], preferred_element_type=jnp.float32) + l1b
    h = jnp.maximum(h, 0.0)
    h = jnp.dot(h, l2w_ref[...], preferred_element_type=jnp.float32) + l2b
    o_ref[0] = _layernorm(h + x3, n3g, n3b)


# ---------------------------------------------------------------------------
# Host-side one-time parameter re-layout (transpose / split per head / pack)
# ---------------------------------------------------------------------------
def _prepare_params(params, d_model, num_heads):
    D, H = d_model, num_heads
    hd = D // H

    def heads_in(w):    # w: (D_out, D_in) used as x @ w.T  ->  (H, D_in, hd)
        return jnp.transpose(jnp.reshape(w.T, (D, H, hd)), (1, 0, 2))

    def heads_out(w):   # w: (D_out, D_in) used as cat @ w.T ->  (H, hd, D_out)
        return jnp.reshape(w.T, (H, hd, D))

    sa_inw, sa_inb = params['sa_inw'], params['sa_inb']
    ca_inw, ca_inb = params['ca_inw'], params['ca_inb']

    wqkv_sa = jnp.concatenate([heads_in(sa_inw[0:D]),
                               heads_in(sa_inw[D:2 * D]),
                               heads_in(sa_inw[2 * D:3 * D])], axis=0)   # (3H, D, hd)
    bqkv_sa = jnp.reshape(sa_inb, (3 * H, 1, hd))                        # (3H, 1, hd)

    wq_ca = heads_in(ca_inw[0:D])                                        # (H, D, hd)
    bq_ca = jnp.reshape(ca_inb[:, 0:D], (H, 1, hd))
    wkv_ca = jnp.concatenate([heads_in(ca_inw[D:2 * D]),
                              heads_in(ca_inw[2 * D:3 * D])], axis=0)    # (2H, D, hd)
    bkv_ca = jnp.reshape(ca_inb[:, D:3 * D], (2 * H, 1, hd))

    wo_sa = heads_out(params['sa_ow'])                                   # (H, hd, D)
    wo_ca = heads_out(params['ca_ow'])

    l1wt = params['l1_w'].T                                              # (D, D)
    l2wt = params['l2_w'].T

    norms = jnp.concatenate([params['n1_g'], params['n1_b'],
                             params['n2_g'], params['n2_b'],
                             params['n3_g'], params['n3_b']], axis=0)    # (6, D)
    bvec = jnp.concatenate([params['sa_ob'], params['ca_ob'],
                            params['l1_b'], params['l2_b']], axis=0)     # (4, D)

    return (wqkv_sa, bqkv_sa, wo_sa, wq_ca, bq_ca, wkv_ca, bkv_ca, wo_ca,
            l1wt, l2wt, norms, bvec)


def decoder_loop(x, enc, tgt_mask_add, src_mask_add, params, num_heads):
    B, L, D = x.shape
    S = enc.shape[1]
    hd = D // num_heads
    src_mask3 = src_mask_add.reshape(B, 1, S)   # (B,1,S): block == full last-2 dims

    prepped = _prepare_params(params, D, num_heads)
    kernel = functools.partial(_decoder_kernel, num_heads, hd)

    def const_spec(shape):
        zeros = (0,) * len(shape)
        return pl.BlockSpec(shape, lambda b, _z=zeros: _z)

    in_specs = [
        pl.BlockSpec((1, L, D), lambda b: (b, 0, 0)),     # x
        pl.BlockSpec((1, S, D), lambda b: (b, 0, 0)),     # encoder output
        const_spec((L, L)),                               # tgt additive mask
        pl.BlockSpec((1, 1, S), lambda b: (b, 0, 0)),     # src additive mask
        const_spec((3 * num_heads, D, hd)),               # SA fused qkv weights
        const_spec((3 * num_heads, 1, hd)),               # SA fused qkv bias
        const_spec((num_heads, hd, D)),                   # SA out-proj weights
        const_spec((num_heads, D, hd)),                   # CA q weights
        const_spec((num_heads, 1, hd)),                   # CA q bias
        const_spec((2 * num_heads, D, hd)),               # CA fused k/v weights
        const_spec((2 * num_heads, 1, hd)),               # CA fused k/v bias
        const_spec((num_heads, hd, D)),                   # CA out-proj weights
        const_spec((D, D)),                               # lin1 (pre-transposed)
        const_spec((D, D)),                               # lin2 (pre-transposed)
        const_spec((6, D)),                               # packed layernorm g/b
        const_spec((4, D)),                               # packed bias vectors
    ]
    out_specs = pl.BlockSpec((1, L, D), lambda b: (b, 0, 0))

    return pl.pallas_call(
        kernel,
        out_shape=jax.ShapeDtypeStruct((B, L, D), jnp.float32),
        grid_spec=pltpu.PrefetchScalarGridSpec(
            num_scalar_prefetch=0, grid=(B,),
            in_specs=in_specs, out_specs=out_specs),
        compiler_params=pltpu.CompilerParams(
            dimension_semantics=("parallel",)),
    )(x, enc, tgt_mask_add, src_mask3, *prepped)


# ---------------------------------------------------------------------------
# Pure-JAX reference (original PyTorch param layout) for correctness checking
# ---------------------------------------------------------------------------
def _mha_ref(q_in, k_in, v_in, inw, inb, ow, ob, mask_add, num_heads):
    d_model = q_in.shape[-1]
    head_dim = d_model // num_heads
    scale = 1.0 / math.sqrt(head_dim)
    qw, kw, vw = inw[0:d_model], inw[d_model:2 * d_model], inw[2 * d_model:]
    qb = inb[:, 0:d_model]
    kb = inb[:, d_model:2 * d_model]
    vb = inb[:, 2 * d_model:]
    q = q_in @ qw.T + qb
    k = k_in @ kw.T + kb
    v = v_in @ vw.T + vb
    heads = []
    for h in range(num_heads):
        lo, hi = h * head_dim, (h + 1) * head_dim
        s = q[:, lo:hi] @ k[:, lo:hi].T * scale + mask_add
        s = s - jnp.max(s, axis=-1, keepdims=True)
        p = jnp.exp(s)
        p = p / jnp.sum(p, axis=-1, keepdims=True)
        heads.append(p @ v[:, lo:hi])
    return jnp.concatenate(heads, axis=-1) @ ow.T + ob


def ref_decoder(x, enc, tgt_mask_add, src_mask_add, params, num_heads):
    outs = []
    for b in range(x.shape[0]):
        xb, eb = x[b], enc[b]
        sa = _mha_ref(xb, xb, xb, params['sa_inw'], params['sa_inb'],
                      params['sa_ow'], params['sa_ob'], tgt_mask_add, num_heads)
        x2 = _layernorm(sa + xb, params['n1_g'], params['n1_b'])
        ca = _mha_ref(x2, eb, eb, params['ca_inw'], params['ca_inb'],
                      params['ca_ow'], params['ca_ob'],
                      src_mask_add[b:b + 1], num_heads)
        x3 = _layernorm(ca + x2, params['n2_g'], params['n2_b'])
        h = jnp.maximum(x3 @ params['l1_w'].T + params['l1_b'], 0.0)
        h = h @ params['l2_w'].T + params['l2_b']
        outs.append(_layernorm(h + x3, params['n3_g'], params['n3_b']))
    return jnp.stack(outs, axis=0)


# ---------------------------------------------------------------------------
if __name__ == "__main__":
    B, L, S = 2, 8, 8          # batch, target seq, source seq
    D, H = 32, 4               # d_model, num_heads

    key = jax.random.PRNGKey(0)
    ks = jax.random.split(key, 12)

    def w(k, shape, scale=0.05):
        return (scale * jax.random.normal(k, shape)).astype(jnp.float32)

    params = {
        'sa_inw': w(ks[0], (3 * D, D)), 'sa_inb': w(ks[1], (1, 3 * D)),
        'sa_ow':  w(ks[2], (D, D)),     'sa_ob':  w(ks[3], (1, D)),
        'ca_inw': w(ks[4], (3 * D, D)), 'ca_inb': w(ks[5], (1, 3 * D)),
        'ca_ow':  w(ks[6], (D, D)),     'ca_ob':  w(ks[7], (1, D)),
        'n1_g': jnp.ones((1, D), jnp.float32), 'n1_b': jnp.zeros((1, D), jnp.float32),
        'n2_g': jnp.ones((1, D), jnp.float32), 'n2_b': jnp.zeros((1, D), jnp.float32),
        'n3_g': jnp.ones((1, D), jnp.float32), 'n3_b': jnp.zeros((1, D), jnp.float32),
        'l1_w': w(ks[8], (D, D)),  'l1_b': w(ks[9], (1, D)),
        'l2_w': w(ks[10], (D, D)), 'l2_b': w(ks[11], (1, D)),
    }

    kx, ke = jax.random.split(jax.random.PRNGKey(1))
    x = jax.random.normal(kx, (B, L, D), jnp.float32)
    enc = jax.random.normal(ke, (B, S, D), jnp.float32)

    # causal target mask (additive float), as would be passed to attn_mask
    row = jnp.arange(L)[:, None]
    col = jnp.arange(L)[None, :]
    tgt_mask_add = jnp.where(col > row, NEG_INF, 0.0).astype(jnp.float32)

    # key-padding mask: last 2 source positions of batch element 1 are padded
    src_pad = jnp.zeros((B, S), dtype=bool).at[1, S - 2:].set(True)
    src_mask_add = jnp.where(src_pad, NEG_INF, 0.0).astype(jnp.float32)

    out = decoder_loop(x, enc, tgt_mask_add, src_mask_add, params, H)
    out = jax.block_until_ready(out)

    ref = ref_decoder(x, enc, tgt_mask_add, src_mask_add, params, H)
    assert out.shape == (B, L, D)
    assert jnp.allclose(out, ref, rtol=1e-4, atol=1e-4), "mismatch vs reference"

    print("KERNEL_OK")
</pallas_src>

<mosaic_0001>
module attributes {stable_mosaic.version = 11 : i64} {
  func.func @_decoder_kernel(%arg0: i32, %arg1: memref<1x8x32xf32, #tpu.memory_space<vmem>>, %arg2: memref<1x8x32xf32, #tpu.memory_space<vmem>>, %arg3: memref<8x8xf32, #tpu.memory_space<vmem>>, %arg4: memref<1x1x8xf32, #tpu.memory_space<vmem>>, %arg5: memref<12x32x8xf32, #tpu.memory_space<vmem>>, %arg6: memref<12x1x8xf32, #tpu.memory_space<vmem>>, %arg7: memref<4x8x32xf32, #tpu.memory_space<vmem>>, %arg8: memref<4x32x8xf32, #tpu.memory_space<vmem>>, %arg9: memref<4x1x8xf32, #tpu.memory_space<vmem>>, %arg10: memref<8x32x8xf32, #tpu.memory_space<vmem>>, %arg11: memref<8x1x8xf32, #tpu.memory_space<vmem>>, %arg12: memref<4x8x32xf32, #tpu.memory_space<vmem>>, %arg13: memref<32x32xf32, #tpu.memory_space<vmem>>, %arg14: memref<32x32xf32, #tpu.memory_space<vmem>>, %arg15: memref<6x32xf32, #tpu.memory_space<vmem>>, %arg16: memref<4x32xf32, #tpu.memory_space<vmem>>, %arg17: memref<1x8x32xf32, #tpu.memory_space<vmem>>) attributes {dimension_semantics = [#tpu.dimension_semantics<parallel>], iteration_bounds = array<i64: 2>, scalar_prefetch = 0 : i64, scratch_operands = 0 : i64, tpu.core_type = #tpu.core_type<tc>, window_params = [{transform_indices = @transform_0, window_bounds = array<i64: 1, 8, 32>}, {transform_indices = @transform_1, window_bounds = array<i64: 1, 8, 32>}, {pipeline_mode = #tpu.pipeline_mode<synchronous>, transform_indices = @transform_2, window_bounds = array<i64: 8, 8>}, {transform_indices = @transform_3, window_bounds = array<i64: 1, 1, 8>}, {pipeline_mode = #tpu.pipeline_mode<synchronous>, transform_indices = @transform_4, window_bounds = array<i64: 12, 32, 8>}, {pipeline_mode = #tpu.pipeline_mode<synchronous>, transform_indices = @transform_5, window_bounds = array<i64: 12, 1, 8>}, {pipeline_mode = #tpu.pipeline_mode<synchronous>, transform_indices = @transform_6, window_bounds = array<i64: 4, 8, 32>}, {pipeline_mode = #tpu.pipeline_mode<synchronous>, transform_indices = @transform_7, window_bounds = array<i64: 4, 32, 8>}, {pipeline_mode = #tpu.pipeline_mode<synchronous>, transform_indices = @transform_8, window_bounds = array<i64: 4, 1, 8>}, {pipeline_mode = #tpu.pipeline_mode<synchronous>, transform_indices = @transform_9, window_bounds = array<i64: 8, 32, 8>}, {pipeline_mode = #tpu.pipeline_mode<synchronous>, transform_indices = @transform_10, window_bounds = array<i64: 8, 1, 8>}, {pipeline_mode = #tpu.pipeline_mode<synchronous>, transform_indices = @transform_11, window_bounds = array<i64: 4, 8, 32>}, {pipeline_mode = #tpu.pipeline_mode<synchronous>, transform_indices = @transform_12, window_bounds = array<i64: 32, 32>}, {pipeline_mode = #tpu.pipeline_mode<synchronous>, transform_indices = @transform_13, window_bounds = array<i64: 32, 32>}, {pipeline_mode = #tpu.pipeline_mode<synchronous>, transform_indices = @transform_14, window_bounds = array<i64: 6, 32>}, {pipeline_mode = #tpu.pipeline_mode<synchronous>, transform_indices = @transform_15, window_bounds = array<i64: 4, 32>}, {transform_indices = @transform_16, window_bounds = array<i64: 1, 8, 32>}]} {
    %c0 = arith.constant 0 : index
    %c0_0 = arith.constant 0 : index
    %c0_1 = arith.constant 0 : index
    %0 = vector.load %arg1[%c0, %c0_0, %c0_1] : memref<1x8x32xf32, #tpu.memory_space<vmem>>, vector<1x8x32xf32>
    %1 = vector.shape_cast %0 : vector<1x8x32xf32> to vector<8x32xf32>
    %c0_2 = arith.constant 0 : index
    %c0_3 = arith.constant 0 : index
    %c0_4 = arith.constant 0 : index
    %2 = vector.load %arg2[%c0_2, %c0_3, %c0_4] : memref<1x8x32xf32, #tpu.memory_space<vmem>>, vector<1x8x32xf32>
    %3 = vector.shape_cast %2 : vector<1x8x32xf32> to vector<8x32xf32>
    %c0_5 = arith.constant 0 : index
    %c0_6 = arith.constant 0 : index
    %4 = vector.load %arg3[%c0_5, %c0_6] : memref<8x8xf32, #tpu.memory_space<vmem>>, vector<8x8xf32>
    %c0_7 = arith.constant 0 : index
    %c0_8 = arith.constant 0 : index
    %c0_9 = arith.constant 0 : index
    %5 = vector.load %arg4[%c0_7, %c0_8, %c0_9] : memref<1x1x8xf32, #tpu.memory_space<vmem>>, vector<1x1x8xf32>
    %6 = vector.shape_cast %5 : vector<1x1x8xf32> to vector<1x8xf32>
    %c0_10 = arith.constant 0 : index
    %c0_11 = arith.constant 0 : index
    %7 = vector.load %arg15[%c0_10, %c0_11] : memref<6x32xf32, #tpu.memory_space<vmem>>, vector<1x32xf32>
    %c1 = arith.constant 1 : index
    %c0_12 = arith.constant 0 : index
    %8 = vector.load %arg15[%c1, %c0_12] : memref<6x32xf32, #tpu.memory_space<vmem>>, vector<1x32xf32>
    %c2 = arith.constant 2 : index
    %c0_13 = arith.constant 0 : index
    %9 = vector.load %arg15[%c2, %c0_13] : memref<6x32xf32, #tpu.memory_space<vmem>>, vector<1x32xf32>
    %c3 = arith.constant 3 : index
    %c0_14 = arith.constant 0 : index
    %10 = vector.load %arg15[%c3, %c0_14] : memref<6x32xf32, #tpu.memory_space<vmem>>, vector<1x32xf32>
    %c4 = arith.constant 4 : index
    %c0_15 = arith.constant 0 : index
    %11 = vector.load %arg15[%c4, %c0_15] : memref<6x32xf32, #tpu.memory_space<vmem>>, vector<1x32xf32>
    %c5 = arith.constant 5 : index
    %c0_16 = arith.constant 0 : index
    %12 = vector.load %arg15[%c5, %c0_16] : memref<6x32xf32, #tpu.memory_space<vmem>>, vector<1x32xf32>
    %c0_17 = arith.constant 0 : index
    %c0_18 = arith.constant 0 : index
    %13 = vector.load %arg16[%c0_17, %c0_18] : memref<4x32xf32, #tpu.memory_space<vmem>>, vector<1x32xf32>
    %c1_19 = arith.constant 1 : index
    %c0_20 = arith.constant 0 : index
    %14 = vector.load %arg16[%c1_19, %c0_20] : memref<4x32xf32, #tpu.memory_space<vmem>>, vector<1x32xf32>
    %c2_21 = arith.constant 2 : index
    %c0_22 = arith.constant 0 : index
    %15 = vector.load %arg16[%c2_21, %c0_22] : memref<4x32xf32, #tpu.memory_space<vmem>>, vector<1x32xf32>
    %c3_23 = arith.constant 3 : index
    %c0_24 = arith.constant 0 : index
    %16 = vector.load %arg16[%c3_23, %c0_24] : memref<4x32xf32, #tpu.memory_space<vmem>>, vector<1x32xf32>
    %17 = vector.shape_cast %1 : vector<8x32xf32> to vector<1x8x32xf32>
    %18 = vector.broadcast %17 : vector<1x8x32xf32> to vector<12x8x32xf32>
    %c0_25 = arith.constant 0 : index
    %c0_26 = arith.constant 0 : index
    %c0_27 = arith.constant 0 : index
    %19 = vector.load %arg5[%c0_25, %c0_26, %c0_27] : memref<12x32x8xf32, #tpu.memory_space<vmem>>, vector<12x32x8xf32>
    "tpu.trace_start"() <{level = 10 : i32, message = "hld,hde->hle"}> : () -> ()
    %cst = arith.constant dense<0.000000e+00> : vector<12x8x8xf32>
    %20 = tpu.matmul %18, %19, %cst {dimension_numbers = #tpu.dot_dimension_numbers<[2], [1], [1], [2], [0, 0, 0, 1, 1, 2], [0], [0]>} : vector<12x8x32xf32>, vector<12x32x8xf32>, vector<12x8x8xf32> -> vector<12x8x8xf32>
    "tpu.trace_stop"() : () -> ()
    %c0_28 = arith.constant 0 : index
    %c0_29 = arith.constant 0 : index
    %c0_30 = arith.constant 0 : index
    %21 = vector.load %arg6[%c0_28, %c0_29, %c0_30] : memref<12x1x8xf32, #tpu.memory_space<vmem>>, vector<12x1x8xf32>
    %22 = vector.broadcast %21 : vector<12x1x8xf32> to vector<12x8x8xf32>
    %23 = arith.addf %20, %22 : vector<12x8x8xf32>
    %24 = vector.extract_strided_slice %23 {offsets = [0, 0, 0], sizes = [4, 8, 8], strides = [1, 1, 1]} : vector<12x8x8xf32> to vector<4x8x8xf32>
    %25 = vector.extract_strided_slice %23 {offsets = [4, 0, 0], sizes = [4, 8, 8], strides = [1, 1, 1]} : vector<12x8x8xf32> to vector<4x8x8xf32>
    %26 = vector.extract_strided_slice %23 {offsets = [8, 0, 0], sizes = [4, 8, 8], strides = [1, 1, 1]} : vector<12x8x8xf32> to vector<4x8x8xf32>
    %c0_31 = arith.constant 0 : index
    %c0_32 = arith.constant 0 : index
    %c0_33 = arith.constant 0 : index
    %27 = vector.load %arg7[%c0_31, %c0_32, %c0_33] : memref<4x8x32xf32, #tpu.memory_space<vmem>>, vector<4x8x32xf32>
    "tpu.trace_start"() <{level = 10 : i32, message = "hqe,hke->hqk"}> : () -> ()
    %cst_34 = arith.constant dense<0.000000e+00> : vector<4x8x8xf32>
    %28 = tpu.matmul %24, %25, %cst_34 {dimension_numbers = #tpu.dot_dimension_numbers<[2], [2], [1], [1], [0, 0, 0, 1, 1, 1], [0], [0]>} : vector<4x8x8xf32>, vector<4x8x8xf32>, vector<4x8x8xf32> -> vector<4x8x8xf32>
    "tpu.trace_stop"() : () -> ()
    %cst_35 = arith.constant 0.353553385 : f32
    %29 = vector.broadcast %cst_35 : f32 to vector<4x8x8xf32>
    %30 = arith.mulf %28, %29 : vector<4x8x8xf32>
    %31 = vector.shape_cast %4 : vector<8x8xf32> to vector<1x8x8xf32>
    %32 = vector.broadcast %31 : vector<1x8x8xf32> to vector<4x8x8xf32>
    %33 = arith.addf %30, %32 : vector<4x8x8xf32>
    %cst_36 = arith.constant dense<0xFF800000> : vector<4x8xf32>
    %34 = vector.multi_reduction <maximumf>, %33, %cst_36 [2] : vector<4x8x8xf32> to vector<4x8xf32>
    %35 = vector.shape_cast %34 : vector<4x8xf32> to vector<4x8x1xf32>
    %36 = vector.broadcast %35 : vector<4x8x1xf32> to vector<4x8x8xf32>
    %37 = arith.subf %33, %36 : vector<4x8x8xf32>
    %38 = math.exp %37 : vector<4x8x8xf32>
    %cst_37 = arith.constant dense<0.000000e+00> : vector<4x8xf32>
    %39 = vector.multi_reduction <add>, %38, %cst_37 [2] : vector<4x8x8xf32> to vector<4x8xf32>
    %40 = vector.shape_cast %39 : vector<4x8xf32> to vector<4x8x1xf32>
    %41 = tpu.reciprocal %40 : vector<4x8x1xf32> -> vector<4x8x1xf32>
    %42 = vector.broadcast %41 : vector<4x8x1xf32> to vector<4x8x8xf32>
    %43 = arith.mulf %38, %42 : vector<4x8x8xf32>
    "tpu.trace_start"() <{level = 10 : i32, message = "hqk,hke->hqe"}> : () -> ()
    %cst_38 = arith.constant dense<0.000000e+00> : vector<4x8x8xf32>
    %44 = tpu.matmul %43, %26, %cst_38 {dimension_numbers = #tpu.dot_dimension_numbers<[2], [1], [1], [2], [0, 0, 0, 1, 1, 2], [0], [0]>} : vector<4x8x8xf32>, vector<4x8x8xf32>, vector<4x8x8xf32> -> vector<4x8x8xf32>
    "tpu.trace_stop"() : () -> ()
    "tpu.trace_start"() <{level = 10 : i32, message = "hqe,hed->hqd"}> : () -> ()
    %cst_39 = arith.constant dense<0.000000e+00> : vector<4x8x32xf32>
    %45 = tpu.matmul %44, %27, %cst_39 {dimension_numbers = #tpu.dot_dimension_numbers<[2], [1], [1], [2], [0, 0, 0, 1, 1, 2], [0], [0]>} : vector<4x8x8xf32>, vector<4x8x32xf32>, vector<4x8x32xf32> -> vector<4x8x32xf32>
    "tpu.trace_stop"() : () -> ()
    %cst_40 = arith.constant dense<0.000000e+00> : vector<8x32xf32>
    %46 = vector.multi_reduction <add>, %45, %cst_40 [0] : vector<4x8x32xf32> to vector<8x32xf32>
    %47 = vector.broadcast %13 : vector<1x32xf32> to vector<8x32xf32>
    %48 = arith.addf %46, %47 : vector<8x32xf32>
    %49 = arith.addf %48, %1 : vector<8x32xf32>
    %cst_41 = arith.constant dense<0.000000e+00> : vector<8xf32>
    %50 = vector.multi_reduction <add>, %49, %cst_41 [1] : vector<8x32xf32> to vector<8xf32>
    %51 = vector.shape_cast %50 : vector<8xf32> to vector<8x1xf32>
    %cst_42 = arith.constant 3.200000e+01 : f32
    %52 = vector.broadcast %cst_42 : f32 to vector<8x1xf32>
    %53 = arith.divf %51, %52 : vector<8x1xf32>
    %54 = vector.broadcast %53 : vector<8x1xf32> to vector<8x32xf32>
    %55 = arith.subf %49, %54 : vector<8x32xf32>
    %56 = arith.mulf %55, %55 : vector<8x32xf32>
    %cst_43 = arith.constant dense<0.000000e+00> : vector<8xf32>
    %57 = vector.multi_reduction <add>, %56, %cst_43 [1] : vector<8x32xf32> to vector<8xf32>
    %58 = vector.shape_cast %57 : vector<8xf32> to vector<8x1xf32>
    %cst_44 = arith.constant 3.200000e+01 : f32
    %59 = vector.broadcast %cst_44 : f32 to vector<8x1xf32>
    %60 = arith.divf %58, %59 : vector<8x1xf32>
    %61 = vector.broadcast %53 : vector<8x1xf32> to vector<8x32xf32>
    %62 = arith.subf %49, %61 : vector<8x32xf32>
    %cst_45 = arith.constant 9.99999974E-6 : f32
    %63 = vector.broadcast %cst_45 : f32 to vector<8x1xf32>
    %64 = arith.addf %60, %63 : vector<8x1xf32>
    %65 = math.rsqrt %64 : vector<8x1xf32>
    %66 = vector.broadcast %65 : vector<8x1xf32> to vector<8x32xf32>
    %67 = arith.mulf %62, %66 : vector<8x32xf32>
    %68 = vector.broadcast %7 : vector<1x32xf32> to vector<8x32xf32>
    %69 = arith.mulf %67, %68 : vector<8x32xf32>
    %70 = vector.broadcast %8 : vector<1x32xf32> to vector<8x32xf32>
    %71 = arith.addf %69, %70 : vector<8x32xf32>
    %72 = vector.shape_cast %71 : vector<8x32xf32> to vector<1x8x32xf32>
    %73 = vector.broadcast %72 : vector<1x8x32xf32> to vector<4x8x32xf32>
    %c0_46 = arith.constant 0 : index
    %c0_47 = arith.constant 0 : index
    %c0_48 = arith.constant 0 : index
    %74 = vector.load %arg8[%c0_46, %c0_47, %c0_48] : memref<4x32x8xf32, #tpu.memory_space<vmem>>, vector<4x32x8xf32>
    "tpu.trace_start"() <{level = 10 : i32, message = "hld,hde->hle"}> : () -> ()
    %cst_49 = arith.constant dense<0.000000e+00> : vector<4x8x8xf32>
    %75 = tpu.matmul %73, %74, %cst_49 {dimension_numbers = #tpu.dot_dimension_numbers<[2], [1], [1], [2], [0, 0, 0, 1, 1, 2], [0], [0]>} : vector<4x8x32xf32>, vector<4x32x8xf32>, vector<4x8x8xf32> -> vector<4x8x8xf32>
    "tpu.trace_stop"() : () -> ()
    %c0_50 = arith.constant 0 : index
    %c0_51 = arith.constant 0 : index
    %c0_52 = arith.constant 0 : index
    %76 = vector.load %arg9[%c0_50, %c0_51, %c0_52] : memref<4x1x8xf32, #tpu.memory_space<vmem>>, vector<4x1x8xf32>
    %77 = vector.broadcast %76 : vector<4x1x8xf32> to vector<4x8x8xf32>
    %78 = arith.addf %75, %77 : vector<4x8x8xf32>
    %79 = vector.shape_cast %3 : vector<8x32xf32> to vector<1x8x32xf32>
    %80 = vector.broadcast %79 : vector<1x8x32xf32> to vector<8x8x32xf32>
    %c0_53 = arith.constant 0 : index
    %c0_54 = arith.constant 0 : index
    %c0_55 = arith.constant 0 : index
    %81 = vector.load %arg10[%c0_53, %c0_54, %c0_55] : memref<8x32x8xf32, #tpu.memory_space<vmem>>, vector<8x32x8xf32>
    "tpu.trace_start"() <{level = 10 : i32, message = "hld,hde->hle"}> : () -> ()
    %cst_56 = arith.constant dense<0.000000e+00> : vector<8x8x8xf32>
    %82 = tpu.matmul %80, %81, %cst_56 {dimension_numbers = #tpu.dot_dimension_numbers<[2], [1], [1], [2], [0, 0, 0, 1, 1, 2], [0], [0]>} : vector<8x8x32xf32>, vector<8x32x8xf32>, vector<8x8x8xf32> -> vector<8x8x8xf32>
    "tpu.trace_stop"() : () -> ()
    %c0_57 = arith.constant 0 : index
    %c0_58 = arith.constant 0 : index
    %c0_59 = arith.constant 0 : index
    %83 = vector.load %arg11[%c0_57, %c0_58, %c0_59] : memref<8x1x8xf32, #tpu.memory_space<vmem>>, vector<8x1x8xf32>
    %84 = vector.broadcast %83 : vector<8x1x8xf32> to vector<8x8x8xf32>
    %85 = arith.addf %82, %84 : vector<8x8x8xf32>
    %86 = vector.extract_strided_slice %85 {offsets = [0, 0, 0], sizes = [4, 8, 8], strides = [1, 1, 1]} : vector<8x8x8xf32> to vector<4x8x8xf32>
    %87 = vector.extract_strided_slice %85 {offsets = [4, 0, 0], sizes = [4, 8, 8], strides = [1, 1, 1]} : vector<8x8x8xf32> to vector<4x8x8xf32>
    %c0_60 = arith.constant 0 : index
    %c0_61 = arith.constant 0 : index
    %c0_62 = arith.constant 0 : index
    %88 = vector.load %arg12[%c0_60, %c0_61, %c0_62] : memref<4x8x32xf32, #tpu.memory_space<vmem>>, vector<4x8x32xf32>
    "tpu.trace_start"() <{level = 10 : i32, message = "hqe,hke->hqk"}> : () -> ()
    %cst_63 = arith.constant dense<0.000000e+00> : vector<4x8x8xf32>
    %89 = tpu.matmul %78, %86, %cst_63 {dimension_numbers = #tpu.dot_dimension_numbers<[2], [2], [1], [1], [0, 0, 0, 1, 1, 1], [0], [0]>} : vector<4x8x8xf32>, vector<4x8x8xf32>, vector<4x8x8xf32> -> vector<4x8x8xf32>
    "tpu.trace_stop"() : () -> ()
    %cst_64 = arith.constant 0.353553385 : f32
    %90 = vector.broadcast %cst_64 : f32 to vector<4x8x8xf32>
    %91 = arith.mulf %89, %90 : vector<4x8x8xf32>
    %92 = vector.shape_cast %6 : vector<1x8xf32> to vector<1x1x8xf32>
    %93 = vector.broadcast %92 : vector<1x1x8xf32> to vector<4x8x8xf32>
    %94 = arith.addf %91, %93 : vector<4x8x8xf32>
    %cst_65 = arith.constant dense<0xFF800000> : vector<4x8xf32>
    %95 = vector.multi_reduction <maximumf>, %94, %cst_65 [2] : vector<4x8x8xf32> to vector<4x8xf32>
    %96 = vector.shape_cast %95 : vector<4x8xf32> to vector<4x8x1xf32>
    %97 = vector.broadcast %96 : vector<4x8x1xf32> to vector<4x8x8xf32>
    %98 = arith.subf %94, %97 : vector<4x8x8xf32>
    %99 = math.exp %98 : vector<4x8x8xf32>
    %cst_66 = arith.constant dense<0.000000e+00> : vector<4x8xf32>
    %100 = vector.multi_reduction <add>, %99, %cst_66 [2] : vector<4x8x8xf32> to vector<4x8xf32>
    %101 = vector.shape_cast %100 : vector<4x8xf32> to vector<4x8x1xf32>
    %102 = tpu.reciprocal %101 : vector<4x8x1xf32> -> vector<4x8x1xf32>
    %103 = vector.broadcast %102 : vector<4x8x1xf32> to vector<4x8x8xf32>
    %104 = arith.mulf %99, %103 : vector<4x8x8xf32>
    "tpu.trace_start"() <{level = 10 : i32, message = "hqk,hke->hqe"}> : () -> ()
    %cst_67 = arith.constant dense<0.000000e+00> : vector<4x8x8xf32>
    %105 = tpu.matmul %104, %87, %cst_67 {dimension_numbers = #tpu.dot_dimension_numbers<[2], [1], [1], [2], [0, 0, 0, 1, 1, 2], [0], [0]>} : vector<4x8x8xf32>, vector<4x8x8xf32>, vector<4x8x8xf32> -> vector<4x8x8xf32>
    "tpu.trace_stop"() : () -> ()
    "tpu.trace_start"() <{level = 10 : i32, message = "hqe,hed->hqd"}> : () -> ()
    %cst_68 = arith.constant dense<0.000000e+00> : vector<4x8x32xf32>
    %106 = tpu.matmul %105, %88, %cst_68 {dimension_numbers = #tpu.dot_dimension_numbers<[2], [1], [1], [2], [0, 0, 0, 1, 1, 2], [0], [0]>} : vector<4x8x8xf32>, vector<4x8x32xf32>, vector<4x8x32xf32> -> vector<4x8x32xf32>
    "tpu.trace_stop"() : () -> ()
    %cst_69 = arith.constant dense<0.000000e+00> : vector<8x32xf32>
    %107 = vector.multi_reduction <add>, %106, %cst_69 [0] : vector<4x8x32xf32> to vector<8x32xf32>
    %108 = vector.broadcast %14 : vector<1x32xf32> to vector<8x32xf32>
    %109 = arith.addf %107, %108 : vector<8x32xf32>
    %110 = arith.addf %109, %71 : vector<8x32xf32>
    %cst_70 = arith.constant dense<0.000000e+00> : vector<8xf32>
    %111 = vector.multi_reduction <add>, %110, %cst_70 [1] : vector<8x32xf32> to vector<8xf32>
    %112 = vector.shape_cast %111 : vector<8xf32> to vector<8x1xf32>
    %cst_71 = arith.constant 3.200000e+01 : f32
    %113 = vector.broadcast %cst_71 : f32 to vector<8x1xf32>
    %114 = arith.divf %112, %113 : vector<8x1xf32>
    %115 = vector.broadcast %114 : vector<8x1xf32> to vector<8x32xf32>
    %116 = arith.subf %110, %115 : vector<8x32xf32>
    %117 = arith.mulf %116, %116 : vector<8x32xf32>
    %cst_72 = arith.constant dense<0.000000e+00> : vector<8xf32>
    %118 = vector.multi_reduction <add>, %117, %cst_72 [1] : vector<8x32xf32> to vector<8xf32>
    %119 = vector.shape_cast %118 : vector<8xf32> to vector<8x1xf32>
    %cst_73 = arith.constant 3.200000e+01 : f32
    %120 = vector.broadcast %cst_73 : f32 to vector<8x1xf32>
    %121 = arith.divf %119, %120 : vector<8x1xf32>
    %122 = vector.broadcast %114 : vector<8x1xf32> to vector<8x32xf32>
    %123 = arith.subf %110, %122 : vector<8x32xf32>
    %cst_74 = arith.constant 9.99999974E-6 : f32
    %124 = vector.broadcast %cst_74 : f32 to vector<8x1xf32>
    %125 = arith.addf %121, %124 : vector<8x1xf32>
    %126 = math.rsqrt %125 : vector<8x1xf32>
    %127 = vector.broadcast %126 : vector<8x1xf32> to vector<8x32xf32>
    %128 = arith.mulf %123, %127 : vector<8x32xf32>
    %129 = vector.broadcast %9 : vector<1x32xf32> to vector<8x32xf32>
    %130 = arith.mulf %128, %129 : vector<8x32xf32>
    %131 = vector.broadcast %10 : vector<1x32xf32> to vector<8x32xf32>
    %132 = arith.addf %130, %131 : vector<8x32xf32>
    %c0_75 = arith.constant 0 : index
    %c0_76 = arith.constant 0 : index
    %133 = vector.load %arg13[%c0_75, %c0_76] : memref<32x32xf32, #tpu.memory_space<vmem>>, vector<32x32xf32>
    %cst_77 = arith.constant dense<0.000000e+00> : vector<8x32xf32>
    %134 = tpu.matmul %132, %133, %cst_77 {dimension_numbers = #tpu.dot_dimension_numbers<[1], [0], [0], [1], [0, 0, 1, 1], [], []>} : vector<8x32xf32>, vector<32x32xf32>, vector<8x32xf32> -> vector<8x32xf32>
    %135 = vector.broadcast %15 : vector<1x32xf32> to vector<8x32xf32>
    %136 = arith.addf %134, %135 : vector<8x32xf32>
    %cst_78 = arith.constant 0.000000e+00 : f32
    %137 = vector.broadcast %cst_78 : f32 to vector<8x32xf32>
    %138 = arith.maximumf %136, %137 : vector<8x32xf32>
    %c0_79 = arith.constant 0 : index
    %c0_80 = arith.constant 0 : index
    %139 = vector.load %arg14[%c0_79, %c0_80] : memref<32x32xf32, #tpu.memory_space<vmem>>, vector<32x32xf32>
    %cst_81 = arith.constant dense<0.000000e+00> : vector<8x32xf32>
    %140 = tpu.matmul %138, %139, %cst_81 {dimension_numbers = #tpu.dot_dimension_numbers<[1], [0], [0], [1], [0, 0, 1, 1], [], []>} : vector<8x32xf32>, vector<32x32xf32>, vector<8x32xf32> -> vector<8x32xf32>
    %141 = vector.broadcast %16 : vector<1x32xf32> to vector<8x32xf32>
    %142 = arith.addf %140, %141 : vector<8x32xf32>
    %143 = arith.addf %142, %132 : vector<8x32xf32>
    %cst_82 = arith.constant dense<0.000000e+00> : vector<8xf32>
    %144 = vector.multi_reduction <add>, %143, %cst_82 [1] : vector<8x32xf32> to vector<8xf32>
    %145 = vector.shape_cast %144 : vector<8xf32> to vector<8x1xf32>
    %cst_83 = arith.constant 3.200000e+01 : f32
    %146 = vector.broadcast %cst_83 : f32 to vector<8x1xf32>
    %147 = arith.divf %145, %146 : vector<8x1xf32>
    %148 = vector.broadcast %147 : vector<8x1xf32> to vector<8x32xf32>
    %149 = arith.subf %143, %148 : vector<8x32xf32>
    %150 = arith.mulf %149, %149 : vector<8x32xf32>
    %cst_84 = arith.constant dense<0.000000e+00> : vector<8xf32>
    %151 = vector.multi_reduction <add>, %150, %cst_84 [1] : vector<8x32xf32> to vector<8xf32>
    %152 = vector.shape_cast %151 : vector<8xf32> to vector<8x1xf32>
    %cst_85 = arith.constant 3.200000e+01 : f32
    %153 = vector.broadcast %cst_85 : f32 to vector<8x1xf32>
    %154 = arith.divf %152, %153 : vector<8x1xf32>
    %155 = vector.broadcast %147 : vector<8x1xf32> to vector<8x32xf32>
    %156 = arith.subf %143, %155 : vector<8x32xf32>
    %cst_86 = arith.constant 9.99999974E-6 : f32
    %157 = vector.broadcast %cst_86 : f32 to vector<8x1xf32>
    %158 = arith.addf %154, %157 : vector<8x1xf32>
    %159 = math.rsqrt %158 : vector<8x1xf32>
    %160 = vector.broadcast %159 : vector<8x1xf32> to vector<8x32xf32>
    %161 = arith.mulf %156, %160 : vector<8x32xf32>
    %162 = vector.broadcast %11 : vector<1x32xf32> to vector<8x32xf32>
    %163 = arith.mulf %161, %162 : vector<8x32xf32>
    %164 = vector.broadcast %12 : vector<1x32xf32> to vector<8x32xf32>
    %165 = arith.addf %163, %164 : vector<8x32xf32>
    %c0_87 = arith.constant 0 : index
    %c0_88 = arith.constant 0 : index
    %c0_89 = arith.constant 0 : index
    %166 = vector.load %arg17[%c0_87, %c0_88, %c0_89] : memref<1x8x32xf32, #tpu.memory_space<vmem>>, vector<1x8x32xf32>
    %167 = vector.shape_cast %166 : vector<1x8x32xf32> to vector<8x32xf32>
    %168 = vector.shape_cast %165 : vector<8x32xf32> to vector<1x8x32xf32>
    tpu.vector_store %arg17[%c0_87, %c0_88, %c0_89], %168 {strides = array<i32>} : memref<1x8x32xf32, #tpu.memory_space<vmem>>, vector<1x8x32xf32>,
    return
  }
  func.func @transform_0(%arg0: i32) -> (i32, i32, i32) {
    %c0_i32 = arith.constant 0 : i32
    %c0_i32_0 = arith.constant 0 : i32
    %c0_i32_1 = arith.constant 0 : i32
    return %arg0, %c0_i32, %c0_i32_0 : i32, i32, i32
  }
  func.func @transform_1(%arg0: i32) -> (i32, i32, i32) {
    %c0_i32 = arith.constant 0 : i32
    %c0_i32_0 = arith.constant 0 : i32
    %c0_i32_1 = arith.constant 0 : i32
    return %arg0, %c0_i32, %c0_i32_0 : i32, i32, i32
  }
  func.func @transform_2(%arg0: i32) -> (i32, i32) {
    %c0_i32 = arith.constant 0 : i32
    %c0_i32_0 = arith.constant 0 : i32
    %c0_i32_1 = arith.constant 0 : i32
    return %c0_i32, %c0_i32_0 : i32, i32
  }
  func.func @transform_3(%arg0: i32) -> (i32, i32, i32) {
    %c0_i32 = arith.constant 0 : i32
    %c0_i32_0 = arith.constant 0 : i32
    %c0_i32_1 = arith.constant 0 : i32
    return %arg0, %c0_i32, %c0_i32_0 : i32, i32, i32
  }
  func.func @transform_4(%arg0: i32) -> (i32, i32, i32) {
    %c0_i32 = arith.constant 0 : i32
    %c0_i32_0 = arith.constant 0 : i32
    %c0_i32_1 = arith.constant 0 : i32
    %c0_i32_2 = arith.constant 0 : i32
    return %c0_i32, %c0_i32_0, %c0_i32_1 : i32, i32, i32
  }
  func.func @transform_5(%arg0: i32) -> (i32, i32, i32) {
    %c0_i32 = arith.constant 0 : i32
    %c0_i32_0 = arith.constant 0 : i32
    %c0_i32_1 = arith.constant 0 : i32
    %c0_i32_2 = arith.constant 0 : i32
    return %c0_i32, %c0_i32_0, %c0_i32_1 : i32, i32, i32
  }
  func.func @transform_6(%arg0: i32) -> (i32, i32, i32) {
    %c0_i32 = arith.constant 0 : i32
    %c0_i32_0 = arith.constant 0 : i32
    %c0_i32_1 = arith.constant 0 : i32
    %c0_i32_2 = arith.constant 0 : i32
    return %c0_i32, %c0_i32_0, %c0_i32_1 : i32, i32, i32
  }
  func.func @transform_7(%arg0: i32) -> (i32, i32, i32) {
    %c0_i32 = arith.constant 0 : i32
    %c0_i32_0 = arith.constant 0 : i32
    %c0_i32_1 = arith.constant 0 : i32
    %c0_i32_2 = arith.constant 0 : i32
    return %c0_i32, %c0_i32_0, %c0_i32_1 : i32, i32, i32
  }
  func.func @transform_8(%arg0: i32) -> (i32, i32, i32) {
    %c0_i32 = arith.constant 0 : i32
    %c0_i32_0 = arith.constant 0 : i32
    %c0_i32_1 = arith.constant 0 : i32
    %c0_i32_2 = arith.constant 0 : i32
    return %c0_i32, %c0_i32_0, %c0_i32_1 : i32, i32, i32
  }
  func.func @transform_9(%arg0: i32) -> (i32, i32, i32) {
    %c0_i32 = arith.constant 0 : i32
    %c0_i32_0 = arith.constant 0 : i32
    %c0_i32_1 = arith.constant 0 : i32
    %c0_i32_2 = arith.constant 0 : i32
    return %c0_i32, %c0_i32_0, %c0_i32_1 : i32, i32, i32
  }
  func.func @transform_10(%arg0: i32) -> (i32, i32, i32) {
    %c0_i32 = arith.constant 0 : i32
    %c0_i32_0 = arith.constant 0 : i32
    %c0_i32_1 = arith.constant 0 : i32
    %c0_i32_2 = arith.constant 0 : i32
    return %c0_i32, %c0_i32_0, %c0_i32_1 : i32, i32, i32
  }
  func.func @transform_11(%arg0: i32) -> (i32, i32, i32) {
    %c0_i32 = arith.constant 0 : i32
    %c0_i32_0 = arith.constant 0 : i32
    %c0_i32_1 = arith.constant 0 : i32
    %c0_i32_2 = arith.constant 0 : i32
    return %c0_i32, %c0_i32_0, %c0_i32_1 : i32, i32, i32
  }
  func.func @transform_12(%arg0: i32) -> (i32, i32) {
    %c0_i32 = arith.constant 0 : i32
    %c0_i32_0 = arith.constant 0 : i32
    %c0_i32_1 = arith.constant 0 : i32
    return %c0_i32, %c0_i32_0 : i32, i32
  }
  func.func @transform_13(%arg0: i32) -> (i32, i32) {
    %c0_i32 = arith.constant 0 : i32
    %c0_i32_0 = arith.constant 0 : i32
    %c0_i32_1 = arith.constant 0 : i32
    return %c0_i32, %c0_i32_0 : i32, i32
  }
  func.func @transform_14(%arg0: i32) -> (i32, i32) {
    %c0_i32 = arith.constant 0 : i32
    %c0_i32_0 = arith.constant 0 : i32
    %c0_i32_1 = arith.constant 0 : i32
    return %c0_i32, %c0_i32_0 : i32, i32
  }
  func.func @transform_15(%arg0: i32) -> (i32, i32) {
    %c0_i32 = arith.constant 0 : i32
    %c0_i32_0 = arith.constant 0 : i32
    %c0_i32_1 = arith.constant 0 : i32
    return %c0_i32, %c0_i32_0 : i32, i32
  }
  func.func @transform_16(%arg0: i32) -> (i32, i32, i32) {
    %c0_i32 = arith.constant 0 : i32
    %c0_i32_0 = arith.constant 0 : i32
    %c0_i32_1 = arith.constant 0 : i32
    return %arg0, %c0_i32, %c0_i32_0 : i32, i32, i32
  }
}

</mosaic_0001>

<llo_original>
// kernel: tpu_custom_call.1
$region0: #{tpu_custom_call.1}
  #allocation0 [shape = 'u32[]', space=smem, size = 0x4, offset = 0x4, fixed_abs, tag = 'smem constant byte address 0x4 - core index']
  #allocation1 [shape = 'u32[144,128]{1,0:T(1,128)}', space=vmem, size = 0x12000, scoped, tag = 'internal scratch']
  %s0 = inlined_call_operand.vmem [shape: f32[2,8,32], index: 0, kind: input, shape index: {}]
  %s1 = inlined_call_operand.vmem [shape: f32[2,8,32], index: 1, kind: input, shape index: {}]
  %s2 = inlined_call_operand.vmem [shape: f32[8,8], index: 2, kind: input, shape index: {}]
  %s3 = inlined_call_operand.vmem [shape: f32[2,1,8], index: 3, kind: input, shape index: {}]
  %s4 = inlined_call_operand.vmem [shape: f32[12,32,8], index: 4, kind: input, shape index: {}]
  %s5 = inlined_call_operand.vmem [shape: f32[12,1,8], index: 5, kind: input, shape index: {}]
  %s6 = inlined_call_operand.vmem [shape: f32[4,8,32], index: 6, kind: input, shape index: {}]
  %s7 = inlined_call_operand.vmem [shape: f32[4,32,8], index: 7, kind: input, shape index: {}]
  %s8 = inlined_call_operand.vmem [shape: f32[4,1,8], index: 8, kind: input, shape index: {}]
  %s9 = inlined_call_operand.vmem [shape: f32[8,32,8], index: 9, kind: input, shape index: {}]
  %s10 = inlined_call_operand.vmem [shape: f32[8,1,8], index: 10, kind: input, shape index: {}]
  %s11 = inlined_call_operand.vmem [shape: f32[4,8,32], index: 11, kind: input, shape index: {}]
  %s12 = inlined_call_operand.vmem [shape: f32[32,32], index: 12, kind: input, shape index: {}]
  %s13 = inlined_call_operand.vmem [shape: f32[32,32], index: 13, kind: input, shape index: {}]
  %s14 = inlined_call_operand.vmem [shape: f32[6,32], index: 14, kind: input, shape index: {}]
  %s15 = inlined_call_operand.vmem [shape: f32[4,32], index: 15, kind: input, shape index: {}]
  %s16 = inlined_call_operand.hbm [shape: f32[2,8,32], index: 16, kind: output, shape index: {}]
  %s17 = sld [smem:[#allocation0]]
  $region97: #{tpu_custom_call.1} parent=0
    _
  %s19 = ssub.s32 1, %s17
  %s20 = scalar_select 0, %s19, %s17
  $region1: #{tpu_custom_call.1} parent=0
    #allocation2 [shape = 'u8[8192]{0}', space=vmem, size = 0x2000, scoped, tag = 'output window, operand 0']
    #allocation3 [shape = 's32[2]{0}', space=sflag, size = 0x8, scoped, tag = 'scoped memory for tpu_custom_call.1']
    %21 = vsyncpa [#allocation3], 0
    %s22 = scalar_lea.sflag [#allocation3], 1
    %23 = vsyncpa %s22, 0
    loop: start=0, step=1, limit=4
    $region2: #{tpu_custom_call.1} parent=1 // loop_pre_header
      _
    $region3: #{tpu_custom_call.1} parent=1 // loop_header
      %s25 = sphi 0, %s29
      %p26 = scmp.ge.s32.totalorder %s25, 4
      %s35 = sphi 0, %s37
      %s38 = sphi 0, %s35
      %s39 = sphi 0, %s38
      %s55 = sphi 0, %s39
      %s61 = sphi 0, %s63
      %s64 = sphi 0, %s61
      %s65 = sphi 0, %s64
      %s81 = sphi 0, %s65
      %s85 = sphi 0, %s85
      %s87 = sphi 0, %s85
      %s88 = sphi 0, %s87
      %s102 = sphi 0, %s88
      %s108 = sphi 0, %s110
      %s111 = sphi 0, %s108
      %s112 = sphi 0, %s111
      %s128 = sphi 0, %s112
      %s132 = sphi 0, %s132
      %s134 = sphi 0, %s132
      %s135 = sphi 0, %s134
      %s149 = sphi 0, %s135
      %s153 = sphi 0, %s153
      %s155 = sphi 0, %s153
      %s156 = sphi 0, %s155
      %s170 = sphi 0, %s156
      %s174 = sphi 0, %s174
      %s176 = sphi 0, %s174
      %s177 = sphi 0, %s176
      %s191 = sphi 0, %s177
      %s195 = sphi 0, %s195
      %s197 = sphi 0, %s195
      %s198 = sphi 0, %s197
      %s212 = sphi 0, %s198
      %s216 = sphi 0, %s216
      %s218 = sphi 0, %s216
      %s219 = sphi 0, %s218
      %s233 = sphi 0, %s219
      %s237 = sphi 0, %s237
      %s239 = sphi 0, %s237
      %s240 = sphi 0, %s239
      %s254 = sphi 0, %s240
      %s258 = sphi 0, %s258
      %s260 = sphi 0, %s258
      %s261 = sphi 0, %s260
      %s275 = sphi 0, %s261
      %s279 = sphi 0, %s279
      %s281 = sphi 0, %s279
      %s282 = sphi 0, %s281
      %s296 = sphi 0, %s282
      %s300 = sphi 0, %s300
      %s302 = sphi 0, %s300
      %s303 = sphi 0, %s302
      %s317 = sphi 0, %s303
      %s321 = sphi 0, %s321
      %s323 = sphi 0, %s321
      %s324 = sphi 0, %s323
      %s338 = sphi 0, %s324
      %s342 = sphi 0, %s342
      %s344 = sphi 0, %s342
      %s345 = sphi 0, %s344
      %s359 = sphi 0, %s345
      %s363 = sphi 0, %s363
      %s365 = sphi 0, %s363
      %s366 = sphi 0, %s365
      %s380 = sphi 0, %s366
      %s386 = sphi 0, %s388
      %s389 = sphi 0, %s386
      %s390 = sphi 0, %s389
      %s406 = sphi 0, %s390
    $region4: #{tpu_custom_call.1} parent=1 // loop_header_branch
      %28 = sbr.rel (%p26) target = $region8
    $region5: #{tpu_custom_call.1} parent=1 // loop_body
      %s30 = ssub.s32 %s25, 1
      %s31 = ssub.s32 %s25, 2
      %s32 = sadd.s32 %s25, 1
      %s33 = ssub.s32 %s25, %s32
      %p34 = scmp.eq.s32.totalorder %s33, 0
      %s36 = sadd.s32 %s35, 1
      %s37 = scalar_select %p34, %s35, %s36
      %p40 = pneg %p34
      %p41 = scmp.eq.s32.totalorder %s25, 1
      %p42 = por %p40, %p41
      %p43 = scmp.ne.s32.totalorder %s35, %s38
      %p44 = scmp.eq.s32.totalorder %s25, 0
      %p45 = por %p43, %p44
      %p46 = scmp.ne.s32.totalorder %s35, %s38
      %p47 = scmp.eq.s32.totalorder %s30, 1
      %p48 = por %p46, %p47
      %p49 = scmp.ne.s32.totalorder %s38, %s39
      %p50 = scmp.eq.s32.totalorder %s30, 0
      %p51 = por %p49, %p50
      %p52 = scmp.ne.s32.totalorder %s38, %s39
      %p53 = scmp.eq.s32.totalorder %s31, 1
      %p54 = por %p52, %p53
      %p56 = scmp.ne.s32.totalorder %s39, %s55
      %p57 = scmp.eq.s32.totalorder %s31, 0
      %p58 = por %p56, %p57
      %s59 = ssub.s32 %s25, %s32
      %p60 = scmp.eq.s32.totalorder %s59, 0
      %s62 = sadd.s32 %s61, 1
      %s63 = scalar_select %p60, %s61, %s62
      %p66 = pneg %p60
      %p67 = scmp.eq.s32.totalorder %s25, 1
      %p68 = por %p66, %p67
      %p69 = scmp.ne.s32.totalorder %s61, %s64
      %p70 = scmp.eq.s32.totalorder %s25, 0
      %p71 = por %p69, %p70
      %p72 = scmp.ne.s32.totalorder %s61, %s64
      %p73 = scmp.eq.s32.totalorder %s30, 1
      %p74 = por %p72, %p73
      %p75 = scmp.ne.s32.totalorder %s64, %s65
      %p76 = scmp.eq.s32.totalorder %s30, 0
      %p77 = por %p75, %p76
      %p78 = scmp.ne.s32.totalorder %s64, %s65
      %p79 = scmp.eq.s32.totalorder %s31, 1
      %p80 = por %p78, %p79
      %p82 = scmp.ne.s32.totalorder %s65, %s81
      %p83 = scmp.eq.s32.totalorder %s31, 0
      %p84 = por %p82, %p83
      %s86 = sadd.s32 %s85, 1
      %p89 = scmp.eq.s32.totalorder %s25, 1
      %p90 = scmp.ne.s32.totalorder %s85, %s87
      %p91 = scmp.eq.s32.totalorder %s25, 0
      %p92 = por %p90, %p91
      %p93 = scmp.ne.s32.totalorder %s85, %s87
      %p94 = scmp.eq.s32.totalorder %s30, 1
      %p95 = por %p93, %p94
      %p96 = scmp.ne.s32.totalorder %s87, %s88
      %p97 = scmp.eq.s32.totalorder %s30, 0
      %p98 = por %p96, %p97
      %p99 = scmp.ne.s32.totalorder %s87, %s88
      %p100 = scmp.eq.s32.totalorder %s31, 1
      %p101 = por %p99, %p100
      %p103 = scmp.ne.s32.totalorder %s88, %s102
      %p104 = scmp.eq.s32.totalorder %s31, 0
      %p105 = por %p103, %p104
      %s106 = ssub.s32 %s25, %s32
      %p107 = scmp.eq.s32.totalorder %s106, 0
      %s109 = sadd.s32 %s108, 1
      %s110 = scalar_select %p107, %s108, %s109
      %p113 = pneg %p107
      %p114 = scmp.eq.s32.totalorder %s25, 1
      %p115 = por %p113, %p114
      %p116 = scmp.ne.s32.totalorder %s108, %s111
      %p117 = scmp.eq.s32.totalorder %s25, 0
      %p118 = por %p116, %p117
      %p119 = scmp.ne.s32.totalorder %s108, %s111
      %p120 = scmp.eq.s32.totalorder %s30, 1
      %p121 = por %p119, %p120
      %p122 = scmp.ne.s32.totalorder %s111, %s112
      %p123 = scmp.eq.s32.totalorder %s30, 0
      %p124 = por %p122, %p123
      %p125 = scmp.ne.s32.totalorder %s111, %s112
      %p126 = scmp.eq.s32.totalorder %s31, 1
      %p127 = por %p125, %p126
      %p129 = scmp.ne.s32.totalorder %s112, %s128
      %p130 = scmp.eq.s32.totalorder %s31, 0
      %p131 = por %p129, %p130
      %s133 = sadd.s32 %s132, 1
      %p136 = scmp.eq.s32.totalorder %s25, 1
      %p137 = scmp.ne.s32.totalorder %s132, %s134
      %p138 = scmp.eq.s32.totalorder %s25, 0
      %p139 = por %p137, %p138
      %p140 = scmp.ne.s32.totalorder %s132, %s134
      %p141 = scmp.eq.s32.totalorder %s30, 1
      %p142 = por %p140, %p141
      %p143 = scmp.ne.s32.totalorder %s134, %s135
      %p144 = scmp.eq.s32.totalorder %s30, 0
      %p145 = por %p143, %p144
      %p146 = scmp.ne.s32.totalorder %s134, %s135
      %p147 = scmp.eq.s32.totalorder %s31, 1
      %p148 = por %p146, %p147
      %p150 = scmp.ne.s32.totalorder %s135, %s149
      %p151 = scmp.eq.s32.totalorder %s31, 0
      %p152 = por %p150, %p151
      %s154 = sadd.s32 %s153, 1
      %p157 = scmp.eq.s32.totalorder %s25, 1
      %p158 = scmp.ne.s32.totalorder %s153, %s155
      %p159 = scmp.eq.s32.totalorder %s25, 0
      %p160 = por %p158, %p159
      %p161 = scmp.ne.s32.totalorder %s153, %s155
      %p162 = scmp.eq.s32.totalorder %s30, 1
      %p163 = por %p161, %p162
      %p164 = scmp.ne.s32.totalorder %s155, %s156
      %p165 = scmp.eq.s32.totalorder %s30, 0
      %p166 = por %p164, %p165
      %p167 = scmp.ne.s32.totalorder %s155, %s156
      %p168 = scmp.eq.s32.totalorder %s31, 1
      %p169 = por %p167, %p168
      %p171 = scmp.ne.s32.totalorder %s156, %s170
      %p172 = scmp.eq.s32.totalorder %s31, 0
      %p173 = por %p171, %p172
      %s175 = sadd.s32 %s174, 1
      %p178 = scmp.eq.s32.totalorder %s25, 1
      %p179 = scmp.ne.s32.totalorder %s174, %s176
      %p180 = scmp.eq.s32.totalorder %s25, 0
      %p181 = por %p179, %p180
      %p182 = scmp.ne.s32.totalorder %s174, %s176
      %p183 = scmp.eq.s32.totalorder %s30, 1
      %p184 = por %p182, %p183
      %p185 = scmp.ne.s32.totalorder %s176, %s177
      %p186 = scmp.eq.s32.totalorder %s30, 0
      %p187 = por %p185, %p186
      %p188 = scmp.ne.s32.totalorder %s176, %s177
      %p189 = scmp.eq.s32.totalorder %s31, 1
      %p190 = por %p188, %p189
      %p192 = scmp.ne.s32.totalorder %s177, %s191
      %p193 = scmp.eq.s32.totalorder %s31, 0
      %p194 = por %p192, %p193
      %s196 = sadd.s32 %s195, 1
      %p199 = scmp.eq.s32.totalorder %s25, 1
      %p200 = scmp.ne.s32.totalorder %s195, %s197
      %p201 = scmp.eq.s32.totalorder %s25, 0
      %p202 = por %p200, %p201
      %p203 = scmp.ne.s32.totalorder %s195, %s197
      %p204 = scmp.eq.s32.totalorder %s30, 1
      %p205 = por %p203, %p204
      %p206 = scmp.ne.s32.totalorder %s197, %s198
      %p207 = scmp.eq.s32.totalorder %s30, 0
      %p208 = por %p206, %p207
      %p209 = scmp.ne.s32.totalorder %s197, %s198
      %p210 = scmp.eq.s32.totalorder %s31, 1
      %p211 = por %p209, %p210
      %p213 = scmp.ne.s32.totalorder %s198, %s212
      %p214 = scmp.eq.s32.totalorder %s31, 0
      %p215 = por %p213, %p214
      %s217 = sadd.s32 %s216, 1
      %p220 = scmp.eq.s32.totalorder %s25, 1
      %p221 = scmp.ne.s32.totalorder %s216, %s218
      %p222 = scmp.eq.s32.totalorder %s25, 0
      %p223 = por %p221, %p222
      %p224 = scmp.ne.s32.totalorder %s216, %s218
      %p225 = scmp.eq.s32.totalorder %s30, 1
      %p226 = por %p224, %p225
      %p227 = scmp.ne.s32.totalorder %s218, %s219
      %p228 = scmp.eq.s32.totalorder %s30, 0
      %p229 = por %p227, %p228
      %p230 = scmp.ne.s32.totalorder %s218, %s219
      %p231 = scmp.eq.s32.totalorder %s31, 1
      %p232 = por %p230, %p231
      %p234 = scmp.ne.s32.totalorder %s219, %s233
      %p235 = scmp.eq.s32.totalorder %s31, 0
      %p236 = por %p234, %p235
      %s238 = sadd.s32 %s237, 1
      %p241 = scmp.eq.s32.totalorder %s25, 1
      %p242 = scmp.ne.s32.totalorder %s237, %s239
      %p243 = scmp.eq.s32.totalorder %s25, 0
      %p244 = por %p242, %p243
      %p245 = scmp.ne.s32.totalorder %s237, %s239
      %p246 = scmp.eq.s32.totalorder %s30, 1
      %p247 = por %p245, %p246
      %p248 = scmp.ne.s32.totalorder %s239, %s240
      %p249 = scmp.eq.s32.totalorder %s30, 0
      %p250 = por %p248, %p249
      %p251 = scmp.ne.s32.totalorder %s239, %s240
      %p252 = scmp.eq.s32.totalorder %s31, 1
      %p253 = por %p251, %p252
      %p255 = scmp.ne.s32.totalorder %s240, %s254
      %p256 = scmp.eq.s32.totalorder %s31, 0
      %p257 = por %p255, %p256
      %s259 = sadd.s32 %s258, 1
      %p262 = scmp.eq.s32.totalorder %s25, 1
      %p263 = scmp.ne.s32.totalorder %s258, %s260
      %p264 = scmp.eq.s32.totalorder %s25, 0
      %p265 = por %p263, %p264
      %p266 = scmp.ne.s32.totalorder %s258, %s260
      %p267 = scmp.eq.s32.totalorder %s30, 1
      %p268 = por %p266, %p267
      %p269 = scmp.ne.s32.totalorder %s260, %s261
      %p270 = scmp.eq.s32.totalorder %s30, 0
      %p271 = por %p269, %p270
      %p272 = scmp.ne.s32.totalorder %s260, %s261
      %p273 = scmp.eq.s32.totalorder %s31, 1
      %p274 = por %p272, %p273
      %p276 = scmp.ne.s32.totalorder %s261, %s275
      %p277 = scmp.eq.s32.totalorder %s31, 0
      %p278 = por %p276, %p277
      %s280 = sadd.s32 %s279, 1
      %p283 = scmp.eq.s32.totalorder %s25, 1
      %p284 = scmp.ne.s32.totalorder %s279, %s281
      %p285 = scmp.eq.s32.totalorder %s25, 0
      %p286 = por %p284, %p285
      %p287 = scmp.ne.s32.totalorder %s279, %s281
      %p288 = scmp.eq.s32.totalorder %s30, 1
      %p289 = por %p287, %p288
      %p290 = scmp.ne.s32.totalorder %s281, %s282
      %p291 = scmp.eq.s32.totalorder %s30, 0
      %p292 = por %p290, %p291
      %p293 = scmp.ne.s32.totalorder %s281, %s282
      %p294 = scmp.eq.s32.totalorder %s31, 1
      %p295 = por %p293, %p294
      %p297 = scmp.ne.s32.totalorder %s282, %s296
      %p298 = scmp.eq.s32.totalorder %s31, 0
      %p299 = por %p297, %p298
      %s301 = sadd.s32 %s300, 1
      %p304 = scmp.eq.s32.totalorder %s25, 1
      %p305 = scmp.ne.s32.totalorder %s300, %s302
      %p306 = scmp.eq.s32.totalorder %s25, 0
      %p307 = por %p305, %p306
      %p308 = scmp.ne.s32.totalorder %s300, %s302
      %p309 = scmp.eq.s32.totalorder %s30, 1
      %p310 = por %p308, %p309
      %p311 = scmp.ne.s32.totalorder %s302, %s303
      %p312 = scmp.eq.s32.totalorder %s30, 0
      %p313 = por %p311, %p312
      %p314 = scmp.ne.s32.totalorder %s302, %s303
      %p315 = scmp.eq.s32.totalorder %s31, 1
      %p316 = por %p314, %p315
      %p318 = scmp.ne.s32.totalorder %s303, %s317
      %p319 = scmp.eq.s32.totalorder %s31, 0
      %p320 = por %p318, %p319
      %s322 = sadd.s32 %s321, 1
      %p325 = scmp.eq.s32.totalorder %s25, 1
      %p326 = scmp.ne.s32.totalorder %s321, %s323
      %p327 = scmp.eq.s32.totalorder %s25, 0
      %p328 = por %p326, %p327
      %p329 = scmp.ne.s32.totalorder %s321, %s323
      %p330 = scmp.eq.s32.totalorder %s30, 1
      %p331 = por %p329, %p330
      %p332 = scmp.ne.s32.totalorder %s323, %s324
      %p333 = scmp.eq.s32.totalorder %s30, 0
      %p334 = por %p332, %p333
      %p335 = scmp.ne.s32.totalorder %s323, %s324
      %p336 = scmp.eq.s32.totalorder %s31, 1
      %p337 = por %p335, %p336
      %p339 = scmp.ne.s32.totalorder %s324, %s338
      %p340 = scmp.eq.s32.totalorder %s31, 0
      %p341 = por %p339, %p340
      %s343 = sadd.s32 %s342, 1
      %p346 = scmp.eq.s32.totalorder %s25, 1
      %p347 = scmp.ne.s32.totalorder %s342, %s344
      %p348 = scmp.eq.s32.totalorder %s25, 0
      %p349 = por %p347, %p348
      %p350 = scmp.ne.s32.totalorder %s342, %s344
      %p351 = scmp.eq.s32.totalorder %s30, 1
      %p352 = por %p350, %p351
      %p353 = scmp.ne.s32.totalorder %s344, %s345
      %p354 = scmp.eq.s32.totalorder %s30, 0
      %p355 = por %p353, %p354
      %p356 = scmp.ne.s32.totalorder %s344, %s345
      %p357 = scmp.eq.s32.totalorder %s31, 1
      %p358 = por %p356, %p357
      %p360 = scmp.ne.s32.totalorder %s345, %s359
      %p361 = scmp.eq.s32.totalorder %s31, 0
      %p362 = por %p360, %p361
      %s364 = sadd.s32 %s363, 1
      %p367 = scmp.eq.s32.totalorder %s25, 1
      %p368 = scmp.ne.s32.totalorder %s363, %s365
      %p369 = scmp.eq.s32.totalorder %s25, 0
      %p370 = por %p368, %p369
      %p371 = scmp.ne.s32.totalorder %s363, %s365
      %p372 = scmp.eq.s32.totalorder %s30, 1
      %p373 = por %p371, %p372
      %p374 = scmp.ne.s32.totalorder %s365, %s366
      %p375 = scmp.eq.s32.totalorder %s30, 0
      %p376 = por %p374, %p375
      %p377 = scmp.ne.s32.totalorder %s365, %s366
      %p378 = scmp.eq.s32.totalorder %s31, 1
      %p379 = por %p377, %p378
      %p381 = scmp.ne.s32.totalorder %s366, %s380
      %p382 = scmp.eq.s32.totalorder %s31, 0
      %p383 = por %p381, %p382
      %s384 = ssub.s32 %s25, %s32
      %p385 = scmp.eq.s32.totalorder %s384, 0
      %s387 = sadd.s32 %s386, 1
      %s388 = scalar_select %p385, %s386, %s387
      %p391 = pneg %p385
      %p392 = scmp.eq.s32.totalorder %s25, 1
      %p393 = por %p391, %p392
      %p394 = scmp.ne.s32.totalorder %s386, %s389
      %p395 = scmp.eq.s32.totalorder %s25, 0
      %p396 = por %p394, %p395
      %p397 = scmp.ne.s32.totalorder %s386, %s389
      %p398 = scmp.eq.s32.totalorder %s30, 1
      %p399 = por %p397, %p398
      %p400 = scmp.ne.s32.totalorder %s389, %s390
      %p401 = scmp.eq.s32.totalorder %s30, 0
      %p402 = por %p400, %p401
      %p403 = scmp.ne.s32.totalorder %s389, %s390
      %p404 = scmp.eq.s32.totalorder %s31, 1
      %p405 = por %p403, %p404
      %p407 = scmp.ne.s32.totalorder %s390, %s406
      %p408 = scmp.eq.s32.totalorder %s31, 0
      %p409 = por %p407, %p408
      %p410 = scmp.le.s32.totalorder 1, %s25
      %p411 = scmp.lt.s32.totalorder %s25, 3
      %p412 = pnand %p410, %p411
      %p413 = pneg %p412
      // Predicated region
      $region9: #{tpu_custom_call.1} parent=5 // pred_check
        _
      $region10: #{tpu_custom_call.1} parent=5 // pred_check_branch
        %415 = sbr.rel (%p412) target = $region12
      $region11: #{tpu_custom_call.1} parent=5 // pred_region
        %s416 = ssub.s32 %s25, 1
        // Predicated region
        $region13: #{tpu_custom_call.1} parent=11 // pred_check
          %p417 = pneg %p98
        $region14: #{tpu_custom_call.1} parent=11 // pred_check_branch
          %419 = sbr.rel (%p417) target = $region16
        $region15: #{tpu_custom_call.1} parent=11 // pred_region
          _
        $region16: #{tpu_custom_call.1} parent=11 // pred_fallthru
          _
        // Predicated region
        $region17: #{tpu_custom_call.1} parent=11 // pred_check
          %p420 = pneg %p145
        $region18: #{tpu_custom_call.1} parent=11 // pred_check_branch
          %422 = sbr.rel (%p420) target = $region20
        $region19: #{tpu_custom_call.1} parent=11 // pred_region
          _
        $region20: #{tpu_custom_call.1} parent=11 // pred_fallthru
          _
        // Predicated region
        $region21: #{tpu_custom_call.1} parent=11 // pred_check
          %p423 = pneg %p166
        $region22: #{tpu_custom_call.1} parent=11 // pred_check_branch
          %425 = sbr.rel (%p423) target = $region24
        $region23: #{tpu_custom_call.1} parent=11 // pred_region
          _
        $region24: #{tpu_custom_call.1} parent=11 // pred_fallthru
          _
        // Predicated region
        $region25: #{tpu_custom_call.1} parent=11 // pred_check
          %p426 = pneg %p187
        $region26: #{tpu_custom_call.1} parent=11 // pred_check_branch
          %428 = sbr.rel (%p426) target = $region28
        $region27: #{tpu_custom_call.1} parent=11 // pred_region
          _
        $region28: #{tpu_custom_call.1} parent=11 // pred_fallthru
          _
        // Predicated region
        $region29: #{tpu_custom_call.1} parent=11 // pred_check
          %p429 = pneg %p208
        $region30: #{tpu_custom_call.1} parent=11 // pred_check_branch
          %431 = sbr.rel (%p429) target = $region32
        $region31: #{tpu_custom_call.1} parent=11 // pred_region
          _
        $region32: #{tpu_custom_call.1} parent=11 // pred_fallthru
          _
        // Predicated region
        $region33: #{tpu_custom_call.1} parent=11 // pred_check
          %p432 = pneg %p229
        $region34: #{tpu_custom_call.1} parent=11 // pred_check_branch
          %434 = sbr.rel (%p432) target = $region36
        $region35: #{tpu_custom_call.1} parent=11 // pred_region
          _
        $region36: #{tpu_custom_call.1} parent=11 // pred_fallthru
          _
        // Predicated region
        $region37: #{tpu_custom_call.1} parent=11 // pred_check
          %p435 = pneg %p250
        $region38: #{tpu_custom_call.1} parent=11 // pred_check_branch
          %437 = sbr.rel (%p435) target = $region40
        $region39: #{tpu_custom_call.1} parent=11 // pred_region
          _
        $region40: #{tpu_custom_call.1} parent=11 // pred_fallthru
          _
        // Predicated region
        $region41: #{tpu_custom_call.1} parent=11 // pred_check
          %p438 = pneg %p271
        $region42: #{tpu_custom_call.1} parent=11 // pred_check_branch
          %440 = sbr.rel (%p438) target = $region44
        $region43: #{tpu_custom_call.1} parent=11 // pred_region
          _
        $region44: #{tpu_custom_call.1} parent=11 // pred_fallthru
          _
        // Predicated region
        $region45: #{tpu_custom_call.1} parent=11 // pred_check
          %p441 = pneg %p292
        $region46: #{tpu_custom_call.1} parent=11 // pred_check_branch
          %443 = sbr.rel (%p441) target = $region48
        $region47: #{tpu_custom_call.1} parent=11 // pred_region
          _
        $region48: #{tpu_custom_call.1} parent=11 // pred_fallthru
          _
        // Predicated region
        $region49: #{tpu_custom_call.1} parent=11 // pred_check
          %p444 = pneg %p313
        $region50: #{tpu_custom_call.1} parent=11 // pred_check_branch
          %446 = sbr.rel (%p444) target = $region52
        $region51: #{tpu_custom_call.1} parent=11 // pred_region
          _
        $region52: #{tpu_custom_call.1} parent=11 // pred_fallthru
          _
        // Predicated region
        $region53: #{tpu_custom_call.1} parent=11 // pred_check
          %p447 = pneg %p334
        $region54: #{tpu_custom_call.1} parent=11 // pred_check_branch
          %449 = sbr.rel (%p447) target = $region56
        $region55: #{tpu_custom_call.1} parent=11 // pred_region
          _
        $region56: #{tpu_custom_call.1} parent=11 // pred_fallthru
          _
        // Predicated region
        $region57: #{tpu_custom_call.1} parent=11 // pred_check
          %p450 = pneg %p355
        $region58: #{tpu_custom_call.1} parent=11 // pred_check_branch
          %452 = sbr.rel (%p450) target = $region60
        $region59: #{tpu_custom_call.1} parent=11 // pred_region
          _
        $region60: #{tpu_custom_call.1} parent=11 // pred_fallthru
          _
        // Predicated region
        $region61: #{tpu_custom_call.1} parent=11 // pred_check
          %p453 = pneg %p376
        $region62: #{tpu_custom_call.1} parent=11 // pred_check_branch
          %455 = sbr.rel (%p453) target = $region64
        $region63: #{tpu_custom_call.1} parent=11 // pred_region
          _
        $region64: #{tpu_custom_call.1} parent=11 // pred_fallthru
          _
      $region12: #{tpu_custom_call.1} parent=5 // pred_fallthru
        _
      %p456 = scmp.lt.s32.totalorder %s25, 2
      // Predicated region
      $region65: #{tpu_custom_call.1} parent=5 // pred_check
        %p457 = pneg %p456
      $region66: #{tpu_custom_call.1} parent=5 // pred_check_branch
        %459 = sbr.rel (%p457) target = $region68
      $region67: #{tpu_custom_call.1} parent=5 // pred_region
        // Predicated region
        $region69: #{tpu_custom_call.1} parent=67 // pred_check
          %p460 = pneg %p45
        $region70: #{tpu_custom_call.1} parent=67 // pred_check_branch
          %462 = sbr.rel (%p460) target = $region72
        $region71: #{tpu_custom_call.1} parent=67 // pred_region
          %p463 = scmp.lt.s32.totalorder %s25, 1
          %s464 = scalar_select %p463, %s25, 1
          %s465 = smul.addr %s464, 8
          %s466 = scalar_lea.vmem %s0, %s465
        $region72: #{tpu_custom_call.1} parent=67 // pred_fallthru
          _
        // Predicated region
        $region73: #{tpu_custom_call.1} parent=67 // pred_check
          %p467 = pneg %p71
        $region74: #{tpu_custom_call.1} parent=67 // pred_check_branch
          %469 = sbr.rel (%p467) target = $region76
        $region75: #{tpu_custom_call.1} parent=67 // pred_region
          %p470 = scmp.lt.s32.totalorder %s25, 1
          %s471 = scalar_select %p470, %s25, 1
          %s472 = smul.addr %s471, 8
          %s473 = scalar_lea.vmem %s1, %s472
        $region76: #{tpu_custom_call.1} parent=67 // pred_fallthru
          _
        // Predicated region
        $region77: #{tpu_custom_call.1} parent=67 // pred_check
          %p474 = pneg %p118
        $region78: #{tpu_custom_call.1} parent=67 // pred_check_branch
          %476 = sbr.rel (%p474) target = $region80
        $region79: #{tpu_custom_call.1} parent=67 // pred_region
          %p477 = scmp.lt.s32.totalorder %s25, 1
          %s478 = scalar_select %p477, %s25, 1
          %s479 = scalar_lea.vmem %s3, %s478
        $region80: #{tpu_custom_call.1} parent=67 // pred_fallthru
          _
      $region68: #{tpu_custom_call.1} parent=5 // pred_fallthru
        _
      %p480 = scmp.le.s32.totalorder 1, %s25
      %p481 = scmp.lt.s32.totalorder %s25, 3
      %p482 = pnand %p480, %p481
      %p483 = pneg %p482
      // Predicated region
      $region81: #{tpu_custom_call.1} parent=5 // pred_check
        _
      $region82: #{tpu_custom_call.1} parent=5 // pred_check_branch
        %485 = sbr.rel (%p482) target = $region84
      $region83: #{tpu_custom_call.1} parent=5 // pred_region
        %s486 = ssub.s32 %s25, 1
        %p487 = scmp.lt.s32.totalorder %s30, 1
        %s488 = scalar_select %p487, %s30, 1
        %s489 = smul.addr %s488, 8
        %s490 = scalar_lea.vmem %s0, %s489
        %p491 = pneg %p51
        %p492 = pneg %p48
        %p493 = scmp.lt.s32.totalorder %s30, 1
        %s494 = scalar_select %p493, %s30, 1
        %s495 = smul.addr %s494, 8
        %s496 = scalar_lea.vmem %s1, %s495
        %p497 = pneg %p77
        %p498 = pneg %p74
        %p499 = pneg %p98
        %p500 = pneg %p95
        %p501 = scmp.lt.s32.totalorder %s30, 1
        %s502 = scalar_select %p501, %s30, 1
        %s503 = scalar_lea.vmem %s3, %s502
        %p504 = pneg %p124
        %p505 = pneg %p121
        %p506 = pneg %p145
        %p507 = pneg %p142
        %p508 = pneg %p166
        %p509 = pneg %p163
        %p510 = pneg %p187
        %p511 = pneg %p184
        %p512 = pneg %p208
        %p513 = pneg %p205
        %p514 = pneg %p229
        %p515 = pneg %p226
        %p516 = pneg %p250
        %p517 = pneg %p247
        %p518 = pneg %p271
        %p519 = pneg %p268
        %p520 = pneg %p292
        %p521 = pneg %p289
        %p522 = pneg %p313
        %p523 = pneg %p310
        %p524 = pneg %p334
        %p525 = pneg %p331
        %p526 = pneg %p355
        %p527 = pneg %p352
        %p528 = pneg %p376
        %p529 = pneg %p373
        %p530 = pneg %p402
        %p531 = pneg %p399
        %s532 = sand.u32 %s389, 1
        %s533 = scalar_lea.sflag [#allocation3], %s532
        %s534 = sand.u32 %s389, 1
        %s535 = smul.addr %s534, 8
        %s536 = scalar_lea.vmem [#allocation2], %s535
        %p537 = scmp.lt.s32.totalorder %s30, 1
        %s538 = scalar_select %p537, %s30, 1
        %s539 = smul.addr %s538, 8
        %s540 = scalar_lea.vmem %s0, %s539
        %p541 = scmp.lt.s32.totalorder %s30, 1
        %s542 = scalar_select %p541, %s30, 1
        %s543 = smul.addr %s542, 8
        %s544 = scalar_lea.vmem %s1, %s543
        %p545 = scmp.lt.s32.totalorder %s30, 1
        %s546 = scalar_select %p545, %s30, 1
        %s547 = scalar_lea.vmem %s3, %s546
        %v548 = vld [vmem:[%s540] sm:$0xff]
        %v549 = vld [vmem:[%s544] sm:$0xff]
        %v550 = vld [vmem:[%s2] sm:$0xff]
        %v551 = vld [vmem:[%s547] sm:$0x1]
        %v552 = vld [vmem:[%s14] sm:$0x1]
        %v553 = vld [vmem:[%s14 + $0x1] sm:$0x1]
        %v554 = vld [vmem:[%s14 + $0x2] sm:$0x1]
        %v555 = vld [vmem:[%s14 + $0x3] sm:$0x1]
        %v556 = vld [vmem:[%s14 + $0x4] sm:$0x1]
        %v557 = vld [vmem:[%s14 + $0x5] sm:$0x1]
        %v558 = vld [vmem:[%s15] sm:$0x1]
        %v559 = vld [vmem:[%s15 + $0x1] sm:$0x1]
        %v560 = vld [vmem:[%s15 + $0x2] sm:$0x1]
        %v561 = vld [vmem:[%s15 + $0x3] sm:$0x1]
        %v562 = vld [vmem:[%s4] sm:$0xff]
        %v563 = vld [vmem:[%s4 + $0x8] sm:$0xff]
        %v564 = vld [vmem:[%s4 + $0x10] sm:$0xff]
        %v565 = vld [vmem:[%s4 + $0x18] sm:$0xff]
        %v566 = vld [vmem:[%s4 + $0x20] sm:$0xff]
        %v567 = vld [vmem:[%s4 + $0x28] sm:$0xff]
        %v568 = vld [vmem:[%s4 + $0x30] sm:$0xff]
        %v569 = vld [vmem:[%s4 + $0x38] sm:$0xff]
        %v570 = vld [vmem:[%s4 + $0x40] sm:$0xff]
        %v571 = vld [vmem:[%s4 + $0x48] sm:$0xff]
        %v572 = vld [vmem:[%s4 + $0x50] sm:$0xff]
        %v573 = vld [vmem:[%s4 + $0x58] sm:$0xff]
        %v574 = vld [vmem:[%s4 + $0x60] sm:$0xff]
        %v575 = vld [vmem:[%s4 + $0x68] sm:$0xff]
        %v576 = vld [vmem:[%s4 + $0x70] sm:$0xff]
        %v577 = vld [vmem:[%s4 + $0x78] sm:$0xff]
        %v578 = vld [vmem:[%s4 + $0x80] sm:$0xff]
        %v579 = vld [vmem:[%s4 + $0x88] sm:$0xff]
        %v580 = vld [vmem:[%s4 + $0x90] sm:$0xff]
        %v581 = vld [vmem:[%s4 + $0x98] sm:$0xff]
        %v582 = vld [vmem:[%s4 + $0xa0] sm:$0xff]
        %v583 = vld [vmem:[%s4 + $0xa8] sm:$0xff]
        %v584 = vld [vmem:[%s4 + $0xb0] sm:$0xff]
        %v585 = vld [vmem:[%s4 + $0xb8] sm:$0xff]
        %v586 = vld [vmem:[%s4 + $0xc0] sm:$0xff]
        %v587 = vld [vmem:[%s4 + $0xc8] sm:$0xff]
        %v588 = vld [vmem:[%s4 + $0xd0] sm:$0xff]
        %v589 = vld [vmem:[%s4 + $0xd8] sm:$0xff]
        %v590 = vld [vmem:[%s4 + $0xe0] sm:$0xff]
        %v591 = vld [vmem:[%s4 + $0xe8] sm:$0xff]
        %v592 = vld [vmem:[%s4 + $0xf0] sm:$0xff]
        %v593 = vld [vmem:[%s4 + $0xf8] sm:$0xff]
        %v594 = vld [vmem:[%s4 + $0x100] sm:$0xff]
        %v595 = vld [vmem:[%s4 + $0x108] sm:$0xff]
        %v596 = vld [vmem:[%s4 + $0x110] sm:$0xff]
        %v597 = vld [vmem:[%s4 + $0x118] sm:$0xff]
        %v598 = vld [vmem:[%s4 + $0x120] sm:$0xff]
        %v599 = vld [vmem:[%s4 + $0x128] sm:$0xff]
        %v600 = vld [vmem:[%s4 + $0x130] sm:$0xff]
        %v601 = vld [vmem:[%s4 + $0x138] sm:$0xff]
        %v602 = vld [vmem:[%s4 + $0x140] sm:$0xff]
        %v603 = vld [vmem:[%s4 + $0x148] sm:$0xff]
        %v604 = vld [vmem:[%s4 + $0x150] sm:$0xff]
        %v605 = vld [vmem:[%s4 + $0x158] sm:$0xff]
        %v606 = vld [vmem:[%s4 + $0x160] sm:$0xff]
        %v607 = vld [vmem:[%s4 + $0x168] sm:$0xff]
        %v608 = vld [vmem:[%s4 + $0x170] sm:$0xff]
        %v609 = vld [vmem:[%s4 + $0x178] sm:$0xff]
        %v610 = vld [vmem:[%s5] sm:$0x1]
        %v611 = vld [vmem:[%s5 + $0x1] sm:$0x1]
        %v612 = vld [vmem:[%s5 + $0x2] sm:$0x1]
        %v613 = vld [vmem:[%s5 + $0x3] sm:$0x1]
        %v614 = vld [vmem:[%s5 + $0x4] sm:$0x1]
        %v615 = vld [vmem:[%s5 + $0x5] sm:$0x1]
        %v616 = vld [vmem:[%s5 + $0x6] sm:$0x1]
        %v617 = vld [vmem:[%s5 + $0x7] sm:$0x1]
        %v618 = vld [vmem:[%s5 + $0x8] sm:$0x1]
        %v619 = vld [vmem:[%s5 + $0x9] sm:$0x1]
        %v620 = vld [vmem:[%s5 + $0xa] sm:$0x1]
        %v621 = vld [vmem:[%s5 + $0xb] sm:$0x1]
        %v634 = vlaneseq
        %v635 = vshrl.u32 %v634, 7
        %v636 = vsub.s32 0, %v635
        %v637 = vrot.slane %v610, %v636
        %v638 = vlaneseq
        %v639 = vshrl.u32 %v638, 7
        %v640 = vsub.s32 0, %v639
        %v641 = vrot.slane %v611, %v640
        %v642 = vlaneseq
        %v643 = vshrl.u32 %v642, 7
        %v644 = vsub.s32 0, %v643
        %v645 = vrot.slane %v612, %v644
        %v646 = vlaneseq
        %v647 = vshrl.u32 %v646, 7
        %v648 = vsub.s32 0, %v647
        %v649 = vrot.slane %v613, %v648
        %v650 = vlaneseq
        %v651 = vshrl.u32 %v650, 7
        %v652 = vsub.s32 0, %v651
        %v653 = vrot.slane %v614, %v652
        %v654 = vlaneseq
        %v655 = vshrl.u32 %v654, 7
        %v656 = vsub.s32 0, %v655
        %v657 = vrot.slane %v615, %v656
        %v658 = vlaneseq
        %v659 = vshrl.u32 %v658, 7
        %v660 = vsub.s32 0, %v659
        %v661 = vrot.slane %v616, %v660
        %v662 = vlaneseq
        %v663 = vshrl.u32 %v662, 7
        %v664 = vsub.s32 0, %v663
        %v665 = vrot.slane %v617, %v664
        %v666 = vlaneseq
        %v667 = vshrl.u32 %v666, 7
        %v668 = vsub.s32 0, %v667
        %v669 = vrot.slane %v618, %v668
        %v670 = vlaneseq
        %v671 = vshrl.u32 %v670, 7
        %v672 = vsub.s32 0, %v671
        %v673 = vrot.slane %v619, %v672
        %v674 = vlaneseq
        %v675 = vshrl.u32 %v674, 7
        %v676 = vsub.s32 0, %v675
        %v677 = vrot.slane %v620, %v676
        %v678 = vlaneseq
        %v679 = vshrl.u32 %v678, 7
        %v680 = vsub.s32 0, %v679
        %v681 = vrot.slane %v621, %v680
        %vm694 = vcmask 261120
        %v696 = vsel %vm694, %v548, 0
        %698 = vmatprep.subr.mxu0 0.0
        %699 = vmatpush1.msra.mxu0 0.0
        %700 = vmatprep.subr.mxu0 0.0
        %701 = vmatpush1.msra.mxu0 0.0
        %702 = vmatprep.subr.mxu0 0.0
        %703 = vmatpush1.msra.mxu0 0.0
        %704 = vmatprep.subr.mxu0 0.0
        %705 = vmatpush1.msra.mxu0 0.0
        %706 = vmatprep.subr.mxu0 0.0
        %707 = vmatpush1.msra.mxu0 0.0
        %708 = vmatprep.subr.mxu0 0.0
        %709 = vmatpush1.msra.mxu0 0.0
        %710 = vmatprep.subr.mxu0 0.0
        %711 = vmatpush1.msra.mxu0 0.0
        %712 = vmatprep.subr.mxu0 0.0
        %713 = vmatpush1.msra.mxu0 0.0
        %714 = vmatprep.subr.mxu0 0.0
        %715 = vmatpush1.msra.mxu0 0.0
        %716 = vmatprep.subr.mxu0 0.0
        %717 = vmatpush1.msra.mxu0 0.0
        %718 = vmatprep.subr.mxu0 0.0
        %719 = vmatpush1.msra.mxu0 0.0
        %720 = vmatprep.subr.mxu0 0.0
        %721 = vmatpush1.msra.mxu0 0.0
        %722 = vmatprep.subr.mxu0 0.0
        %723 = vmatpush1.msra.mxu0 %v565
        %724 = vmatprep.subr.mxu0 0.0
        %725 = vmatpush1.msra.mxu0 %v564
        %726 = vmatprep.subr.mxu0 0.0
        %727 = vmatpush1.msra.mxu0 %v563
        %728 = vmatprep.subr.mxu0 0.0
        %729 = vmatpush1.msra.mxu0 %v562
        %730 = vmatprep.subr.mxu0 0.0
        %731 = vmatpush2.msra.mxu0 0.0
        %732 = vmatprep.subr.mxu0 0.0
        %733 = vmatpush2.msra.mxu0 0.0
        %734 = vmatprep.subr.mxu0 0.0
        %735 = vmatpush2.msra.mxu0 0.0
        %736 = vmatprep.subr.mxu0 0.0
        %737 = vmatpush2.msra.mxu0 0.0
        %738 = vmatprep.subr.mxu0 0.0
        %739 = vmatpush2.msra.mxu0 0.0
        %740 = vmatprep.subr.mxu0 0.0
        %741 = vmatpush2.msra.mxu0 0.0
        %742 = vmatprep.subr.mxu0 0.0
        %743 = vmatpush2.msra.mxu0 0.0
        %744 = vmatprep.subr.mxu0 0.0
        %745 = vmatpush2.msra.mxu0 0.0
        %746 = vmatprep.subr.mxu0 0.0
        %747 = vmatpush2.msra.mxu0 0.0
        %748 = vmatprep.subr.mxu0 0.0
        %749 = vmatpush2.msra.mxu0 0.0
        %750 = vmatprep.subr.mxu0 0.0
        %751 = vmatpush2.msra.mxu0 0.0
        %752 = vmatprep.subr.mxu0 0.0
        %753 = vmatpush2.msra.mxu0 0.0
        %754 = vmatprep.subr.mxu0 0.0
        %755 = vmatpush2.msra.mxu0 0.0
        %756 = vmatprep.subr.mxu0 0.0
        %757 = vmatpush2.msra.mxu0 0.0
        %758 = vmatprep.subr.mxu0 0.0
        %759 = vmatpush2.msra.mxu0 0.0
        %760 = vmatprep.subr.mxu0 0.0
        %761 = vmatpush2.msra.mxu0 0.0
        %762 = vmatprep.mubr.f32.mxu0 0.0
        %763 = vmatmul.mubr.f32.gmra.mxu0 %v696
        %v764 = vpop.f32.mrf.mxu0
        %v765 = vadd.f32 %v637, %v764
        %v766 = vpop.f32.mrf.mxu0
        %767 = vdwg.mxu0
        %768 = vmatprep.subr.mxu0 0.0
        %769 = vmatpush1.msra.mxu0 0.0
        %770 = vmatprep.subr.mxu0 0.0
        %771 = vmatpush1.msra.mxu0 0.0
        %772 = vmatprep.subr.mxu0 0.0
        %773 = vmatpush1.msra.mxu0 0.0
        %774 = vmatprep.subr.mxu0 0.0
        %775 = vmatpush1.msra.mxu0 0.0
        %776 = vmatprep.subr.mxu0 0.0
        %777 = vmatpush1.msra.mxu0 0.0
        %778 = vmatprep.subr.mxu0 0.0
        %779 = vmatpush1.msra.mxu0 0.0
        %780 = vmatprep.subr.mxu0 0.0
        %781 = vmatpush1.msra.mxu0 0.0
        %782 = vmatprep.subr.mxu0 0.0
        %783 = vmatpush1.msra.mxu0 0.0
        %784 = vmatprep.subr.mxu0 0.0
        %785 = vmatpush1.msra.mxu0 0.0
        %786 = vmatprep.subr.mxu0 0.0
        %787 = vmatpush1.msra.mxu0 0.0
        %788 = vmatprep.subr.mxu0 0.0
        %789 = vmatpush1.msra.mxu0 0.0
        %790 = vmatprep.subr.mxu0 0.0
        %791 = vmatpush1.msra.mxu0 0.0
        %792 = vmatprep.subr.mxu0 0.0
        %793 = vmatpush1.msra.mxu0 %v569
        %794 = vmatprep.subr.mxu0 0.0
        %795 = vmatpush1.msra.mxu0 %v568
        %796 = vmatprep.subr.mxu0 0.0
        %797 = vmatpush1.msra.mxu0 %v567
        %798 = vmatprep.subr.mxu0 0.0
        %799 = vmatpush1.msra.mxu0 %v566
        %800 = vmatprep.subr.mxu0 0.0
        %801 = vmatpush2.msra.mxu0 0.0
        %802 = vmatprep.subr.mxu0 0.0
        %803 = vmatpush2.msra.mxu0 0.0
        %804 = vmatprep.subr.mxu0 0.0
        %805 = vmatpush2.msra.mxu0 0.0
        %806 = vmatprep.subr.mxu0 0.0
        %807 = vmatpush2.msra.mxu0 0.0
        %808 = vmatprep.subr.mxu0 0.0
        %809 = vmatpush2.msra.mxu0 0.0
        %810 = vmatprep.subr.mxu0 0.0
        %811 = vmatpush2.msra.mxu0 0.0
        %812 = vmatprep.subr.mxu0 0.0
        %813 = vmatpush2.msra.mxu0 0.0
        %814 = vmatprep.subr.mxu0 0.0
        %815 = vmatpush2.msra.mxu0 0.0
        %816 = vmatprep.subr.mxu0 0.0
        %817 = vmatpush2.msra.mxu0 0.0
        %818 = vmatprep.subr.mxu0 0.0
        %819 = vmatpush2.msra.mxu0 0.0
        %820 = vmatprep.subr.mxu0 0.0
        %821 = vmatpush2.msra.mxu0 0.0
        %822 = vmatprep.subr.mxu0 0.0
        %823 = vmatpush2.msra.mxu0 0.0
        %824 = vmatprep.subr.mxu0 0.0
        %825 = vmatpush2.msra.mxu0 0.0
        %826 = vmatprep.subr.mxu0 0.0
        %827 = vmatpush2.msra.mxu0 0.0
        %828 = vmatprep.subr.mxu0 0.0
        %829 = vmatpush2.msra.mxu0 0.0
        %830 = vmatprep.subr.mxu0 0.0
        %831 = vmatpush2.msra.mxu0 0.0
        %832 = vmatprep.mubr.f32.mxu0 0.0
        %833 = vmatmul.mubr.f32.gmra.mxu0 %v696
        %v834 = vpop.f32.mrf.mxu0
        %v835 = vadd.f32 %v641, %v834
        %v836 = vpop.f32.mrf.mxu0
        %837 = vdwg.mxu0
        %838 = vmatprep.subr.mxu0 0.0
        %839 = vmatpush1.msra.mxu0 0.0
        %840 = vmatprep.subr.mxu0 0.0
        %841 = vmatpush1.msra.mxu0 0.0
        %842 = vmatprep.subr.mxu0 0.0
        %843 = vmatpush1.msra.mxu0 0.0
        %844 = vmatprep.subr.mxu0 0.0
        %845 = vmatpush1.msra.mxu0 0.0
        %846 = vmatprep.subr.mxu0 0.0
        %847 = vmatpush1.msra.mxu0 0.0
        %848 = vmatprep.subr.mxu0 0.0
        %849 = vmatpush1.msra.mxu0 0.0
        %850 = vmatprep.subr.mxu0 0.0
        %851 = vmatpush1.msra.mxu0 0.0
        %852 = vmatprep.subr.mxu0 0.0
        %853 = vmatpush1.msra.mxu0 0.0
        %854 = vmatprep.subr.mxu0 0.0
        %855 = vmatpush1.msra.mxu0 0.0
        %856 = vmatprep.subr.mxu0 0.0
        %857 = vmatpush1.msra.mxu0 0.0
        %858 = vmatprep.subr.mxu0 0.0
        %859 = vmatpush1.msra.mxu0 0.0
        %860 = vmatprep.subr.mxu0 0.0
        %861 = vmatpush1.msra.mxu0 0.0
        %862 = vmatprep.subr.mxu0 0.0
        %863 = vmatpush1.msra.mxu0 %v573
        %864 = vmatprep.subr.mxu0 0.0
        %865 = vmatpush1.msra.mxu0 %v572
        %866 = vmatprep.subr.mxu0 0.0
        %867 = vmatpush1.msra.mxu0 %v571
        %868 = vmatprep.subr.mxu0 0.0
        %869 = vmatpush1.msra.mxu0 %v570
        %870 = vmatprep.subr.mxu0 0.0
        %871 = vmatpush2.msra.mxu0 0.0
        %872 = vmatprep.subr.mxu0 0.0
        %873 = vmatpush2.msra.mxu0 0.0
        %874 = vmatprep.subr.mxu0 0.0
        %875 = vmatpush2.msra.mxu0 0.0
        %876 = vmatprep.subr.mxu0 0.0
        %877 = vmatpush2.msra.mxu0 0.0
        %878 = vmatprep.subr.mxu0 0.0
        %879 = vmatpush2.msra.mxu0 0.0
        %880 = vmatprep.subr.mxu0 0.0
        %881 = vmatpush2.msra.mxu0 0.0
        %882 = vmatprep.subr.mxu0 0.0
        %883 = vmatpush2.msra.mxu0 0.0
        %884 = vmatprep.subr.mxu0 0.0
        %885 = vmatpush2.msra.mxu0 0.0
        %886 = vmatprep.subr.mxu0 0.0
        %887 = vmatpush2.msra.mxu0 0.0
        %888 = vmatprep.subr.mxu0 0.0
        %889 = vmatpush2.msra.mxu0 0.0
        %890 = vmatprep.subr.mxu0 0.0
        %891 = vmatpush2.msra.mxu0 0.0
        %892 = vmatprep.subr.mxu0 0.0
        %893 = vmatpush2.msra.mxu0 0.0
        %894 = vmatprep.subr.mxu0 0.0
        %895 = vmatpush2.msra.mxu0 0.0
        %896 = vmatprep.subr.mxu0 0.0
        %897 = vmatpush2.msra.mxu0 0.0
        %898 = vmatprep.subr.mxu0 0.0
        %899 = vmatpush2.msra.mxu0 0.0
        %900 = vmatprep.subr.mxu0 0.0
        %901 = vmatpush2.msra.mxu0 0.0
        %902 = vmatprep.mubr.f32.mxu0 0.0
        %903 = vmatmul.mubr.f32.gmra.mxu0 %v696
        %v904 = vpop.f32.mrf.mxu0
        %v905 = vadd.f32 %v645, %v904
        %v906 = vpop.f32.mrf.mxu0
        %907 = vdwg.mxu0
        %908 = vmatprep.subr.mxu0 0.0
        %909 = vmatpush1.msra.mxu0 0.0
        %910 = vmatprep.subr.mxu0 0.0
        %911 = vmatpush1.msra.mxu0 0.0
        %912 = vmatprep.subr.mxu0 0.0
        %913 = vmatpush1.msra.mxu0 0.0
        %914 = vmatprep.subr.mxu0 0.0
        %915 = vmatpush1.msra.mxu0 0.0
        %916 = vmatprep.subr.mxu0 0.0
        %917 = vmatpush1.msra.mxu0 0.0
        %918 = vmatprep.subr.mxu0 0.0
        %919 = vmatpush1.msra.mxu0 0.0
        %920 = vmatprep.subr.mxu0 0.0
        %921 = vmatpush1.msra.mxu0 0.0
        %922 = vmatprep.subr.mxu0 0.0
        %923 = vmatpush1.msra.mxu0 0.0
        %924 = vmatprep.subr.mxu0 0.0
        %925 = vmatpush1.msra.mxu0 0.0
        %926 = vmatprep.subr.mxu0 0.0
        %927 = vmatpush1.msra.mxu0 0.0
        %928 = vmatprep.subr.mxu0 0.0
        %929 = vmatpush1.msra.mxu0 0.0
        %930 = vmatprep.subr.mxu0 0.0
        %931 = vmatpush1.msra.mxu0 0.0
        %932 = vmatprep.subr.mxu0 0.0
        %933 = vmatpush1.msra.mxu0 %v577
        %934 = vmatprep.subr.mxu0 0.0
        %935 = vmatpush1.msra.mxu0 %v576
        %936 = vmatprep.subr.mxu0 0.0
        %937 = vmatpush1.msra.mxu0 %v575
        %938 = vmatprep.subr.mxu0 0.0
        %939 = vmatpush1.msra.mxu0 %v574
        %940 = vmatprep.subr.mxu0 0.0
        %941 = vmatpush2.msra.mxu0 0.0
        %942 = vmatprep.subr.mxu0 0.0
        %943 = vmatpush2.msra.mxu0 0.0
        %944 = vmatprep.subr.mxu0 0.0
        %945 = vmatpush2.msra.mxu0 0.0
        %946 = vmatprep.subr.mxu0 0.0
        %947 = vmatpush2.msra.mxu0 0.0
        %948 = vmatprep.subr.mxu0 0.0
        %949 = vmatpush2.msra.mxu0 0.0
        %950 = vmatprep.subr.mxu0 0.0
        %951 = vmatpush2.msra.mxu0 0.0
        %952 = vmatprep.subr.mxu0 0.0
        %953 = vmatpush2.msra.mxu0 0.0
        %954 = vmatprep.subr.mxu0 0.0
        %955 = vmatpush2.msra.mxu0 0.0
        %956 = vmatprep.subr.mxu0 0.0
        %957 = vmatpush2.msra.mxu0 0.0
        %958 = vmatprep.subr.mxu0 0.0
        %959 = vmatpush2.msra.mxu0 0.0
        %960 = vmatprep.subr.mxu0 0.0
        %961 = vmatpush2.msra.mxu0 0.0
        %962 = vmatprep.subr.mxu0 0.0
        %963 = vmatpush2.msra.mxu0 0.0
        %964 = vmatprep.subr.mxu0 0.0
        %965 = vmatpush2.msra.mxu0 0.0
        %966 = vmatprep.subr.mxu0 0.0
        %967 = vmatpush2.msra.mxu0 0.0
        %968 = vmatprep.subr.mxu0 0.0
        %969 = vmatpush2.msra.mxu0 0.0
        %970 = vmatprep.subr.mxu0 0.0
        %971 = vmatpush2.msra.mxu0 0.0
        %972 = vmatprep.mubr.f32.mxu0 0.0
        %973 = vmatmul.mubr.f32.gmra.mxu0 %v696
        %v974 = vpop.f32.mrf.mxu0
        %v975 = vadd.f32 %v649, %v974
        %v976 = vpop.f32.mrf.mxu0
        %977 = vdwg.mxu0
        %978 = vmatprep.subr.mxu0 0.0
        %979 = vmatpush1.msra.mxu0 0.0
        %980 = vmatprep.subr.mxu0 0.0
        %981 = vmatpush1.msra.mxu0 0.0
        %982 = vmatprep.subr.mxu0 0.0
        %983 = vmatpush1.msra.mxu0 0.0
        %984 = vmatprep.subr.mxu0 0.0
        %985 = vmatpush1.msra.mxu0 0.0
        %986 = vmatprep.subr.mxu0 0.0
        %987 = vmatpush1.msra.mxu0 0.0
        %988 = vmatprep.subr.mxu0 0.0
        %989 = vmatpush1.msra.mxu0 0.0
        %990 = vmatprep.subr.mxu0 0.0
        %991 = vmatpush1.msra.mxu0 0.0
        %992 = vmatprep.subr.mxu0 0.0
        %993 = vmatpush1.msra.mxu0 0.0
        %994 = vmatprep.subr.mxu0 0.0
        %995 = vmatpush1.msra.mxu0 0.0
        %996 = vmatprep.subr.mxu0 0.0
        %997 = vmatpush1.msra.mxu0 0.0
        %998 = vmatprep.subr.mxu0 0.0
        %999 = vmatpush1.msra.mxu0 0.0
        %1000 = vmatprep.subr.mxu0 0.0
        %1001 = vmatpush1.msra.mxu0 0.0
        %1002 = vmatprep.subr.mxu0 0.0
        %1003 = vmatpush1.msra.mxu0 %v581
        %1004 = vmatprep.subr.mxu0 0.0
        %1005 = vmatpush1.msra.mxu0 %v580
        %1006 = vmatprep.subr.mxu0 0.0
        %1007 = vmatpush1.msra.mxu0 %v579
        %1008 = vmatprep.subr.mxu0 0.0
        %1009 = vmatpush1.msra.mxu0 %v578
        %1010 = vmatprep.subr.mxu0 0.0
        %1011 = vmatpush2.msra.mxu0 0.0
        %1012 = vmatprep.subr.mxu0 0.0
        %1013 = vmatpush2.msra.mxu0 0.0
        %1014 = vmatprep.subr.mxu0 0.0
        %1015 = vmatpush2.msra.mxu0 0.0
        %1016 = vmatprep.subr.mxu0 0.0
        %1017 = vmatpush2.msra.mxu0 0.0
        %1018 = vmatprep.subr.mxu0 0.0
        %1019 = vmatpush2.msra.mxu0 0.0
        %1020 = vmatprep.subr.mxu0 0.0
        %1021 = vmatpush2.msra.mxu0 0.0
        %1022 = vmatprep.subr.mxu0 0.0
        %1023 = vmatpush2.msra.mxu0 0.0
        %1024 = vmatprep.subr.mxu0 0.0
        %1025 = vmatpush2.msra.mxu0 0.0
        %1026 = vmatprep.subr.mxu0 0.0
        %1027 = vmatpush2.msra.mxu0 0.0
        %1028 = vmatprep.subr.mxu0 0.0
        %1029 = vmatpush2.msra.mxu0 0.0
        %1030 = vmatprep.subr.mxu0 0.0
        %1031 = vmatpush2.msra.mxu0 0.0
        %1032 = vmatprep.subr.mxu0 0.0
        %1033 = vmatpush2.msra.mxu0 0.0
        %1034 = vmatprep.subr.mxu0 0.0
        %1035 = vmatpush2.msra.mxu0 0.0
        %1036 = vmatprep.subr.mxu0 0.0
        %1037 = vmatpush2.msra.mxu0 0.0
        %1038 = vmatprep.subr.mxu0 0.0
        %1039 = vmatpush2.msra.mxu0 0.0
        %1040 = vmatprep.subr.mxu0 0.0
        %1041 = vmatpush2.msra.mxu0 0.0
        %1042 = vmatprep.mubr.f32.mxu0 0.0
        %1043 = vmatmul.mubr.f32.gmra.mxu0 %v696
        %v1044 = vpop.f32.mrf.mxu0
        %v1045 = vadd.f32 %v653, %v1044
        %v1046 = vpop.f32.mrf.mxu0
        %1047 = vdwg.mxu0
        %1048 = vmatprep.subr.mxu0 0.0
        %1049 = vmatpush1.msra.mxu0 0.0
        %1050 = vmatprep.subr.mxu0 0.0
        %1051 = vmatpush1.msra.mxu0 0.0
        %1052 = vmatprep.subr.mxu0 0.0
        %1053 = vmatpush1.msra.mxu0 0.0
        %1054 = vmatprep.subr.mxu0 0.0
        %1055 = vmatpush1.msra.mxu0 0.0
        %1056 = vmatprep.subr.mxu0 0.0
        %1057 = vmatpush1.msra.mxu0 0.0
        %1058 = vmatprep.subr.mxu0 0.0
        %1059 = vmatpush1.msra.mxu0 0.0
        %1060 = vmatprep.subr.mxu0 0.0
        %1061 = vmatpush1.msra.mxu0 0.0
        %1062 = vmatprep.subr.mxu0 0.0
        %1063 = vmatpush1.msra.mxu0 0.0
        %1064 = vmatprep.subr.mxu0 0.0
        %1065 = vmatpush1.msra.mxu0 0.0
        %1066 = vmatprep.subr.mxu0 0.0
        %1067 = vmatpush1.msra.mxu0 0.0
        %1068 = vmatprep.subr.mxu0 0.0
        %1069 = vmatpush1.msra.mxu0 0.0
        %1070 = vmatprep.subr.mxu0 0.0
        %1071 = vmatpush1.msra.mxu0 0.0
        %1072 = vmatprep.subr.mxu0 0.0
        %1073 = vmatpush1.msra.mxu0 %v585
        %1074 = vmatprep.subr.mxu0 0.0
        %1075 = vmatpush1.msra.mxu0 %v584
        %1076 = vmatprep.subr.mxu0 0.0
        %1077 = vmatpush1.msra.mxu0 %v583
        %1078 = vmatprep.subr.mxu0 0.0
        %1079 = vmatpush1.msra.mxu0 %v582
        %1080 = vmatprep.subr.mxu0 0.0
        %1081 = vmatpush2.msra.mxu0 0.0
        %1082 = vmatprep.subr.mxu0 0.0
        %1083 = vmatpush2.msra.mxu0 0.0
        %1084 = vmatprep.subr.mxu0 0.0
        %1085 = vmatpush2.msra.mxu0 0.0
        %1086 = vmatprep.subr.mxu0 0.0
        %1087 = vmatpush2.msra.mxu0 0.0
        %1088 = vmatprep.subr.mxu0 0.0
        %1089 = vmatpush2.msra.mxu0 0.0
        %1090 = vmatprep.subr.mxu0 0.0
        %1091 = vmatpush2.msra.mxu0 0.0
        %1092 = vmatprep.subr.mxu0 0.0
        %1093 = vmatpush2.msra.mxu0 0.0
        %1094 = vmatprep.subr.mxu0 0.0
        %1095 = vmatpush2.msra.mxu0 0.0
        %1096 = vmatprep.subr.mxu0 0.0
        %1097 = vmatpush2.msra.mxu0 0.0
        %1098 = vmatprep.subr.mxu0 0.0
        %1099 = vmatpush2.msra.mxu0 0.0
        %1100 = vmatprep.subr.mxu0 0.0
        %1101 = vmatpush2.msra.mxu0 0.0
        %1102 = vmatprep.subr.mxu0 0.0
        %1103 = vmatpush2.msra.mxu0 0.0
        %1104 = vmatprep.subr.mxu0 0.0
        %1105 = vmatpush2.msra.mxu0 0.0
        %1106 = vmatprep.subr.mxu0 0.0
        %1107 = vmatpush2.msra.mxu0 0.0
        %1108 = vmatprep.subr.mxu0 0.0
        %1109 = vmatpush2.msra.mxu0 0.0
        %1110 = vmatprep.subr.mxu0 0.0
        %1111 = vmatpush2.msra.mxu0 0.0
        %1112 = vmatprep.mubr.f32.mxu0 0.0
        %1113 = vmatmul.mubr.f32.gmra.mxu0 %v696
        %v1114 = vpop.f32.mrf.mxu0
        %v1115 = vadd.f32 %v657, %v1114
        %v1116 = vpop.f32.mrf.mxu0
        %1117 = vdwg.mxu0
        %1118 = vmatprep.subr.mxu0 0.0
        %1119 = vmatpush1.msra.mxu0 0.0
        %1120 = vmatprep.subr.mxu0 0.0
        %1121 = vmatpush1.msra.mxu0 0.0
        %1122 = vmatprep.subr.mxu0 0.0
        %1123 = vmatpush1.msra.mxu0 0.0
        %1124 = vmatprep.subr.mxu0 0.0
        %1125 = vmatpush1.msra.mxu0 0.0
        %1126 = vmatprep.subr.mxu0 0.0
        %1127 = vmatpush1.msra.mxu0 0.0
        %1128 = vmatprep.subr.mxu0 0.0
        %1129 = vmatpush1.msra.mxu0 0.0
        %1130 = vmatprep.subr.mxu0 0.0
        %1131 = vmatpush1.msra.mxu0 0.0
        %1132 = vmatprep.subr.mxu0 0.0
        %1133 = vmatpush1.msra.mxu0 0.0
        %1134 = vmatprep.subr.mxu0 0.0
        %1135 = vmatpush1.msra.mxu0 0.0
        %1136 = vmatprep.subr.mxu0 0.0
        %1137 = vmatpush1.msra.mxu0 0.0
        %1138 = vmatprep.subr.mxu0 0.0
        %1139 = vmatpush1.msra.mxu0 0.0
        %1140 = vmatprep.subr.mxu0 0.0
        %1141 = vmatpush1.msra.mxu0 0.0
        %1142 = vmatprep.subr.mxu0 0.0
        %1143 = vmatpush1.msra.mxu0 %v589
        %1144 = vmatprep.subr.mxu0 0.0
        %1145 = vmatpush1.msra.mxu0 %v588
        %1146 = vmatprep.subr.mxu0 0.0
        %1147 = vmatpush1.msra.mxu0 %v587
        %1148 = vmatprep.subr.mxu0 0.0
        %1149 = vmatpush1.msra.mxu0 %v586
        %1150 = vmatprep.subr.mxu0 0.0
        %1151 = vmatpush2.msra.mxu0 0.0
        %1152 = vmatprep.subr.mxu0 0.0
        %1153 = vmatpush2.msra.mxu0 0.0
        %1154 = vmatprep.subr.mxu0 0.0
        %1155 = vmatpush2.msra.mxu0 0.0
        %1156 = vmatprep.subr.mxu0 0.0
        %1157 = vmatpush2.msra.mxu0 0.0
        %1158 = vmatprep.subr.mxu0 0.0
        %1159 = vmatpush2.msra.mxu0 0.0
        %1160 = vmatprep.subr.mxu0 0.0
        %1161 = vmatpush2.msra.mxu0 0.0
        %1162 = vmatprep.subr.mxu0 0.0
        %1163 = vmatpush2.msra.mxu0 0.0
        %1164 = vmatprep.subr.mxu0 0.0
        %1165 = vmatpush2.msra.mxu0 0.0
        %1166 = vmatprep.subr.mxu0 0.0
        %1167 = vmatpush2.msra.mxu0 0.0
        %1168 = vmatprep.subr.mxu0 0.0
        %1169 = vmatpush2.msra.mxu0 0.0
        %1170 = vmatprep.subr.mxu0 0.0
        %1171 = vmatpush2.msra.mxu0 0.0
        %1172 = vmatprep.subr.mxu0 0.0
        %1173 = vmatpush2.msra.mxu0 0.0
        %1174 = vmatprep.subr.mxu0 0.0
        %1175 = vmatpush2.msra.mxu0 0.0
        %1176 = vmatprep.subr.mxu0 0.0
        %1177 = vmatpush2.msra.mxu0 0.0
        %1178 = vmatprep.subr.mxu0 0.0
        %1179 = vmatpush2.msra.mxu0 0.0
        %1180 = vmatprep.subr.mxu0 0.0
        %1181 = vmatpush2.msra.mxu0 0.0
        %1182 = vmatprep.mubr.f32.mxu0 0.0
        %1183 = vmatmul.mubr.f32.gmra.mxu0 %v696
        %v1184 = vpop.f32.mrf.mxu0
        %v1185 = vadd.f32 %v661, %v1184
        %v1186 = vpop.f32.mrf.mxu0
        %1187 = vdwg.mxu0
        %1188 = vmatprep.subr.mxu0 0.0
        %1189 = vmatpush1.msra.mxu0 0.0
        %1190 = vmatprep.subr.mxu0 0.0
        %1191 = vmatpush1.msra.mxu0 0.0
        %1192 = vmatprep.subr.mxu0 0.0
        %1193 = vmatpush1.msra.mxu0 0.0
        %1194 = vmatprep.subr.mxu0 0.0
        %1195 = vmatpush1.msra.mxu0 0.0
        %1196 = vmatprep.subr.mxu0 0.0
        %1197 = vmatpush1.msra.mxu0 0.0
        %1198 = vmatprep.subr.mxu0 0.0
        %1199 = vmatpush1.msra.mxu0 0.0
        %1200 = vmatprep.subr.mxu0 0.0
        %1201 = vmatpush1.msra.mxu0 0.0
        %1202 = vmatprep.subr.mxu0 0.0
        %1203 = vmatpush1.msra.mxu0 0.0
        %1204 = vmatprep.subr.mxu0 0.0
        %1205 = vmatpush1.msra.mxu0 0.0
        %1206 = vmatprep.subr.mxu0 0.0
        %1207 = vmatpush1.msra.mxu0 0.0
        %1208 = vmatprep.subr.mxu0 0.0
        %1209 = vmatpush1.msra.mxu0 0.0
        %1210 = vmatprep.subr.mxu0 0.0
        %1211 = vmatpush1.msra.mxu0 0.0
        %1212 = vmatprep.subr.mxu0 0.0
        %1213 = vmatpush1.msra.mxu0 %v593
        %1214 = vmatprep.subr.mxu0 0.0
        %1215 = vmatpush1.msra.mxu0 %v592
        %1216 = vmatprep.subr.mxu0 0.0
        %1217 = vmatpush1.msra.mxu0 %v591
        %1218 = vmatprep.subr.mxu0 0.0
        %1219 = vmatpush1.msra.mxu0 %v590
        %1220 = vmatprep.subr.mxu0 0.0
        %1221 = vmatpush2.msra.mxu0 0.0
        %1222 = vmatprep.subr.mxu0 0.0
        %1223 = vmatpush2.msra.mxu0 0.0
        %1224 = vmatprep.subr.mxu0 0.0
        %1225 = vmatpush2.msra.mxu0 0.0
        %1226 = vmatprep.subr.mxu0 0.0
        %1227 = vmatpush2.msra.mxu0 0.0
        %1228 = vmatprep.subr.mxu0 0.0
        %1229 = vmatpush2.msra.mxu0 0.0
        %1230 = vmatprep.subr.mxu0 0.0
        %1231 = vmatpush2.msra.mxu0 0.0
        %1232 = vmatprep.subr.mxu0 0.0
        %1233 = vmatpush2.msra.mxu0 0.0
        %1234 = vmatprep.subr.mxu0 0.0
        %1235 = vmatpush2.msra.mxu0 0.0
        %1236 = vmatprep.subr.mxu0 0.0
        %1237 = vmatpush2.msra.mxu0 0.0
        %1238 = vmatprep.subr.mxu0 0.0
        %1239 = vmatpush2.msra.mxu0 0.0
        %1240 = vmatprep.subr.mxu0 0.0
        %1241 = vmatpush2.msra.mxu0 0.0
        %1242 = vmatprep.subr.mxu0 0.0
        %1243 = vmatpush2.msra.mxu0 0.0
        %1244 = vmatprep.subr.mxu0 0.0
        %1245 = vmatpush2.msra.mxu0 0.0
        %1246 = vmatprep.subr.mxu0 0.0
        %1247 = vmatpush2.msra.mxu0 0.0
        %1248 = vmatprep.subr.mxu0 0.0
        %1249 = vmatpush2.msra.mxu0 0.0
        %1250 = vmatprep.subr.mxu0 0.0
        %1251 = vmatpush2.msra.mxu0 0.0
        %1252 = vmatprep.mubr.f32.mxu0 0.0
        %1253 = vmatmul.mubr.f32.gmra.mxu0 %v696
        %v1254 = vpop.f32.mrf.mxu0
        %v1255 = vadd.f32 %v665, %v1254
        %v1256 = vpop.f32.mrf.mxu0
        %1257 = vdwg.mxu0
        %1258 = vmatprep.subr.mxu0 0.0
        %1259 = vmatpush1.msra.mxu0 0.0
        %1260 = vmatprep.subr.mxu0 0.0
        %1261 = vmatpush1.msra.mxu0 0.0
        %1262 = vmatprep.subr.mxu0 0.0
        %1263 = vmatpush1.msra.mxu0 0.0
        %1264 = vmatprep.subr.mxu0 0.0
        %1265 = vmatpush1.msra.mxu0 0.0
        %1266 = vmatprep.subr.mxu0 0.0
        %1267 = vmatpush1.msra.mxu0 0.0
        %1268 = vmatprep.subr.mxu0 0.0
        %1269 = vmatpush1.msra.mxu0 0.0
        %1270 = vmatprep.subr.mxu0 0.0
        %1271 = vmatpush1.msra.mxu0 0.0
        %1272 = vmatprep.subr.mxu0 0.0
        %1273 = vmatpush1.msra.mxu0 0.0
        %1274 = vmatprep.subr.mxu0 0.0
        %1275 = vmatpush1.msra.mxu0 0.0
        %1276 = vmatprep.subr.mxu0 0.0
        %1277 = vmatpush1.msra.mxu0 0.0
        %1278 = vmatprep.subr.mxu0 0.0
        %1279 = vmatpush1.msra.mxu0 0.0
        %1280 = vmatprep.subr.mxu0 0.0
        %1281 = vmatpush1.msra.mxu0 0.0
        %1282 = vmatprep.subr.mxu0 0.0
        %1283 = vmatpush1.msra.mxu0 %v597
        %1284 = vmatprep.subr.mxu0 0.0
        %1285 = vmatpush1.msra.mxu0 %v596
        %1286 = vmatprep.subr.mxu0 0.0
        %1287 = vmatpush1.msra.mxu0 %v595
        %1288 = vmatprep.subr.mxu0 0.0
        %1289 = vmatpush1.msra.mxu0 %v594
        %1290 = vmatprep.subr.mxu0 0.0
        %1291 = vmatpush2.msra.mxu0 0.0
        %1292 = vmatprep.subr.mxu0 0.0
        %1293 = vmatpush2.msra.mxu0 0.0
        %1294 = vmatprep.subr.mxu0 0.0
        %1295 = vmatpush2.msra.mxu0 0.0
        %1296 = vmatprep.subr.mxu0 0.0
        %1297 = vmatpush2.msra.mxu0 0.0
        %1298 = vmatprep.subr.mxu0 0.0
        %1299 = vmatpush2.msra.mxu0 0.0
        %1300 = vmatprep.subr.mxu0 0.0
        %1301 = vmatpush2.msra.mxu0 0.0
        %1302 = vmatprep.subr.mxu0 0.0
        %1303 = vmatpush2.msra.mxu0 0.0
        %1304 = vmatprep.subr.mxu0 0.0
        %1305 = vmatpush2.msra.mxu0 0.0
        %1306 = vmatprep.subr.mxu0 0.0
        %1307 = vmatpush2.msra.mxu0 0.0
        %1308 = vmatprep.subr.mxu0 0.0
        %1309 = vmatpush2.msra.mxu0 0.0
        %1310 = vmatprep.subr.mxu0 0.0
        %1311 = vmatpush2.msra.mxu0 0.0
        %1312 = vmatprep.subr.mxu0 0.0
        %1313 = vmatpush2.msra.mxu0 0.0
        %1314 = vmatprep.subr.mxu0 0.0
        %1315 = vmatpush2.msra.mxu0 0.0
        %1316 = vmatprep.subr.mxu0 0.0
        %1317 = vmatpush2.msra.mxu0 0.0
        %1318 = vmatprep.subr.mxu0 0.0
        %1319 = vmatpush2.msra.mxu0 0.0
        %1320 = vmatprep.subr.mxu0 0.0
        %1321 = vmatpush2.msra.mxu0 0.0
        %1322 = vmatprep.mubr.f32.mxu0 0.0
        %1323 = vmatmul.mubr.f32.gmra.mxu0 %v696
        %v1324 = vpop.f32.mrf.mxu0
        %v1325 = vadd.f32 %v669, %v1324
        %v1326 = vpop.f32.mrf.mxu0
        %1327 = vdwg.mxu0
        %1328 = vmatprep.subr.mxu0 0.0
        %1329 = vmatpush1.msra.mxu0 0.0
        %1330 = vmatprep.subr.mxu0 0.0
        %1331 = vmatpush1.msra.mxu0 0.0
        %1332 = vmatprep.subr.mxu0 0.0
        %1333 = vmatpush1.msra.mxu0 0.0
        %1334 = vmatprep.subr.mxu0 0.0
        %1335 = vmatpush1.msra.mxu0 0.0
        %1336 = vmatprep.subr.mxu0 0.0
        %1337 = vmatpush1.msra.mxu0 0.0
        %1338 = vmatprep.subr.mxu0 0.0
        %1339 = vmatpush1.msra.mxu0 0.0
        %1340 = vmatprep.subr.mxu0 0.0
        %1341 = vmatpush1.msra.mxu0 0.0
        %1342 = vmatprep.subr.mxu0 0.0
        %1343 = vmatpush1.msra.mxu0 0.0
        %1344 = vmatprep.subr.mxu0 0.0
        %1345 = vmatpush1.msra.mxu0 0.0
        %1346 = vmatprep.subr.mxu0 0.0
        %1347 = vmatpush1.msra.mxu0 0.0
        %1348 = vmatprep.subr.mxu0 0.0
        %1349 = vmatpush1.msra.mxu0 0.0
        %1350 = vmatprep.subr.mxu0 0.0
        %1351 = vmatpush1.msra.mxu0 0.0
        %1352 = vmatprep.subr.mxu0 0.0
        %1353 = vmatpush1.msra.mxu0 %v601
        %1354 = vmatprep.subr.mxu0 0.0
        %1355 = vmatpush1.msra.mxu0 %v600
        %1356 = vmatprep.subr.mxu0 0.0
        %1357 = vmatpush1.msra.mxu0 %v599
        %1358 = vmatprep.subr.mxu0 0.0
        %1359 = vmatpush1.msra.mxu0 %v598
        %1360 = vmatprep.subr.mxu0 0.0
        %1361 = vmatpush2.msra.mxu0 0.0
        %1362 = vmatprep.subr.mxu0 0.0
        %1363 = vmatpush2.msra.mxu0 0.0
        %1364 = vmatprep.subr.mxu0 0.0
        %1365 = vmatpush2.msra.mxu0 0.0
        %1366 = vmatprep.subr.mxu0 0.0
        %1367 = vmatpush2.msra.mxu0 0.0
        %1368 = vmatprep.subr.mxu0 0.0
        %1369 = vmatpush2.msra.mxu0 0.0
        %1370 = vmatprep.subr.mxu0 0.0
        %1371 = vmatpush2.msra.mxu0 0.0
        %1372 = vmatprep.subr.mxu0 0.0
        %1373 = vmatpush2.msra.mxu0 0.0
        %1374 = vmatprep.subr.mxu0 0.0
        %1375 = vmatpush2.msra.mxu0 0.0
        %1376 = vmatprep.subr.mxu0 0.0
        %1377 = vmatpush2.msra.mxu0 0.0
        %1378 = vmatprep.subr.mxu0 0.0
        %1379 = vmatpush2.msra.mxu0 0.0
        %1380 = vmatprep.subr.mxu0 0.0
        %1381 = vmatpush2.msra.mxu0 0.0
        %1382 = vmatprep.subr.mxu0 0.0
        %1383 = vmatpush2.msra.mxu0 0.0
        %1384 = vmatprep.subr.mxu0 0.0
        %1385 = vmatpush2.msra.mxu0 0.0
        %1386 = vmatprep.subr.mxu0 0.0
        %1387 = vmatpush2.msra.mxu0 0.0
        %1388 = vmatprep.subr.mxu0 0.0
        %1389 = vmatpush2.msra.mxu0 0.0
        %1390 = vmatprep.subr.mxu0 0.0
        %1391 = vmatpush2.msra.mxu0 0.0
        %1392 = vmatprep.mubr.f32.mxu0 0.0
        %1393 = vmatmul.mubr.f32.gmra.mxu0 %v696
        %v1394 = vpop.f32.mrf.mxu0
        %v1395 = vadd.f32 %v673, %v1394
        %v1396 = vpop.f32.mrf.mxu0
        %1397 = vdwg.mxu0
        %1398 = vmatprep.subr.mxu0 0.0
        %1399 = vmatpush1.msra.mxu0 0.0
        %1400 = vmatprep.subr.mxu0 0.0
        %1401 = vmatpush1.msra.mxu0 0.0
        %1402 = vmatprep.subr.mxu0 0.0
        %1403 = vmatpush1.msra.mxu0 0.0
        %1404 = vmatprep.subr.mxu0 0.0
        %1405 = vmatpush1.msra.mxu0 0.0
        %1406 = vmatprep.subr.mxu0 0.0
        %1407 = vmatpush1.msra.mxu0 0.0
        %1408 = vmatprep.subr.mxu0 0.0
        %1409 = vmatpush1.msra.mxu0 0.0
        %1410 = vmatprep.subr.mxu0 0.0
        %1411 = vmatpush1.msra.mxu0 0.0
        %1412 = vmatprep.subr.mxu0 0.0
        %1413 = vmatpush1.msra.mxu0 0.0
        %1414 = vmatprep.subr.mxu0 0.0
        %1415 = vmatpush1.msra.mxu0 0.0
        %1416 = vmatprep.subr.mxu0 0.0
        %1417 = vmatpush1.msra.mxu0 0.0
        %1418 = vmatprep.subr.mxu0 0.0
        %1419 = vmatpush1.msra.mxu0 0.0
        %1420 = vmatprep.subr.mxu0 0.0
        %1421 = vmatpush1.msra.mxu0 0.0
        %1422 = vmatprep.subr.mxu0 0.0
        %1423 = vmatpush1.msra.mxu0 %v605
        %1424 = vmatprep.subr.mxu0 0.0
        %1425 = vmatpush1.msra.mxu0 %v604
        %1426 = vmatprep.subr.mxu0 0.0
        %1427 = vmatpush1.msra.mxu0 %v603
        %1428 = vmatprep.subr.mxu0 0.0
        %1429 = vmatpush1.msra.mxu0 %v602
        %1430 = vmatprep.subr.mxu0 0.0
        %1431 = vmatpush2.msra.mxu0 0.0
        %1432 = vmatprep.subr.mxu0 0.0
        %1433 = vmatpush2.msra.mxu0 0.0
        %1434 = vmatprep.subr.mxu0 0.0
        %1435 = vmatpush2.msra.mxu0 0.0
        %1436 = vmatprep.subr.mxu0 0.0
        %1437 = vmatpush2.msra.mxu0 0.0
        %1438 = vmatprep.subr.mxu0 0.0
        %1439 = vmatpush2.msra.mxu0 0.0
        %1440 = vmatprep.subr.mxu0 0.0
        %1441 = vmatpush2.msra.mxu0 0.0
        %1442 = vmatprep.subr.mxu0 0.0
        %1443 = vmatpush2.msra.mxu0 0.0
        %1444 = vmatprep.subr.mxu0 0.0
        %1445 = vmatpush2.msra.mxu0 0.0
        %1446 = vmatprep.subr.mxu0 0.0
        %1447 = vmatpush2.msra.mxu0 0.0
        %1448 = vmatprep.subr.mxu0 0.0
        %1449 = vmatpush2.msra.mxu0 0.0
        %1450 = vmatprep.subr.mxu0 0.0
        %1451 = vmatpush2.msra.mxu0 0.0
        %1452 = vmatprep.subr.mxu0 0.0
        %1453 = vmatpush2.msra.mxu0 0.0
        %1454 = vmatprep.subr.mxu0 0.0
        %1455 = vmatpush2.msra.mxu0 0.0
        %1456 = vmatprep.subr.mxu0 0.0
        %1457 = vmatpush2.msra.mxu0 0.0
        %1458 = vmatprep.subr.mxu0 0.0
        %1459 = vmatpush2.msra.mxu0 0.0
        %1460 = vmatprep.subr.mxu0 0.0
        %1461 = vmatpush2.msra.mxu0 0.0
        %1462 = vmatprep.mubr.f32.mxu0 0.0
        %1463 = vmatmul.mubr.f32.gmra.mxu0 %v696
        %v1464 = vpop.f32.mrf.mxu0
        %v1465 = vadd.f32 %v677, %v1464
        %v1466 = vpop.f32.mrf.mxu0
        %1467 = vdwg.mxu0
        %1468 = vmatprep.subr.mxu0 0.0
        %1469 = vmatpush1.msra.mxu0 0.0
        %1470 = vmatprep.subr.mxu0 0.0
        %1471 = vmatpush1.msra.mxu0 0.0
        %1472 = vmatprep.subr.mxu0 0.0
        %1473 = vmatpush1.msra.mxu0 0.0
        %1474 = vmatprep.subr.mxu0 0.0
        %1475 = vmatpush1.msra.mxu0 0.0
        %1476 = vmatprep.subr.mxu0 0.0
        %1477 = vmatpush1.msra.mxu0 0.0
        %1478 = vmatprep.subr.mxu0 0.0
        %1479 = vmatpush1.msra.mxu0 0.0
        %1480 = vmatprep.subr.mxu0 0.0
        %1481 = vmatpush1.msra.mxu0 0.0
        %1482 = vmatprep.subr.mxu0 0.0
        %1483 = vmatpush1.msra.mxu0 0.0
        %1484 = vmatprep.subr.mxu0 0.0
        %1485 = vmatpush1.msra.mxu0 0.0
        %1486 = vmatprep.subr.mxu0 0.0
        %1487 = vmatpush1.msra.mxu0 0.0
        %1488 = vmatprep.subr.mxu0 0.0
        %1489 = vmatpush1.msra.mxu0 0.0
        %1490 = vmatprep.subr.mxu0 0.0
        %1491 = vmatpush1.msra.mxu0 0.0
        %1492 = vmatprep.subr.mxu0 0.0
        %1493 = vmatpush1.msra.mxu0 %v609
        %1494 = vmatprep.subr.mxu0 0.0
        %1495 = vmatpush1.msra.mxu0 %v608
        %1496 = vmatprep.subr.mxu0 0.0
        %1497 = vmatpush1.msra.mxu0 %v607
        %1498 = vmatprep.subr.mxu0 0.0
        %1499 = vmatpush1.msra.mxu0 %v606
        %1500 = vmatprep.subr.mxu0 0.0
        %1501 = vmatpush2.msra.mxu0 0.0
        %1502 = vmatprep.subr.mxu0 0.0
        %1503 = vmatpush2.msra.mxu0 0.0
        %1504 = vmatprep.subr.mxu0 0.0
        %1505 = vmatpush2.msra.mxu0 0.0
        %1506 = vmatprep.subr.mxu0 0.0
        %1507 = vmatpush2.msra.mxu0 0.0
        %1508 = vmatprep.subr.mxu0 0.0
        %1509 = vmatpush2.msra.mxu0 0.0
        %1510 = vmatprep.subr.mxu0 0.0
        %1511 = vmatpush2.msra.mxu0 0.0
        %1512 = vmatprep.subr.mxu0 0.0
        %1513 = vmatpush2.msra.mxu0 0.0
        %1514 = vmatprep.subr.mxu0 0.0
        %1515 = vmatpush2.msra.mxu0 0.0
        %1516 = vmatprep.subr.mxu0 0.0
        %1517 = vmatpush2.msra.mxu0 0.0
        %1518 = vmatprep.subr.mxu0 0.0
        %1519 = vmatpush2.msra.mxu0 0.0
        %1520 = vmatprep.subr.mxu0 0.0
        %1521 = vmatpush2.msra.mxu0 0.0
        %1522 = vmatprep.subr.mxu0 0.0
        %1523 = vmatpush2.msra.mxu0 0.0
        %1524 = vmatprep.subr.mxu0 0.0
        %1525 = vmatpush2.msra.mxu0 0.0
        %1526 = vmatprep.subr.mxu0 0.0
        %1527 = vmatpush2.msra.mxu0 0.0
        %1528 = vmatprep.subr.mxu0 0.0
        %1529 = vmatpush2.msra.mxu0 0.0
        %1530 = vmatprep.subr.mxu0 0.0
        %1531 = vmatpush2.msra.mxu0 0.0
        %1532 = vmatprep.mubr.f32.mxu0 0.0
        %1533 = vmatmul.mubr.f32.gmra.mxu0 %v696
        %v1534 = vpop.f32.mrf.mxu0
        %v1535 = vadd.f32 %v681, %v1534
        %v1536 = vpop.f32.mrf.mxu0
        %1537 = vdwg.mxu0
        %v1538 = vld [vmem:[%s6] sm:$0xff]
        %v1539 = vld [vmem:[%s6 + $0x8] sm:$0xff]
        %v1540 = vld [vmem:[%s6 + $0x10] sm:$0xff]
        %v1541 = vld [vmem:[%s6 + $0x18] sm:$0xff]
        %vm1542 = vcmask 64512
        %v1544 = vsel %vm1542, %v765, 0
        %v1547 = vsel %vm1542, %v1045, 0
        %1549 = vmatprep.subr.mxu0 0.0
        %1550 = vmatpush1.xpose.msra.mxu0 0.0
        %1551 = vmatprep.subr.mxu0 0.0
        %1552 = vmatpush1.xpose.msra.mxu0 0.0
        %1553 = vmatprep.subr.mxu0 0.0
        %1554 = vmatpush1.xpose.msra.mxu0 0.0
        %1555 = vmatprep.subr.mxu0 0.0
        %1556 = vmatpush1.xpose.msra.mxu0 0.0
        %1557 = vmatprep.subr.mxu0 0.0
        %1558 = vmatpush1.xpose.msra.mxu0 0.0
        %1559 = vmatprep.subr.mxu0 0.0
        %1560 = vmatpush1.xpose.msra.mxu0 0.0
        %1561 = vmatprep.subr.mxu0 0.0
        %1562 = vmatpush1.xpose.msra.mxu0 0.0
        %1563 = vmatprep.subr.mxu0 0.0
        %1564 = vmatpush1.xpose.msra.mxu0 0.0
        %1565 = vmatprep.subr.mxu0 0.0
        %1566 = vmatpush1.xpose.msra.mxu0 0.0
        %1567 = vmatprep.subr.mxu0 0.0
        %1568 = vmatpush1.xpose.msra.mxu0 0.0
        %1569 = vmatprep.subr.mxu0 0.0
        %1570 = vmatpush1.xpose.msra.mxu0 0.0
        %1571 = vmatprep.subr.mxu0 0.0
        %1572 = vmatpush1.xpose.msra.mxu0 0.0
        %1573 = vmatprep.subr.mxu0 0.0
        %1574 = vmatpush1.xpose.msra.mxu0 0.0
        %1575 = vmatprep.subr.mxu0 0.0
        %1576 = vmatpush1.xpose.msra.mxu0 0.0
        %1577 = vmatprep.subr.mxu0 0.0
        %1578 = vmatpush1.xpose.msra.mxu0 0.0
        %1579 = vmatprep.subr.mxu0 0.0
        %1580 = vmatpush1.xpose.msra.mxu0 %v1547
        %1581 = vmatprep.subr.mxu0 0.0
        %1582 = vmatpush2.xpose.msra.mxu0 0.0
        %1583 = vmatprep.subr.mxu0 0.0
        %1584 = vmatpush2.xpose.msra.mxu0 0.0
        %1585 = vmatprep.subr.mxu0 0.0
        %1586 = vmatpush2.xpose.msra.mxu0 0.0
        %1587 = vmatprep.subr.mxu0 0.0
        %1588 = vmatpush2.xpose.msra.mxu0 0.0
        %1589 = vmatprep.subr.mxu0 0.0
        %1590 = vmatpush2.xpose.msra.mxu0 0.0
        %1591 = vmatprep.subr.mxu0 0.0
        %1592 = vmatpush2.xpose.msra.mxu0 0.0
        %1593 = vmatprep.subr.mxu0 0.0
        %1594 = vmatpush2.xpose.msra.mxu0 0.0
        %1595 = vmatprep.subr.mxu0 0.0
        %1596 = vmatpush2.xpose.msra.mxu0 0.0
        %1597 = vmatprep.subr.mxu0 0.0
        %1598 = vmatpush2.xpose.msra.mxu0 0.0
        %1599 = vmatprep.subr.mxu0 0.0
        %1600 = vmatpush2.xpose.msra.mxu0 0.0
        %1601 = vmatprep.subr.mxu0 0.0
        %1602 = vmatpush2.xpose.msra.mxu0 0.0
        %1603 = vmatprep.subr.mxu0 0.0
        %1604 = vmatpush2.xpose.msra.mxu0 0.0
        %1605 = vmatprep.subr.mxu0 0.0
        %1606 = vmatpush2.xpose.msra.mxu0 0.0
        %1607 = vmatprep.subr.mxu0 0.0
        %1608 = vmatpush2.xpose.msra.mxu0 0.0
        %1609 = vmatprep.subr.mxu0 0.0
        %1610 = vmatpush2.xpose.msra.mxu0 0.0
        %1611 = vmatprep.subr.mxu0 0.0
        %1612 = vmatpush2.xpose.msra.mxu0 0.0
        %1613 = vmatprep.mubr.f32.mxu0 0.0
        %1614 = vmatmul.mubr.f32.gmra.mxu0 %v1544
        %v1615 = vpop.f32.mrf.mxu0
        %v1616 = vadd.f32 0.0, %v1615
        %v1617 = vpop.f32.mrf.mxu0
        %1618 = vdwg.mxu0
        %v1620 = vsel %vm1542, %v835, 0
        %v1623 = vsel %vm1542, %v1115, 0
        %1625 = vmatprep.subr.mxu0 0.0
        %1626 = vmatpush1.xpose.msra.mxu0 0.0
        %1627 = vmatprep.subr.mxu0 0.0
        %1628 = vmatpush1.xpose.msra.mxu0 0.0
        %1629 = vmatprep.subr.mxu0 0.0
        %1630 = vmatpush1.xpose.msra.mxu0 0.0
        %1631 = vmatprep.subr.mxu0 0.0
        %1632 = vmatpush1.xpose.msra.mxu0 0.0
        %1633 = vmatprep.subr.mxu0 0.0
        %1634 = vmatpush1.xpose.msra.mxu0 0.0
        %1635 = vmatprep.subr.mxu0 0.0
        %1636 = vmatpush1.xpose.msra.mxu0 0.0
        %1637 = vmatprep.subr.mxu0 0.0
        %1638 = vmatpush1.xpose.msra.mxu0 0.0
        %1639 = vmatprep.subr.mxu0 0.0
        %1640 = vmatpush1.xpose.msra.mxu0 0.0
        %1641 = vmatprep.subr.mxu0 0.0
        %1642 = vmatpush1.xpose.msra.mxu0 0.0
        %1643 = vmatprep.subr.mxu0 0.0
        %1644 = vmatpush1.xpose.msra.mxu0 0.0
        %1645 = vmatprep.subr.mxu0 0.0
        %1646 = vmatpush1.xpose.msra.mxu0 0.0
        %1647 = vmatprep.subr.mxu0 0.0
        %1648 = vmatpush1.xpose.msra.mxu0 0.0
        %1649 = vmatprep.subr.mxu0 0.0
        %1650 = vmatpush1.xpose.msra.mxu0 0.0
        %1651 = vmatprep.subr.mxu0 0.0
        %1652 = vmatpush1.xpose.msra.mxu0 0.0
        %1653 = vmatprep.subr.mxu0 0.0
        %1654 = vmatpush1.xpose.msra.mxu0 0.0
        %1655 = vmatprep.subr.mxu0 0.0
        %1656 = vmatpush1.xpose.msra.mxu0 %v1623
        %1657 = vmatprep.subr.mxu0 0.0
        %1658 = vmatpush2.xpose.msra.mxu0 0.0
        %1659 = vmatprep.subr.mxu0 0.0
        %1660 = vmatpush2.xpose.msra.mxu0 0.0
        %1661 = vmatprep.subr.mxu0 0.0
        %1662 = vmatpush2.xpose.msra.mxu0 0.0
        %1663 = vmatprep.subr.mxu0 0.0
        %1664 = vmatpush2.xpose.msra.mxu0 0.0
        %1665 = vmatprep.subr.mxu0 0.0
        %1666 = vmatpush2.xpose.msra.mxu0 0.0
        %1667 = vmatprep.subr.mxu0 0.0
        %1668 = vmatpush2.xpose.msra.mxu0 0.0
        %1669 = vmatprep.subr.mxu0 0.0
        %1670 = vmatpush2.xpose.msra.mxu0 0.0
        %1671 = vmatprep.subr.mxu0 0.0
        %1672 = vmatpush2.xpose.msra.mxu0 0.0
        %1673 = vmatprep.subr.mxu0 0.0
        %1674 = vmatpush2.xpose.msra.mxu0 0.0
        %1675 = vmatprep.subr.mxu0 0.0
        %1676 = vmatpush2.xpose.msra.mxu0 0.0
        %1677 = vmatprep.subr.mxu0 0.0
        %1678 = vmatpush2.xpose.msra.mxu0 0.0
        %1679 = vmatprep.subr.mxu0 0.0
        %1680 = vmatpush2.xpose.msra.mxu0 0.0
        %1681 = vmatprep.subr.mxu0 0.0
        %1682 = vmatpush2.xpose.msra.mxu0 0.0
        %1683 = vmatprep.subr.mxu0 0.0
        %1684 = vmatpush2.xpose.msra.mxu0 0.0
        %1685 = vmatprep.subr.mxu0 0.0
        %1686 = vmatpush2.xpose.msra.mxu0 0.0
        %1687 = vmatprep.subr.mxu0 0.0
        %1688 = vmatpush2.xpose.msra.mxu0 0.0
        %1689 = vmatprep.mubr.f32.mxu0 0.0
        %1690 = vmatmul.mubr.f32.gmra.mxu0 %v1620
        %v1691 = vpop.f32.mrf.mxu0
        %v1692 = vadd.f32 0.0, %v1691
        %v1693 = vpop.f32.mrf.mxu0
        %1694 = vdwg.mxu0
        %v1696 = vsel %vm1542, %v905, 0
        %v1699 = vsel %vm1542, %v1185, 0
        %1701 = vmatprep.subr.mxu0 0.0
        %1702 = vmatpush1.xpose.msra.mxu0 0.0
        %1703 = vmatprep.subr.mxu0 0.0
        %1704 = vmatpush1.xpose.msra.mxu0 0.0
        %1705 = vmatprep.subr.mxu0 0.0
        %1706 = vmatpush1.xpose.msra.mxu0 0.0
        %1707 = vmatprep.subr.mxu0 0.0
        %1708 = vmatpush1.xpose.msra.mxu0 0.0
        %1709 = vmatprep.subr.mxu0 0.0
        %1710 = vmatpush1.xpose.msra.mxu0 0.0
        %1711 = vmatprep.subr.mxu0 0.0
        %1712 = vmatpush1.xpose.msra.mxu0 0.0
        %1713 = vmatprep.subr.mxu0 0.0
        %1714 = vmatpush1.xpose.msra.mxu0 0.0
        %1715 = vmatprep.subr.mxu0 0.0
        %1716 = vmatpush1.xpose.msra.mxu0 0.0
        %1717 = vmatprep.subr.mxu0 0.0
        %1718 = vmatpush1.xpose.msra.mxu0 0.0
        %1719 = vmatprep.subr.mxu0 0.0
        %1720 = vmatpush1.xpose.msra.mxu0 0.0
        %1721 = vmatprep.subr.mxu0 0.0
        %1722 = vmatpush1.xpose.msra.mxu0 0.0
        %1723 = vmatprep.subr.mxu0 0.0
        %1724 = vmatpush1.xpose.msra.mxu0 0.0
        %1725 = vmatprep.subr.mxu0 0.0
        %1726 = vmatpush1.xpose.msra.mxu0 0.0
        %1727 = vmatprep.subr.mxu0 0.0
        %1728 = vmatpush1.xpose.msra.mxu0 0.0
        %1729 = vmatprep.subr.mxu0 0.0
        %1730 = vmatpush1.xpose.msra.mxu0 0.0
        %1731 = vmatprep.subr.mxu0 0.0
        %1732 = vmatpush1.xpose.msra.mxu0 %v1699
        %1733 = vmatprep.subr.mxu0 0.0
        %1734 = vmatpush2.xpose.msra.mxu0 0.0
        %1735 = vmatprep.subr.mxu0 0.0
        %1736 = vmatpush2.xpose.msra.mxu0 0.0
        %1737 = vmatprep.subr.mxu0 0.0
        %1738 = vmatpush2.xpose.msra.mxu0 0.0
        %1739 = vmatprep.subr.mxu0 0.0
        %1740 = vmatpush2.xpose.msra.mxu0 0.0
        %1741 = vmatprep.subr.mxu0 0.0
        %1742 = vmatpush2.xpose.msra.mxu0 0.0
        %1743 = vmatprep.subr.mxu0 0.0
        %1744 = vmatpush2.xpose.msra.mxu0 0.0
        %1745 = vmatprep.subr.mxu0 0.0
        %1746 = vmatpush2.xpose.msra.mxu0 0.0
        %1747 = vmatprep.subr.mxu0 0.0
        %1748 = vmatpush2.xpose.msra.mxu0 0.0
        %1749 = vmatprep.subr.mxu0 0.0
        %1750 = vmatpush2.xpose.msra.mxu0 0.0
        %1751 = vmatprep.subr.mxu0 0.0
        %1752 = vmatpush2.xpose.msra.mxu0 0.0
        %1753 = vmatprep.subr.mxu0 0.0
        %1754 = vmatpush2.xpose.msra.mxu0 0.0
        %1755 = vmatprep.subr.mxu0 0.0
        %1756 = vmatpush2.xpose.msra.mxu0 0.0
        %1757 = vmatprep.subr.mxu0 0.0
        %1758 = vmatpush2.xpose.msra.mxu0 0.0
        %1759 = vmatprep.subr.mxu0 0.0
        %1760 = vmatpush2.xpose.msra.mxu0 0.0
        %1761 = vmatprep.subr.mxu0 0.0
        %1762 = vmatpush2.xpose.msra.mxu0 0.0
        %1763 = vmatprep.subr.mxu0 0.0
        %1764 = vmatpush2.xpose.msra.mxu0 0.0
        %1765 = vmatprep.mubr.f32.mxu0 0.0
        %1766 = vmatmul.mubr.f32.gmra.mxu0 %v1696
        %v1767 = vpop.f32.mrf.mxu0
        %v1768 = vadd.f32 0.0, %v1767
        %v1769 = vpop.f32.mrf.mxu0
        %1770 = vdwg.mxu0
        %v1772 = vsel %vm1542, %v975, 0
        %v1775 = vsel %vm1542, %v1255, 0
        %1777 = vmatprep.subr.mxu0 0.0
        %1778 = vmatpush1.xpose.msra.mxu0 0.0
        %1779 = vmatprep.subr.mxu0 0.0
        %1780 = vmatpush1.xpose.msra.mxu0 0.0
        %1781 = vmatprep.subr.mxu0 0.0
        %1782 = vmatpush1.xpose.msra.mxu0 0.0
        %1783 = vmatprep.subr.mxu0 0.0
        %1784 = vmatpush1.xpose.msra.mxu0 0.0
        %1785 = vmatprep.subr.mxu0 0.0
        %1786 = vmatpush1.xpose.msra.mxu0 0.0
        %1787 = vmatprep.subr.mxu0 0.0
        %1788 = vmatpush1.xpose.msra.mxu0 0.0
        %1789 = vmatprep.subr.mxu0 0.0
        %1790 = vmatpush1.xpose.msra.mxu0 0.0
        %1791 = vmatprep.subr.mxu0 0.0
        %1792 = vmatpush1.xpose.msra.mxu0 0.0
        %1793 = vmatprep.subr.mxu0 0.0
        %1794 = vmatpush1.xpose.msra.mxu0 0.0
        %1795 = vmatprep.subr.mxu0 0.0
        %1796 = vmatpush1.xpose.msra.mxu0 0.0
        %1797 = vmatprep.subr.mxu0 0.0
        %1798 = vmatpush1.xpose.msra.mxu0 0.0
        %1799 = vmatprep.subr.mxu0 0.0
        %1800 = vmatpush1.xpose.msra.mxu0 0.0
        %1801 = vmatprep.subr.mxu0 0.0
        %1802 = vmatpush1.xpose.msra.mxu0 0.0
        %1803 = vmatprep.subr.mxu0 0.0
        %1804 = vmatpush1.xpose.msra.mxu0 0.0
        %1805 = vmatprep.subr.mxu0 0.0
        %1806 = vmatpush1.xpose.msra.mxu0 0.0
        %1807 = vmatprep.subr.mxu0 0.0
        %1808 = vmatpush1.xpose.msra.mxu0 %v1775
        %1809 = vmatprep.subr.mxu0 0.0
        %1810 = vmatpush2.xpose.msra.mxu0 0.0
        %1811 = vmatprep.subr.mxu0 0.0
        %1812 = vmatpush2.xpose.msra.mxu0 0.0
        %1813 = vmatprep.subr.mxu0 0.0
        %1814 = vmatpush2.xpose.msra.mxu0 0.0
        %1815 = vmatprep.subr.mxu0 0.0
        %1816 = vmatpush2.xpose.msra.mxu0 0.0
        %1817 = vmatprep.subr.mxu0 0.0
        %1818 = vmatpush2.xpose.msra.mxu0 0.0
        %1819 = vmatprep.subr.mxu0 0.0
        %1820 = vmatpush2.xpose.msra.mxu0 0.0
        %1821 = vmatprep.subr.mxu0 0.0
        %1822 = vmatpush2.xpose.msra.mxu0 0.0
        %1823 = vmatprep.subr.mxu0 0.0
        %1824 = vmatpush2.xpose.msra.mxu0 0.0
        %1825 = vmatprep.subr.mxu0 0.0
        %1826 = vmatpush2.xpose.msra.mxu0 0.0
        %1827 = vmatprep.subr.mxu0 0.0
        %1828 = vmatpush2.xpose.msra.mxu0 0.0
        %1829 = vmatprep.subr.mxu0 0.0
        %1830 = vmatpush2.xpose.msra.mxu0 0.0
        %1831 = vmatprep.subr.mxu0 0.0
        %1832 = vmatpush2.xpose.msra.mxu0 0.0
        %1833 = vmatprep.subr.mxu0 0.0
        %1834 = vmatpush2.xpose.msra.mxu0 0.0
        %1835 = vmatprep.subr.mxu0 0.0
        %1836 = vmatpush2.xpose.msra.mxu0 0.0
        %1837 = vmatprep.subr.mxu0 0.0
        %1838 = vmatpush2.xpose.msra.mxu0 0.0
        %1839 = vmatprep.subr.mxu0 0.0
        %1840 = vmatpush2.xpose.msra.mxu0 0.0
        %1841 = vmatprep.mubr.f32.mxu0 0.0
        %1842 = vmatmul.mubr.f32.gmra.mxu0 %v1772
        %v1843 = vpop.f32.mrf.mxu0
        %v1844 = vadd.f32 0.0, %v1843
        %v1845 = vpop.f32.mrf.mxu0
        %1846 = vdwg.mxu0
        %v1847 = vmul.f32 %v1616, 0.35355338
        %v1848 = vmul.f32 %v1692, 0.35355338
        %v1849 = vmul.f32 %v1768, 0.35355338
        %v1850 = vmul.f32 %v1844, 0.35355338
        %v1851 = vadd.f32 %v1847, %v550
        %v1852 = vadd.f32 %v1848, %v550
        %v1853 = vadd.f32 %v1849, %v550
        %v1854 = vadd.f32 %v1850, %v550
        %v1855 = vsel %vm1542, %v1851, -inf
        %1856 = vmax.xlane.f32.xlu0 %v1855
        %v1857 = vpop.xlane.xlu0 %1856
        %v1858 = vsel %vm1542, %v1852, -inf
        %1859 = vmax.xlane.f32.xlu0 %v1858
        %v1860 = vpop.xlane.xlu0 %1859
        %v1861 = vsel %vm1542, %v1853, -inf
        %1862 = vmax.xlane.f32.xlu0 %v1861
        %v1863 = vpop.xlane.xlu0 %1862
        %v1864 = vsel %vm1542, %v1854, -inf
        %1865 = vmax.xlane.f32.xlu0 %v1864
        %v1866 = vpop.xlane.xlu0 %1865
        %v1867 = vsub.f32 %v1851, %v1857
        %v1868 = vsub.f32 %v1852, %v1860
        %v1869 = vsub.f32 %v1853, %v1863
        %v1870 = vsub.f32 %v1854, %v1866
        %v1871 = vmul.f32 %v1867, 1.442695
        %v1872 = vpow.pop %v1871
        %v1873 = vmul.f32 %v1868, 1.442695
        %v1874 = vpow.pop %v1873
        %v1875 = vmul.f32 %v1869, 1.442695
        %v1876 = vpow.pop %v1875
        %v1877 = vmul.f32 %v1870, 1.442695
        %v1878 = vpow.pop %v1877
        %v1879 = vsel %vm1542, %v1872, 0.0
        %1880 = vadd.xlane.f32.xlu0 %v1879
        %v1881 = vpop.xlane.xlu0 %1880
        %v1882 = vsel %vm1542, %v1874, 0.0
        %1883 = vadd.xlane.f32.xlu0 %v1882
        %v1884 = vpop.xlane.xlu0 %1883
        %v1885 = vsel %vm1542, %v1876, 0.0
        %1886 = vadd.xlane.f32.xlu0 %v1885
        %v1887 = vpop.xlane.xlu0 %1886
        %v1888 = vsel %vm1542, %v1878, 0.0
        %1889 = vadd.xlane.f32.xlu0 %v1888
        %v1890 = vpop.xlane.xlu0 %1889
        %v1891 = vrcp.pop %v1881
        %v1892 = vrcp.pop %v1884
        %v1893 = vrcp.pop %v1887
        %v1894 = vrcp.pop %v1890
        %v1895 = vmul.f32 %v1872, %v1891
        %v1896 = vmul.f32 %v1874, %v1892
        %v1897 = vmul.f32 %v1876, %v1893
        %v1898 = vmul.f32 %v1878, %v1894
        %v1900 = vsel %vm1542, %v1895, 0
        %1902 = vmatprep.subr.mxu0 0.0
        %1903 = vmatpush1.msra.mxu0 0.0
        %1904 = vmatprep.subr.mxu0 0.0
        %1905 = vmatpush1.msra.mxu0 0.0
        %1906 = vmatprep.subr.mxu0 0.0
        %1907 = vmatpush1.msra.mxu0 0.0
        %1908 = vmatprep.subr.mxu0 0.0
        %1909 = vmatpush1.msra.mxu0 0.0
        %1910 = vmatprep.subr.mxu0 0.0
        %1911 = vmatpush1.msra.mxu0 0.0
        %1912 = vmatprep.subr.mxu0 0.0
        %1913 = vmatpush1.msra.mxu0 0.0
        %1914 = vmatprep.subr.mxu0 0.0
        %1915 = vmatpush1.msra.mxu0 0.0
        %1916 = vmatprep.subr.mxu0 0.0
        %1917 = vmatpush1.msra.mxu0 0.0
        %1918 = vmatprep.subr.mxu0 0.0
        %1919 = vmatpush1.msra.mxu0 0.0
        %1920 = vmatprep.subr.mxu0 0.0
        %1921 = vmatpush1.msra.mxu0 0.0
        %1922 = vmatprep.subr.mxu0 0.0
        %1923 = vmatpush1.msra.mxu0 0.0
        %1924 = vmatprep.subr.mxu0 0.0
        %1925 = vmatpush1.msra.mxu0 0.0
        %1926 = vmatprep.subr.mxu0 0.0
        %1927 = vmatpush1.msra.mxu0 0.0
        %1928 = vmatprep.subr.mxu0 0.0
        %1929 = vmatpush1.msra.mxu0 0.0
        %1930 = vmatprep.subr.mxu0 0.0
        %1931 = vmatpush1.msra.mxu0 0.0
        %1932 = vmatprep.subr.mxu0 0.0
        %1933 = vmatpush1.msra.mxu0 %v1325
        %1934 = vmatprep.subr.mxu0 0.0
        %1935 = vmatpush2.msra.mxu0 0.0
        %1936 = vmatprep.subr.mxu0 0.0
        %1937 = vmatpush2.msra.mxu0 0.0
        %1938 = vmatprep.subr.mxu0 0.0
        %1939 = vmatpush2.msra.mxu0 0.0
        %1940 = vmatprep.subr.mxu0 0.0
        %1941 = vmatpush2.msra.mxu0 0.0
        %1942 = vmatprep.subr.mxu0 0.0
        %1943 = vmatpush2.msra.mxu0 0.0
        %1944 = vmatprep.subr.mxu0 0.0
        %1945 = vmatpush2.msra.mxu0 0.0
        %1946 = vmatprep.subr.mxu0 0.0
        %1947 = vmatpush2.msra.mxu0 0.0
        %1948 = vmatprep.subr.mxu0 0.0
        %1949 = vmatpush2.msra.mxu0 0.0
        %1950 = vmatprep.subr.mxu0 0.0
        %1951 = vmatpush2.msra.mxu0 0.0
        %1952 = vmatprep.subr.mxu0 0.0
        %1953 = vmatpush2.msra.mxu0 0.0
        %1954 = vmatprep.subr.mxu0 0.0
        %1955 = vmatpush2.msra.mxu0 0.0
        %1956 = vmatprep.subr.mxu0 0.0
        %1957 = vmatpush2.msra.mxu0 0.0
        %1958 = vmatprep.subr.mxu0 0.0
        %1959 = vmatpush2.msra.mxu0 0.0
        %1960 = vmatprep.subr.mxu0 0.0
        %1961 = vmatpush2.msra.mxu0 0.0
        %1962 = vmatprep.subr.mxu0 0.0
        %1963 = vmatpush2.msra.mxu0 0.0
        %1964 = vmatprep.subr.mxu0 0.0
        %1965 = vmatpush2.msra.mxu0 0.0
        %1966 = vmatprep.mubr.f32.mxu0 0.0
        %1967 = vmatmul.mubr.f32.gmra.mxu0 %v1900
        %v1968 = vpop.f32.mrf.mxu0
        %v1969 = vadd.f32 0.0, %v1968
        %v1970 = vpop.f32.mrf.mxu0
        %1971 = vdwg.mxu0
        %v1973 = vsel %vm1542, %v1896, 0
        %1975 = vmatprep.subr.mxu0 0.0
        %1976 = vmatpush1.msra.mxu0 0.0
        %1977 = vmatprep.subr.mxu0 0.0
        %1978 = vmatpush1.msra.mxu0 0.0
        %1979 = vmatprep.subr.mxu0 0.0
        %1980 = vmatpush1.msra.mxu0 0.0
        %1981 = vmatprep.subr.mxu0 0.0
        %1982 = vmatpush1.msra.mxu0 0.0
        %1983 = vmatprep.subr.mxu0 0.0
        %1984 = vmatpush1.msra.mxu0 0.0
        %1985 = vmatprep.subr.mxu0 0.0
        %1986 = vmatpush1.msra.mxu0 0.0
        %1987 = vmatprep.subr.mxu0 0.0
        %1988 = vmatpush1.msra.mxu0 0.0
        %1989 = vmatprep.subr.mxu0 0.0
        %1990 = vmatpush1.msra.mxu0 0.0
        %1991 = vmatprep.subr.mxu0 0.0
        %1992 = vmatpush1.msra.mxu0 0.0
        %1993 = vmatprep.subr.mxu0 0.0
        %1994 = vmatpush1.msra.mxu0 0.0
        %1995 = vmatprep.subr.mxu0 0.0
        %1996 = vmatpush1.msra.mxu0 0.0
        %1997 = vmatprep.subr.mxu0 0.0
        %1998 = vmatpush1.msra.mxu0 0.0
        %1999 = vmatprep.subr.mxu0 0.0
        %2000 = vmatpush1.msra.mxu0 0.0
        %2001 = vmatprep.subr.mxu0 0.0
        %2002 = vmatpush1.msra.mxu0 0.0
        %2003 = vmatprep.subr.mxu0 0.0
        %2004 = vmatpush1.msra.mxu0 0.0
        %2005 = vmatprep.subr.mxu0 0.0
        %2006 = vmatpush1.msra.mxu0 %v1395
        %2007 = vmatprep.subr.mxu0 0.0
        %2008 = vmatpush2.msra.mxu0 0.0
        %2009 = vmatprep.subr.mxu0 0.0
        %2010 = vmatpush2.msra.mxu0 0.0
        %2011 = vmatprep.subr.mxu0 0.0
        %2012 = vmatpush2.msra.mxu0 0.0
        %2013 = vmatprep.subr.mxu0 0.0
        %2014 = vmatpush2.msra.mxu0 0.0
        %2015 = vmatprep.subr.mxu0 0.0
        %2016 = vmatpush2.msra.mxu0 0.0
        %2017 = vmatprep.subr.mxu0 0.0
        %2018 = vmatpush2.msra.mxu0 0.0
        %2019 = vmatprep.subr.mxu0 0.0
        %2020 = vmatpush2.msra.mxu0 0.0
        %2021 = vmatprep.subr.mxu0 0.0
        %2022 = vmatpush2.msra.mxu0 0.0
        %2023 = vmatprep.subr.mxu0 0.0
        %2024 = vmatpush2.msra.mxu0 0.0
        %2025 = vmatprep.subr.mxu0 0.0
        %2026 = vmatpush2.msra.mxu0 0.0
        %2027 = vmatprep.subr.mxu0 0.0
        %2028 = vmatpush2.msra.mxu0 0.0
        %2029 = vmatprep.subr.mxu0 0.0
        %2030 = vmatpush2.msra.mxu0 0.0
        %2031 = vmatprep.subr.mxu0 0.0
        %2032 = vmatpush2.msra.mxu0 0.0
        %2033 = vmatprep.subr.mxu0 0.0
        %2034 = vmatpush2.msra.mxu0 0.0
        %2035 = vmatprep.subr.mxu0 0.0
        %2036 = vmatpush2.msra.mxu0 0.0
        %2037 = vmatprep.subr.mxu0 0.0
        %2038 = vmatpush2.msra.mxu0 0.0
        %2039 = vmatprep.mubr.f32.mxu0 0.0
        %2040 = vmatmul.mubr.f32.gmra.mxu0 %v1973
        %v2041 = vpop.f32.mrf.mxu0
        %v2042 = vadd.f32 0.0, %v2041
        %v2043 = vpop.f32.mrf.mxu0
        %2044 = vdwg.mxu0
        %v2046 = vsel %vm1542, %v1897, 0
        %2048 = vmatprep.subr.mxu0 0.0
        %2049 = vmatpush1.msra.mxu0 0.0
        %2050 = vmatprep.subr.mxu0 0.0
        %2051 = vmatpush1.msra.mxu0 0.0
        %2052 = vmatprep.subr.mxu0 0.0
        %2053 = vmatpush1.msra.mxu0 0.0
        %2054 = vmatprep.subr.mxu0 0.0
        %2055 = vmatpush1.msra.mxu0 0.0
        %2056 = vmatprep.subr.mxu0 0.0
        %2057 = vmatpush1.msra.mxu0 0.0
        %2058 = vmatprep.subr.mxu0 0.0
        %2059 = vmatpush1.msra.mxu0 0.0
        %2060 = vmatprep.subr.mxu0 0.0
        %2061 = vmatpush1.msra.mxu0 0.0
        %2062 = vmatprep.subr.mxu0 0.0
        %2063 = vmatpush1.msra.mxu0 0.0
        %2064 = vmatprep.subr.mxu0 0.0
        %2065 = vmatpush1.msra.mxu0 0.0
        %2066 = vmatprep.subr.mxu0 0.0
        %2067 = vmatpush1.msra.mxu0 0.0
        %2068 = vmatprep.subr.mxu0 0.0
        %2069 = vmatpush1.msra.mxu0 0.0
        %2070 = vmatprep.subr.mxu0 0.0
        %2071 = vmatpush1.msra.mxu0 0.0
        %2072 = vmatprep.subr.mxu0 0.0
        %2073 = vmatpush1.msra.mxu0 0.0
        %2074 = vmatprep.subr.mxu0 0.0
        %2075 = vmatpush1.msra.mxu0 0.0
        %2076 = vmatprep.subr.mxu0 0.0
        %2077 = vmatpush1.msra.mxu0 0.0
        %2078 = vmatprep.subr.mxu0 0.0
        %2079 = vmatpush1.msra.mxu0 %v1465
        %2080 = vmatprep.subr.mxu0 0.0
        %2081 = vmatpush2.msra.mxu0 0.0
        %2082 = vmatprep.subr.mxu0 0.0
        %2083 = vmatpush2.msra.mxu0 0.0
        %2084 = vmatprep.subr.mxu0 0.0
        %2085 = vmatpush2.msra.mxu0 0.0
        %2086 = vmatprep.subr.mxu0 0.0
        %2087 = vmatpush2.msra.mxu0 0.0
        %2088 = vmatprep.subr.mxu0 0.0
        %2089 = vmatpush2.msra.mxu0 0.0
        %2090 = vmatprep.subr.mxu0 0.0
        %2091 = vmatpush2.msra.mxu0 0.0
        %2092 = vmatprep.subr.mxu0 0.0
        %2093 = vmatpush2.msra.mxu0 0.0
        %2094 = vmatprep.subr.mxu0 0.0
        %2095 = vmatpush2.msra.mxu0 0.0
        %2096 = vmatprep.subr.mxu0 0.0
        %2097 = vmatpush2.msra.mxu0 0.0
        %2098 = vmatprep.subr.mxu0 0.0
        %2099 = vmatpush2.msra.mxu0 0.0
        %2100 = vmatprep.subr.mxu0 0.0
        %2101 = vmatpush2.msra.mxu0 0.0
        %2102 = vmatprep.subr.mxu0 0.0
        %2103 = vmatpush2.msra.mxu0 0.0
        %2104 = vmatprep.subr.mxu0 0.0
        %2105 = vmatpush2.msra.mxu0 0.0
        %2106 = vmatprep.subr.mxu0 0.0
        %2107 = vmatpush2.msra.mxu0 0.0
        %2108 = vmatprep.subr.mxu0 0.0
        %2109 = vmatpush2.msra.mxu0 0.0
        %2110 = vmatprep.subr.mxu0 0.0
        %2111 = vmatpush2.msra.mxu0 0.0
        %2112 = vmatprep.mubr.f32.mxu0 0.0
        %2113 = vmatmul.mubr.f32.gmra.mxu0 %v2046
        %v2114 = vpop.f32.mrf.mxu0
        %v2115 = vadd.f32 0.0, %v2114
        %v2116 = vpop.f32.mrf.mxu0
        %2117 = vdwg.mxu0
        %v2119 = vsel %vm1542, %v1898, 0
        %2121 = vmatprep.subr.mxu0 0.0
        %2122 = vmatpush1.msra.mxu0 0.0
        %2123 = vmatprep.subr.mxu0 0.0
        %2124 = vmatpush1.msra.mxu0 0.0
        %2125 = vmatprep.subr.mxu0 0.0
        %2126 = vmatpush1.msra.mxu0 0.0
        %2127 = vmatprep.subr.mxu0 0.0
        %2128 = vmatpush1.msra.mxu0 0.0
        %2129 = vmatprep.subr.mxu0 0.0
        %2130 = vmatpush1.msra.mxu0 0.0
        %2131 = vmatprep.subr.mxu0 0.0
        %2132 = vmatpush1.msra.mxu0 0.0
        %2133 = vmatprep.subr.mxu0 0.0
        %2134 = vmatpush1.msra.mxu0 0.0
        %2135 = vmatprep.subr.mxu0 0.0
        %2136 = vmatpush1.msra.mxu0 0.0
        %2137 = vmatprep.subr.mxu0 0.0
        %2138 = vmatpush1.msra.mxu0 0.0
        %2139 = vmatprep.subr.mxu0 0.0
        %2140 = vmatpush1.msra.mxu0 0.0
        %2141 = vmatprep.subr.mxu0 0.0
        %2142 = vmatpush1.msra.mxu0 0.0
        %2143 = vmatprep.subr.mxu0 0.0
        %2144 = vmatpush1.msra.mxu0 0.0
        %2145 = vmatprep.subr.mxu0 0.0
        %2146 = vmatpush1.msra.mxu0 0.0
        %2147 = vmatprep.subr.mxu0 0.0
        %2148 = vmatpush1.msra.mxu0 0.0
        %2149 = vmatprep.subr.mxu0 0.0
        %2150 = vmatpush1.msra.mxu0 0.0
        %2151 = vmatprep.subr.mxu0 0.0
        %2152 = vmatpush1.msra.mxu0 %v1535
        %2153 = vmatprep.subr.mxu0 0.0
        %2154 = vmatpush2.msra.mxu0 0.0
        %2155 = vmatprep.subr.mxu0 0.0
        %2156 = vmatpush2.msra.mxu0 0.0
        %2157 = vmatprep.subr.mxu0 0.0
        %2158 = vmatpush2.msra.mxu0 0.0
        %2159 = vmatprep.subr.mxu0 0.0
        %2160 = vmatpush2.msra.mxu0 0.0
        %2161 = vmatprep.subr.mxu0 0.0
        %2162 = vmatpush2.msra.mxu0 0.0
        %2163 = vmatprep.subr.mxu0 0.0
        %2164 = vmatpush2.msra.mxu0 0.0
        %2165 = vmatprep.subr.mxu0 0.0
        %2166 = vmatpush2.msra.mxu0 0.0
        %2167 = vmatprep.subr.mxu0 0.0
        %2168 = vmatpush2.msra.mxu0 0.0
        %2169 = vmatprep.subr.mxu0 0.0
        %2170 = vmatpush2.msra.mxu0 0.0
        %2171 = vmatprep.subr.mxu0 0.0
        %2172 = vmatpush2.msra.mxu0 0.0
        %2173 = vmatprep.subr.mxu0 0.0
        %2174 = vmatpush2.msra.mxu0 0.0
        %2175 = vmatprep.subr.mxu0 0.0
        %2176 = vmatpush2.msra.mxu0 0.0
        %2177 = vmatprep.subr.mxu0 0.0
        %2178 = vmatpush2.msra.mxu0 0.0
        %2179 = vmatprep.subr.mxu0 0.0
        %2180 = vmatpush2.msra.mxu0 0.0
        %2181 = vmatprep.subr.mxu0 0.0
        %2182 = vmatpush2.msra.mxu0 0.0
        %2183 = vmatprep.subr.mxu0 0.0
        %2184 = vmatpush2.msra.mxu0 0.0
        %2185 = vmatprep.mubr.f32.mxu0 0.0
        %2186 = vmatmul.mubr.f32.gmra.mxu0 %v2119
        %v2187 = vpop.f32.mrf.mxu0
        %v2188 = vadd.f32 0.0, %v2187
        %v2189 = vpop.f32.mrf.mxu0
        %2190 = vdwg.mxu0
        %v2192 = vsel %vm1542, %v1969, 0
        %2194 = vmatprep.subr.mxu0 0.0
        %2195 = vmatpush1.msra.mxu0 0.0
        %2196 = vmatprep.subr.mxu0 0.0
        %2197 = vmatpush1.msra.mxu0 0.0
        %2198 = vmatprep.subr.mxu0 0.0
        %2199 = vmatpush1.msra.mxu0 0.0
        %2200 = vmatprep.subr.mxu0 0.0
        %2201 = vmatpush1.msra.mxu0 0.0
        %2202 = vmatprep.subr.mxu0 0.0
        %2203 = vmatpush1.msra.mxu0 0.0
        %2204 = vmatprep.subr.mxu0 0.0
        %2205 = vmatpush1.msra.mxu0 0.0
        %2206 = vmatprep.subr.mxu0 0.0
        %2207 = vmatpush1.msra.mxu0 0.0
        %2208 = vmatprep.subr.mxu0 0.0
        %2209 = vmatpush1.msra.mxu0 0.0
        %2210 = vmatprep.subr.mxu0 0.0
        %2211 = vmatpush1.msra.mxu0 0.0
        %2212 = vmatprep.subr.mxu0 0.0
        %2213 = vmatpush1.msra.mxu0 0.0
        %2214 = vmatprep.subr.mxu0 0.0
        %2215 = vmatpush1.msra.mxu0 0.0
        %2216 = vmatprep.subr.mxu0 0.0
        %2217 = vmatpush1.msra.mxu0 0.0
        %2218 = vmatprep.subr.mxu0 0.0
        %2219 = vmatpush1.msra.mxu0 0.0
        %2220 = vmatprep.subr.mxu0 0.0
        %2221 = vmatpush1.msra.mxu0 0.0
        %2222 = vmatprep.subr.mxu0 0.0
        %2223 = vmatpush1.msra.mxu0 0.0
        %2224 = vmatprep.subr.mxu0 0.0
        %2225 = vmatpush1.msra.mxu0 %v1538
        %2226 = vmatprep.subr.mxu0 0.0
        %2227 = vmatpush2.msra.mxu0 0.0
        %2228 = vmatprep.subr.mxu0 0.0
        %2229 = vmatpush2.msra.mxu0 0.0
        %2230 = vmatprep.subr.mxu0 0.0
        %2231 = vmatpush2.msra.mxu0 0.0
        %2232 = vmatprep.subr.mxu0 0.0
        %2233 = vmatpush2.msra.mxu0 0.0
        %2234 = vmatprep.subr.mxu0 0.0
        %2235 = vmatpush2.msra.mxu0 0.0
        %2236 = vmatprep.subr.mxu0 0.0
        %2237 = vmatpush2.msra.mxu0 0.0
        %2238 = vmatprep.subr.mxu0 0.0
        %2239 = vmatpush2.msra.mxu0 0.0
        %2240 = vmatprep.subr.mxu0 0.0
        %2241 = vmatpush2.msra.mxu0 0.0
        %2242 = vmatprep.subr.mxu0 0.0
        %2243 = vmatpush2.msra.mxu0 0.0
        %2244 = vmatprep.subr.mxu0 0.0
        %2245 = vmatpush2.msra.mxu0 0.0
        %2246 = vmatprep.subr.mxu0 0.0
        %2247 = vmatpush2.msra.mxu0 0.0
        %2248 = vmatprep.subr.mxu0 0.0
        %2249 = vmatpush2.msra.mxu0 0.0
        %2250 = vmatprep.subr.mxu0 0.0
        %2251 = vmatpush2.msra.mxu0 0.0
        %2252 = vmatprep.subr.mxu0 0.0
        %2253 = vmatpush2.msra.mxu0 0.0
        %2254 = vmatprep.subr.mxu0 0.0
        %2255 = vmatpush2.msra.mxu0 0.0
        %2256 = vmatprep.subr.mxu0 0.0
        %2257 = vmatpush2.msra.mxu0 0.0
        %2258 = vmatprep.mubr.f32.mxu0 0.0
        %2259 = vmatmul.mubr.f32.gmra.mxu0 %v2192
        %v2260 = vpop.f32.mrf.mxu0
        %v2261 = vadd.f32 0.0, %v2260
        %v2262 = vpop.f32.mrf.mxu0
        %2263 = vdwg.mxu0
        %v2265 = vsel %vm1542, %v2042, 0
        %2267 = vmatprep.subr.mxu0 0.0
        %2268 = vmatpush1.msra.mxu0 0.0
        %2269 = vmatprep.subr.mxu0 0.0
        %2270 = vmatpush1.msra.mxu0 0.0
        %2271 = vmatprep.subr.mxu0 0.0
        %2272 = vmatpush1.msra.mxu0 0.0
        %2273 = vmatprep.subr.mxu0 0.0
        %2274 = vmatpush1.msra.mxu0 0.0
        %2275 = vmatprep.subr.mxu0 0.0
        %2276 = vmatpush1.msra.mxu0 0.0
        %2277 = vmatprep.subr.mxu0 0.0
        %2278 = vmatpush1.msra.mxu0 0.0
        %2279 = vmatprep.subr.mxu0 0.0
        %2280 = vmatpush1.msra.mxu0 0.0
        %2281 = vmatprep.subr.mxu0 0.0
        %2282 = vmatpush1.msra.mxu0 0.0
        %2283 = vmatprep.subr.mxu0 0.0
        %2284 = vmatpush1.msra.mxu0 0.0
        %2285 = vmatprep.subr.mxu0 0.0
        %2286 = vmatpush1.msra.mxu0 0.0
        %2287 = vmatprep.subr.mxu0 0.0
        %2288 = vmatpush1.msra.mxu0 0.0
        %2289 = vmatprep.subr.mxu0 0.0
        %2290 = vmatpush1.msra.mxu0 0.0
        %2291 = vmatprep.subr.mxu0 0.0
        %2292 = vmatpush1.msra.mxu0 0.0
        %2293 = vmatprep.subr.mxu0 0.0
        %2294 = vmatpush1.msra.mxu0 0.0
        %2295 = vmatprep.subr.mxu0 0.0
        %2296 = vmatpush1.msra.mxu0 0.0
        %2297 = vmatprep.subr.mxu0 0.0
        %2298 = vmatpush1.msra.mxu0 %v1539
        %2299 = vmatprep.subr.mxu0 0.0
        %2300 = vmatpush2.msra.mxu0 0.0
        %2301 = vmatprep.subr.mxu0 0.0
        %2302 = vmatpush2.msra.mxu0 0.0
        %2303 = vmatprep.subr.mxu0 0.0
        %2304 = vmatpush2.msra.mxu0 0.0
        %2305 = vmatprep.subr.mxu0 0.0
        %2306 = vmatpush2.msra.mxu0 0.0
        %2307 = vmatprep.subr.mxu0 0.0
        %2308 = vmatpush2.msra.mxu0 0.0
        %2309 = vmatprep.subr.mxu0 0.0
        %2310 = vmatpush2.msra.mxu0 0.0
        %2311 = vmatprep.subr.mxu0 0.0
        %2312 = vmatpush2.msra.mxu0 0.0
        %2313 = vmatprep.subr.mxu0 0.0
        %2314 = vmatpush2.msra.mxu0 0.0
        %2315 = vmatprep.subr.mxu0 0.0
        %2316 = vmatpush2.msra.mxu0 0.0
        %2317 = vmatprep.subr.mxu0 0.0
        %2318 = vmatpush2.msra.mxu0 0.0
        %2319 = vmatprep.subr.mxu0 0.0
        %2320 = vmatpush2.msra.mxu0 0.0
        %2321 = vmatprep.subr.mxu0 0.0
        %2322 = vmatpush2.msra.mxu0 0.0
        %2323 = vmatprep.subr.mxu0 0.0
        %2324 = vmatpush2.msra.mxu0 0.0
        %2325 = vmatprep.subr.mxu0 0.0
        %2326 = vmatpush2.msra.mxu0 0.0
        %2327 = vmatprep.subr.mxu0 0.0
        %2328 = vmatpush2.msra.mxu0 0.0
        %2329 = vmatprep.subr.mxu0 0.0
        %2330 = vmatpush2.msra.mxu0 0.0
        %2331 = vmatprep.mubr.f32.mxu0 0.0
        %2332 = vmatmul.mubr.f32.gmra.mxu0 %v2265
        %v2333 = vpop.f32.mrf.mxu0
        %v2334 = vadd.f32 0.0, %v2333
        %v2335 = vpop.f32.mrf.mxu0
        %2336 = vdwg.mxu0
        %v2338 = vsel %vm1542, %v2115, 0
        %2340 = vmatprep.subr.mxu0 0.0
        %2341 = vmatpush1.msra.mxu0 0.0
        %2342 = vmatprep.subr.mxu0 0.0
        %2343 = vmatpush1.msra.mxu0 0.0
        %2344 = vmatprep.subr.mxu0 0.0
        %2345 = vmatpush1.msra.mxu0 0.0
        %2346 = vmatprep.subr.mxu0 0.0
        %2347 = vmatpush1.msra.mxu0 0.0
        %2348 = vmatprep.subr.mxu0 0.0
        %2349 = vmatpush1.msra.mxu0 0.0
        %2350 = vmatprep.subr.mxu0 0.0
        %2351 = vmatpush1.msra.mxu0 0.0
        %2352 = vmatprep.subr.mxu0 0.0
        %2353 = vmatpush1.msra.mxu0 0.0
        %2354 = vmatprep.subr.mxu0 0.0
        %2355 = vmatpush1.msra.mxu0 0.0
        %2356 = vmatprep.subr.mxu0 0.0
        %2357 = vmatpush1.msra.mxu0 0.0
        %2358 = vmatprep.subr.mxu0 0.0
        %2359 = vmatpush1.msra.mxu0 0.0
        %2360 = vmatprep.subr.mxu0 0.0
        %2361 = vmatpush1.msra.mxu0 0.0
        %2362 = vmatprep.subr.mxu0 0.0
        %2363 = vmatpush1.msra.mxu0 0.0
        %2364 = vmatprep.subr.mxu0 0.0
        %2365 = vmatpush1.msra.mxu0 0.0
        %2366 = vmatprep.subr.mxu0 0.0
        %2367 = vmatpush1.msra.mxu0 0.0
        %2368 = vmatprep.subr.mxu0 0.0
        %2369 = vmatpush1.msra.mxu0 0.0
        %2370 = vmatprep.subr.mxu0 0.0
        %2371 = vmatpush1.msra.mxu0 %v1540
        %2372 = vmatprep.subr.mxu0 0.0
        %2373 = vmatpush2.msra.mxu0 0.0
        %2374 = vmatprep.subr.mxu0 0.0
        %2375 = vmatpush2.msra.mxu0 0.0
        %2376 = vmatprep.subr.mxu0 0.0
        %2377 = vmatpush2.msra.mxu0 0.0
        %2378 = vmatprep.subr.mxu0 0.0
        %2379 = vmatpush2.msra.mxu0 0.0
        %2380 = vmatprep.subr.mxu0 0.0
        %2381 = vmatpush2.msra.mxu0 0.0
        %2382 = vmatprep.subr.mxu0 0.0
        %2383 = vmatpush2.msra.mxu0 0.0
        %2384 = vmatprep.subr.mxu0 0.0
        %2385 = vmatpush2.msra.mxu0 0.0
        %2386 = vmatprep.subr.mxu0 0.0
        %2387 = vmatpush2.msra.mxu0 0.0
        %2388 = vmatprep.subr.mxu0 0.0
        %2389 = vmatpush2.msra.mxu0 0.0
        %2390 = vmatprep.subr.mxu0 0.0
        %2391 = vmatpush2.msra.mxu0 0.0
        %2392 = vmatprep.subr.mxu0 0.0
        %2393 = vmatpush2.msra.mxu0 0.0
        %2394 = vmatprep.subr.mxu0 0.0
        %2395 = vmatpush2.msra.mxu0 0.0
        %2396 = vmatprep.subr.mxu0 0.0
        %2397 = vmatpush2.msra.mxu0 0.0
        %2398 = vmatprep.subr.mxu0 0.0
        %2399 = vmatpush2.msra.mxu0 0.0
        %2400 = vmatprep.subr.mxu0 0.0
        %2401 = vmatpush2.msra.mxu0 0.0
        %2402 = vmatprep.subr.mxu0 0.0
        %2403 = vmatpush2.msra.mxu0 0.0
        %2404 = vmatprep.mubr.f32.mxu0 0.0
        %2405 = vmatmul.mubr.f32.gmra.mxu0 %v2338
        %v2406 = vpop.f32.mrf.mxu0
        %v2407 = vadd.f32 0.0, %v2406
        %v2408 = vpop.f32.mrf.mxu0
        %2409 = vdwg.mxu0
        %v2411 = vsel %vm1542, %v2188, 0
        %2413 = vmatprep.subr.mxu0 0.0
        %2414 = vmatpush1.msra.mxu0 0.0
        %2415 = vmatprep.subr.mxu0 0.0
        %2416 = vmatpush1.msra.mxu0 0.0
        %2417 = vmatprep.subr.mxu0 0.0
        %2418 = vmatpush1.msra.mxu0 0.0
        %2419 = vmatprep.subr.mxu0 0.0
        %2420 = vmatpush1.msra.mxu0 0.0
        %2421 = vmatprep.subr.mxu0 0.0
        %2422 = vmatpush1.msra.mxu0 0.0
        %2423 = vmatprep.subr.mxu0 0.0
        %2424 = vmatpush1.msra.mxu0 0.0
        %2425 = vmatprep.subr.mxu0 0.0
        %2426 = vmatpush1.msra.mxu0 0.0
        %2427 = vmatprep.subr.mxu0 0.0
        %2428 = vmatpush1.msra.mxu0 0.0
        %2429 = vmatprep.subr.mxu0 0.0
        %2430 = vmatpush1.msra.mxu0 0.0
        %2431 = vmatprep.subr.mxu0 0.0
        %2432 = vmatpush1.msra.mxu0 0.0
        %2433 = vmatprep.subr.mxu0 0.0
        %2434 = vmatpush1.msra.mxu0 0.0
        %2435 = vmatprep.subr.mxu0 0.0
        %2436 = vmatpush1.msra.mxu0 0.0
        %2437 = vmatprep.subr.mxu0 0.0
        %2438 = vmatpush1.msra.mxu0 0.0
        %2439 = vmatprep.subr.mxu0 0.0
        %2440 = vmatpush1.msra.mxu0 0.0
        %2441 = vmatprep.subr.mxu0 0.0
        %2442 = vmatpush1.msra.mxu0 0.0
        %2443 = vmatprep.subr.mxu0 0.0
        %2444 = vmatpush1.msra.mxu0 %v1541
        %2445 = vmatprep.subr.mxu0 0.0
        %2446 = vmatpush2.msra.mxu0 0.0
        %2447 = vmatprep.subr.mxu0 0.0
        %2448 = vmatpush2.msra.mxu0 0.0
        %2449 = vmatprep.subr.mxu0 0.0
        %2450 = vmatpush2.msra.mxu0 0.0
        %2451 = vmatprep.subr.mxu0 0.0
        %2452 = vmatpush2.msra.mxu0 0.0
        %2453 = vmatprep.subr.mxu0 0.0
        %2454 = vmatpush2.msra.mxu0 0.0
        %2455 = vmatprep.subr.mxu0 0.0
        %2456 = vmatpush2.msra.mxu0 0.0
        %2457 = vmatprep.subr.mxu0 0.0
        %2458 = vmatpush2.msra.mxu0 0.0
        %2459 = vmatprep.subr.mxu0 0.0
        %2460 = vmatpush2.msra.mxu0 0.0
        %2461 = vmatprep.subr.mxu0 0.0
        %2462 = vmatpush2.msra.mxu0 0.0
        %2463 = vmatprep.subr.mxu0 0.0
        %2464 = vmatpush2.msra.mxu0 0.0
        %2465 = vmatprep.subr.mxu0 0.0
        %2466 = vmatpush2.msra.mxu0 0.0
        %2467 = vmatprep.subr.mxu0 0.0
        %2468 = vmatpush2.msra.mxu0 0.0
        %2469 = vmatprep.subr.mxu0 0.0
        %2470 = vmatpush2.msra.mxu0 0.0
        %2471 = vmatprep.subr.mxu0 0.0
        %2472 = vmatpush2.msra.mxu0 0.0
        %2473 = vmatprep.subr.mxu0 0.0
        %2474 = vmatpush2.msra.mxu0 0.0
        %2475 = vmatprep.subr.mxu0 0.0
        %2476 = vmatpush2.msra.mxu0 0.0
        %2477 = vmatprep.mubr.f32.mxu0 0.0
        %2478 = vmatmul.mubr.f32.gmra.mxu0 %v2411
        %v2479 = vpop.f32.mrf.mxu0
        %v2480 = vadd.f32 0.0, %v2479
        %v2481 = vpop.f32.mrf.mxu0
        %2482 = vdwg.mxu0
        %v2483 = vsel %vm694, %v2261, 0.0
        %v2484 = vsel %vm694, %v2334, 0.0
        %v2485 = vadd.f32 %v2483, %v2484
        %v2486 = vsel %vm694, %v2407, 0.0
        %v2487 = vadd.f32 %v2485, %v2486
        %v2488 = vsel %vm694, %v2480, 0.0
        %v2489 = vadd.f32 %v2487, %v2488
        %v2490 = vlaneseq
        %v2491 = vshrl.u32 %v2490, 7
        %v2492 = vsub.s32 0, %v2491
        %v2493 = vrot.slane %v558, %v2492
        %v2494 = vadd.f32 %v2489, %v2493
        %v2495 = vadd.f32 %v2494, %v548
        %v2496 = vsel %vm694, %v2495, 0.0
        %2497 = vadd.xlane.f32.xlu0 %v2496
        %v2498 = vpop.xlane.xlu0 %2497
        %v2499 = vrcp.pop 32.0
        %v2500 = vmul.f32 %v2498, %v2499
        %v2501 = vsub.f32 %v2495, %v2500
        %v2502 = vmul.f32 %v2501, %v2501
        %v2503 = vsel %vm694, %v2502, 0.0
        %2504 = vadd.xlane.f32.xlu0 %v2503
        %v2505 = vpop.xlane.xlu0 %2504
        %v2506 = vmul.f32 %v2505, %v2499
        %v2507 = vadd.f32 %v2506, 1e-05
        %v2508 = vrsqrt.pop %v2507
        %v2509 = vmul.f32 %v2501, %v2508
        %v2510 = vlaneseq
        %v2511 = vshrl.u32 %v2510, 7
        %v2512 = vsub.s32 0, %v2511
        %v2513 = vrot.slane %v552, %v2512
        %v2514 = vmul.f32 %v2509, %v2513
        %v2515 = vlaneseq
        %v2516 = vshrl.u32 %v2515, 7
        %v2517 = vsub.s32 0, %v2516
        %v2518 = vrot.slane %v553, %v2517
        %v2519 = vadd.f32 %v2514, %v2518
        %v2520 = vld [vmem:[%s7] sm:$0xff]
        %v2521 = vld [vmem:[%s7 + $0x8] sm:$0xff]
        %v2522 = vld [vmem:[%s7 + $0x10] sm:$0xff]
        %v2523 = vld [vmem:[%s7 + $0x18] sm:$0xff]
        %v2524 = vld [vmem:[%s7 + $0x20] sm:$0xff]
        %v2525 = vld [vmem:[%s7 + $0x28] sm:$0xff]
        %v2526 = vld [vmem:[%s7 + $0x30] sm:$0xff]
        %v2527 = vld [vmem:[%s7 + $0x38] sm:$0xff]
        %v2528 = vld [vmem:[%s7 + $0x40] sm:$0xff]
        %v2529 = vld [vmem:[%s7 + $0x48] sm:$0xff]
        %v2530 = vld [vmem:[%s7 + $0x50] sm:$0xff]
        %v2531 = vld [vmem:[%s7 + $0x58] sm:$0xff]
        %v2532 = vld [vmem:[%s7 + $0x60] sm:$0xff]
        %v2533 = vld [vmem:[%s7 + $0x68] sm:$0xff]
        %v2534 = vld [vmem:[%s7 + $0x70] sm:$0xff]
        %v2535 = vld [vmem:[%s7 + $0x78] sm:$0xff]
        %v2536 = vld [vmem:[%s8] sm:$0x1]
        %v2537 = vld [vmem:[%s8 + $0x1] sm:$0x1]
        %v2538 = vld [vmem:[%s8 + $0x2] sm:$0x1]
        %v2539 = vld [vmem:[%s8 + $0x3] sm:$0x1]
        %v2544 = vlaneseq
        %v2545 = vshrl.u32 %v2544, 7
        %v2546 = vsub.s32 0, %v2545
        %v2547 = vrot.slane %v2536, %v2546
        %v2548 = vlaneseq
        %v2549 = vshrl.u32 %v2548, 7
        %v2550 = vsub.s32 0, %v2549
        %v2551 = vrot.slane %v2537, %v2550
        %v2552 = vlaneseq
        %v2553 = vshrl.u32 %v2552, 7
        %v2554 = vsub.s32 0, %v2553
        %v2555 = vrot.slane %v2538, %v2554
        %v2556 = vlaneseq
        %v2557 = vshrl.u32 %v2556, 7
        %v2558 = vsub.s32 0, %v2557
        %v2559 = vrot.slane %v2539, %v2558
        %v2565 = vsel %vm694, %v2519, 0
        %2567 = vmatprep.subr.mxu0 0.0
        %2568 = vmatpush1.msra.mxu0 0.0
        %2569 = vmatprep.subr.mxu0 0.0
        %2570 = vmatpush1.msra.mxu0 0.0
        %2571 = vmatprep.subr.mxu0 0.0
        %2572 = vmatpush1.msra.mxu0 0.0
        %2573 = vmatprep.subr.mxu0 0.0
        %2574 = vmatpush1.msra.mxu0 0.0
        %2575 = vmatprep.subr.mxu0 0.0
        %2576 = vmatpush1.msra.mxu0 0.0
        %2577 = vmatprep.subr.mxu0 0.0
        %2578 = vmatpush1.msra.mxu0 0.0
        %2579 = vmatprep.subr.mxu0 0.0
        %2580 = vmatpush1.msra.mxu0 0.0
        %2581 = vmatprep.subr.mxu0 0.0
        %2582 = vmatpush1.msra.mxu0 0.0
        %2583 = vmatprep.subr.mxu0 0.0
        %2584 = vmatpush1.msra.mxu0 0.0
        %2585 = vmatprep.subr.mxu0 0.0
        %2586 = vmatpush1.msra.mxu0 0.0
        %2587 = vmatprep.subr.mxu0 0.0
        %2588 = vmatpush1.msra.mxu0 0.0
        %2589 = vmatprep.subr.mxu0 0.0
        %2590 = vmatpush1.msra.mxu0 0.0
        %2591 = vmatprep.subr.mxu0 0.0
        %2592 = vmatpush1.msra.mxu0 %v2523
        %2593 = vmatprep.subr.mxu0 0.0
        %2594 = vmatpush1.msra.mxu0 %v2522
        %2595 = vmatprep.subr.mxu0 0.0
        %2596 = vmatpush1.msra.mxu0 %v2521
        %2597 = vmatprep.subr.mxu0 0.0
        %2598 = vmatpush1.msra.mxu0 %v2520
        %2599 = vmatprep.subr.mxu0 0.0
        %2600 = vmatpush2.msra.mxu0 0.0
        %2601 = vmatprep.subr.mxu0 0.0
        %2602 = vmatpush2.msra.mxu0 0.0
        %2603 = vmatprep.subr.mxu0 0.0
        %2604 = vmatpush2.msra.mxu0 0.0
        %2605 = vmatprep.subr.mxu0 0.0
        %2606 = vmatpush2.msra.mxu0 0.0
        %2607 = vmatprep.subr.mxu0 0.0
        %2608 = vmatpush2.msra.mxu0 0.0
        %2609 = vmatprep.subr.mxu0 0.0
        %2610 = vmatpush2.msra.mxu0 0.0
        %2611 = vmatprep.subr.mxu0 0.0
        %2612 = vmatpush2.msra.mxu0 0.0
        %2613 = vmatprep.subr.mxu0 0.0
        %2614 = vmatpush2.msra.mxu0 0.0
        %2615 = vmatprep.subr.mxu0 0.0
        %2616 = vmatpush2.msra.mxu0 0.0
        %2617 = vmatprep.subr.mxu0 0.0
        %2618 = vmatpush2.msra.mxu0 0.0
        %2619 = vmatprep.subr.mxu0 0.0
        %2620 = vmatpush2.msra.mxu0 0.0
        %2621 = vmatprep.subr.mxu0 0.0
        %2622 = vmatpush2.msra.mxu0 0.0
        %2623 = vmatprep.subr.mxu0 0.0
        %2624 = vmatpush2.msra.mxu0 0.0
        %2625 = vmatprep.subr.mxu0 0.0
        %2626 = vmatpush2.msra.mxu0 0.0
        %2627 = vmatprep.subr.mxu0 0.0
        %2628 = vmatpush2.msra.mxu0 0.0
        %2629 = vmatprep.subr.mxu0 0.0
        %2630 = vmatpush2.msra.mxu0 0.0
        %2631 = vmatprep.mubr.f32.mxu0 0.0
        %2632 = vmatmul.mubr.f32.gmra.mxu0 %v2565
        %v2633 = vpop.f32.mrf.mxu0
        %v2634 = vadd.f32 %v2547, %v2633
        %v2635 = vpop.f32.mrf.mxu0
        %2636 = vdwg.mxu0
        %2637 = vmatprep.subr.mxu0 0.0
        %2638 = vmatpush1.msra.mxu0 0.0
        %2639 = vmatprep.subr.mxu0 0.0
        %2640 = vmatpush1.msra.mxu0 0.0
        %2641 = vmatprep.subr.mxu0 0.0
        %2642 = vmatpush1.msra.mxu0 0.0
        %2643 = vmatprep.subr.mxu0 0.0
        %2644 = vmatpush1.msra.mxu0 0.0
        %2645 = vmatprep.subr.mxu0 0.0
        %2646 = vmatpush1.msra.mxu0 0.0
        %2647 = vmatprep.subr.mxu0 0.0
        %2648 = vmatpush1.msra.mxu0 0.0
        %2649 = vmatprep.subr.mxu0 0.0
        %2650 = vmatpush1.msra.mxu0 0.0
        %2651 = vmatprep.subr.mxu0 0.0
        %2652 = vmatpush1.msra.mxu0 0.0
        %2653 = vmatprep.subr.mxu0 0.0
        %2654 = vmatpush1.msra.mxu0 0.0
        %2655 = vmatprep.subr.mxu0 0.0
        %2656 = vmatpush1.msra.mxu0 0.0
        %2657 = vmatprep.subr.mxu0 0.0
        %2658 = vmatpush1.msra.mxu0 0.0
        %2659 = vmatprep.subr.mxu0 0.0
        %2660 = vmatpush1.msra.mxu0 0.0
        %2661 = vmatprep.subr.mxu0 0.0
        %2662 = vmatpush1.msra.mxu0 %v2527
        %2663 = vmatprep.subr.mxu0 0.0
        %2664 = vmatpush1.msra.mxu0 %v2526
        %2665 = vmatprep.subr.mxu0 0.0
        %2666 = vmatpush1.msra.mxu0 %v2525
        %2667 = vmatprep.subr.mxu0 0.0
        %2668 = vmatpush1.msra.mxu0 %v2524
        %2669 = vmatprep.subr.mxu0 0.0
        %2670 = vmatpush2.msra.mxu0 0.0
        %2671 = vmatprep.subr.mxu0 0.0
        %2672 = vmatpush2.msra.mxu0 0.0
        %2673 = vmatprep.subr.mxu0 0.0
        %2674 = vmatpush2.msra.mxu0 0.0
        %2675 = vmatprep.subr.mxu0 0.0
        %2676 = vmatpush2.msra.mxu0 0.0
        %2677 = vmatprep.subr.mxu0 0.0
        %2678 = vmatpush2.msra.mxu0 0.0
        %2679 = vmatprep.subr.mxu0 0.0
        %2680 = vmatpush2.msra.mxu0 0.0
        %2681 = vmatprep.subr.mxu0 0.0
        %2682 = vmatpush2.msra.mxu0 0.0
        %2683 = vmatprep.subr.mxu0 0.0
        %2684 = vmatpush2.msra.mxu0 0.0
        %2685 = vmatprep.subr.mxu0 0.0
        %2686 = vmatpush2.msra.mxu0 0.0
        %2687 = vmatprep.subr.mxu0 0.0
        %2688 = vmatpush2.msra.mxu0 0.0
        %2689 = vmatprep.subr.mxu0 0.0
        %2690 = vmatpush2.msra.mxu0 0.0
        %2691 = vmatprep.subr.mxu0 0.0
        %2692 = vmatpush2.msra.mxu0 0.0
        %2693 = vmatprep.subr.mxu0 0.0
        %2694 = vmatpush2.msra.mxu0 0.0
        %2695 = vmatprep.subr.mxu0 0.0
        %2696 = vmatpush2.msra.mxu0 0.0
        %2697 = vmatprep.subr.mxu0 0.0
        %2698 = vmatpush2.msra.mxu0 0.0
        %2699 = vmatprep.subr.mxu0 0.0
        %2700 = vmatpush2.msra.mxu0 0.0
        %2701 = vmatprep.mubr.f32.mxu0 0.0
        %2702 = vmatmul.mubr.f32.gmra.mxu0 %v2565
        %v2703 = vpop.f32.mrf.mxu0
        %v2704 = vadd.f32 %v2551, %v2703
        %v2705 = vpop.f32.mrf.mxu0
        %2706 = vdwg.mxu0
        %2707 = vmatprep.subr.mxu0 0.0
        %2708 = vmatpush1.msra.mxu0 0.0
        %2709 = vmatprep.subr.mxu0 0.0
        %2710 = vmatpush1.msra.mxu0 0.0
        %2711 = vmatprep.subr.mxu0 0.0
        %2712 = vmatpush1.msra.mxu0 0.0
        %2713 = vmatprep.subr.mxu0 0.0
        %2714 = vmatpush1.msra.mxu0 0.0
        %2715 = vmatprep.subr.mxu0 0.0
        %2716 = vmatpush1.msra.mxu0 0.0
        %2717 = vmatprep.subr.mxu0 0.0
        %2718 = vmatpush1.msra.mxu0 0.0
        %2719 = vmatprep.subr.mxu0 0.0
        %2720 = vmatpush1.msra.mxu0 0.0
        %2721 = vmatprep.subr.mxu0 0.0
        %2722 = vmatpush1.msra.mxu0 0.0
        %2723 = vmatprep.subr.mxu0 0.0
        %2724 = vmatpush1.msra.mxu0 0.0
        %2725 = vmatprep.subr.mxu0 0.0
        %2726 = vmatpush1.msra.mxu0 0.0
        %2727 = vmatprep.subr.mxu0 0.0
        %2728 = vmatpush1.msra.mxu0 0.0
        %2729 = vmatprep.subr.mxu0 0.0
        %2730 = vmatpush1.msra.mxu0 0.0
        %2731 = vmatprep.subr.mxu0 0.0
        %2732 = vmatpush1.msra.mxu0 %v2531
        %2733 = vmatprep.subr.mxu0 0.0
        %2734 = vmatpush1.msra.mxu0 %v2530
        %2735 = vmatprep.subr.mxu0 0.0
        %2736 = vmatpush1.msra.mxu0 %v2529
        %2737 = vmatprep.subr.mxu0 0.0
        %2738 = vmatpush1.msra.mxu0 %v2528
        %2739 = vmatprep.subr.mxu0 0.0
        %2740 = vmatpush2.msra.mxu0 0.0
        %2741 = vmatprep.subr.mxu0 0.0
        %2742 = vmatpush2.msra.mxu0 0.0
        %2743 = vmatprep.subr.mxu0 0.0
        %2744 = vmatpush2.msra.mxu0 0.0
        %2745 = vmatprep.subr.mxu0 0.0
        %2746 = vmatpush2.msra.mxu0 0.0
        %2747 = vmatprep.subr.mxu0 0.0
        %2748 = vmatpush2.msra.mxu0 0.0
        %2749 = vmatprep.subr.mxu0 0.0
        %2750 = vmatpush2.msra.mxu0 0.0
        %2751 = vmatprep.subr.mxu0 0.0
        %2752 = vmatpush2.msra.mxu0 0.0
        %2753 = vmatprep.subr.mxu0 0.0
        %2754 = vmatpush2.msra.mxu0 0.0
        %2755 = vmatprep.subr.mxu0 0.0
        %2756 = vmatpush2.msra.mxu0 0.0
        %2757 = vmatprep.subr.mxu0 0.0
        %2758 = vmatpush2.msra.mxu0 0.0
        %2759 = vmatprep.subr.mxu0 0.0
        %2760 = vmatpush2.msra.mxu0 0.0
        %2761 = vmatprep.subr.mxu0 0.0
        %2762 = vmatpush2.msra.mxu0 0.0
        %2763 = vmatprep.subr.mxu0 0.0
        %2764 = vmatpush2.msra.mxu0 0.0
        %2765 = vmatprep.subr.mxu0 0.0
        %2766 = vmatpush2.msra.mxu0 0.0
        %2767 = vmatprep.subr.mxu0 0.0
        %2768 = vmatpush2.msra.mxu0 0.0
        %2769 = vmatprep.subr.mxu0 0.0
        %2770 = vmatpush2.msra.mxu0 0.0
        %2771 = vmatprep.mubr.f32.mxu0 0.0
        %2772 = vmatmul.mubr.f32.gmra.mxu0 %v2565
        %v2773 = vpop.f32.mrf.mxu0
        %v2774 = vadd.f32 %v2555, %v2773
        %v2775 = vpop.f32.mrf.mxu0
        %2776 = vdwg.mxu0
        %2777 = vmatprep.subr.mxu0 0.0
        %2778 = vmatpush1.msra.mxu0 0.0
        %2779 = vmatprep.subr.mxu0 0.0
        %2780 = vmatpush1.msra.mxu0 0.0
        %2781 = vmatprep.subr.mxu0 0.0
        %2782 = vmatpush1.msra.mxu0 0.0
        %2783 = vmatprep.subr.mxu0 0.0
        %2784 = vmatpush1.msra.mxu0 0.0
        %2785 = vmatprep.subr.mxu0 0.0
        %2786 = vmatpush1.msra.mxu0 0.0
        %2787 = vmatprep.subr.mxu0 0.0
        %2788 = vmatpush1.msra.mxu0 0.0
        %2789 = vmatprep.subr.mxu0 0.0
        %2790 = vmatpush1.msra.mxu0 0.0
        %2791 = vmatprep.subr.mxu0 0.0
        %2792 = vmatpush1.msra.mxu0 0.0
        %2793 = vmatprep.subr.mxu0 0.0
        %2794 = vmatpush1.msra.mxu0 0.0
        %2795 = vmatprep.subr.mxu0 0.0
        %2796 = vmatpush1.msra.mxu0 0.0
        %2797 = vmatprep.subr.mxu0 0.0
        %2798 = vmatpush1.msra.mxu0 0.0
        %2799 = vmatprep.subr.mxu0 0.0
        %2800 = vmatpush1.msra.mxu0 0.0
        %2801 = vmatprep.subr.mxu0 0.0
        %2802 = vmatpush1.msra.mxu0 %v2535
        %2803 = vmatprep.subr.mxu0 0.0
        %2804 = vmatpush1.msra.mxu0 %v2534
        %2805 = vmatprep.subr.mxu0 0.0
        %2806 = vmatpush1.msra.mxu0 %v2533
        %2807 = vmatprep.subr.mxu0 0.0
        %2808 = vmatpush1.msra.mxu0 %v2532
        %2809 = vmatprep.subr.mxu0 0.0
        %2810 = vmatpush2.msra.mxu0 0.0
        %2811 = vmatprep.subr.mxu0 0.0
        %2812 = vmatpush2.msra.mxu0 0.0
        %2813 = vmatprep.subr.mxu0 0.0
        %2814 = vmatpush2.msra.mxu0 0.0
        %2815 = vmatprep.subr.mxu0 0.0
        %2816 = vmatpush2.msra.mxu0 0.0
        %2817 = vmatprep.subr.mxu0 0.0
        %2818 = vmatpush2.msra.mxu0 0.0
        %2819 = vmatprep.subr.mxu0 0.0
        %2820 = vmatpush2.msra.mxu0 0.0
        %2821 = vmatprep.subr.mxu0 0.0
        %2822 = vmatpush2.msra.mxu0 0.0
        %2823 = vmatprep.subr.mxu0 0.0
        %2824 = vmatpush2.msra.mxu0 0.0
        %2825 = vmatprep.subr.mxu0 0.0
        %2826 = vmatpush2.msra.mxu0 0.0
        %2827 = vmatprep.subr.mxu0 0.0
        %2828 = vmatpush2.msra.mxu0 0.0
        %2829 = vmatprep.subr.mxu0 0.0
        %2830 = vmatpush2.msra.mxu0 0.0
        %2831 = vmatprep.subr.mxu0 0.0
        %2832 = vmatpush2.msra.mxu0 0.0
        %2833 = vmatprep.subr.mxu0 0.0
        %2834 = vmatpush2.msra.mxu0 0.0
        %2835 = vmatprep.subr.mxu0 0.0
        %2836 = vmatpush2.msra.mxu0 0.0
        %2837 = vmatprep.subr.mxu0 0.0
        %2838 = vmatpush2.msra.mxu0 0.0
        %2839 = vmatprep.subr.mxu0 0.0
        %2840 = vmatpush2.msra.mxu0 0.0
        %2841 = vmatprep.mubr.f32.mxu0 0.0
        %2842 = vmatmul.mubr.f32.gmra.mxu0 %v2565
        %v2843 = vpop.f32.mrf.mxu0
        %v2844 = vadd.f32 %v2559, %v2843
        %v2845 = vpop.f32.mrf.mxu0
        %2846 = vdwg.mxu0
        %v2847 = vld [vmem:[%s9] sm:$0xff]
        %v2848 = vld [vmem:[%s9 + $0x8] sm:$0xff]
        %v2849 = vld [vmem:[%s9 + $0x10] sm:$0xff]
        %v2850 = vld [vmem:[%s9 + $0x18] sm:$0xff]
        %v2851 = vld [vmem:[%s9 + $0x20] sm:$0xff]
        %v2852 = vld [vmem:[%s9 + $0x28] sm:$0xff]
        %v2853 = vld [vmem:[%s9 + $0x30] sm:$0xff]
        %v2854 = vld [vmem:[%s9 + $0x38] sm:$0xff]
        %v2855 = vld [vmem:[%s9 + $0x40] sm:$0xff]
        %v2856 = vld [vmem:[%s9 + $0x48] sm:$0xff]
        %v2857 = vld [vmem:[%s9 + $0x50] sm:$0xff]
        %v2858 = vld [vmem:[%s9 + $0x58] sm:$0xff]
        %v2859 = vld [vmem:[%s9 + $0x60] sm:$0xff]
        %v2860 = vld [vmem:[%s9 + $0x68] sm:$0xff]
        %v2861 = vld [vmem:[%s9 + $0x70] sm:$0xff]
        %v2862 = vld [vmem:[%s9 + $0x78] sm:$0xff]
        %v2863 = vld [vmem:[%s9 + $0x80] sm:$0xff]
        %v2864 = vld [vmem:[%s9 + $0x88] sm:$0xff]
        %v2865 = vld [vmem:[%s9 + $0x90] sm:$0xff]
        %v2866 = vld [vmem:[%s9 + $0x98] sm:$0xff]
        %v2867 = vld [vmem:[%s9 + $0xa0] sm:$0xff]
        %v2868 = vld [vmem:[%s9 + $0xa8] sm:$0xff]
        %v2869 = vld [vmem:[%s9 + $0xb0] sm:$0xff]
        %v2870 = vld [vmem:[%s9 + $0xb8] sm:$0xff]
        %v2871 = vld [vmem:[%s9 + $0xc0] sm:$0xff]
        %v2872 = vld [vmem:[%s9 + $0xc8] sm:$0xff]
        %v2873 = vld [vmem:[%s9 + $0xd0] sm:$0xff]
        %v2874 = vld [vmem:[%s9 + $0xd8] sm:$0xff]
        %v2875 = vld [vmem:[%s9 + $0xe0] sm:$0xff]
        %v2876 = vld [vmem:[%s9 + $0xe8] sm:$0xff]
        %v2877 = vld [vmem:[%s9 + $0xf0] sm:$0xff]
        %v2878 = vld [vmem:[%s9 + $0xf8] sm:$0xff]
        %v2879 = vld [vmem:[%s10] sm:$0x1]
        %v2880 = vld [vmem:[%s10 + $0x1] sm:$0x1]
        %v2881 = vld [vmem:[%s10 + $0x2] sm:$0x1]
        %v2882 = vld [vmem:[%s10 + $0x3] sm:$0x1]
        %v2883 = vld [vmem:[%s10 + $0x4] sm:$0x1]
        %v2884 = vld [vmem:[%s10 + $0x5] sm:$0x1]
        %v2885 = vld [vmem:[%s10 + $0x6] sm:$0x1]
        %v2886 = vld [vmem:[%s10 + $0x7] sm:$0x1]
        %v2895 = vlaneseq
        %v2896 = vshrl.u32 %v2895, 7
        %v2897 = vsub.s32 0, %v2896
        %v2898 = vrot.slane %v2879, %v2897
        %v2899 = vlaneseq
        %v2900 = vshrl.u32 %v2899, 7
        %v2901 = vsub.s32 0, %v2900
        %v2902 = vrot.slane %v2880, %v2901
        %v2903 = vlaneseq
        %v2904 = vshrl.u32 %v2903, 7
        %v2905 = vsub.s32 0, %v2904
        %v2906 = vrot.slane %v2881, %v2905
        %v2907 = vlaneseq
        %v2908 = vshrl.u32 %v2907, 7
        %v2909 = vsub.s32 0, %v2908
        %v2910 = vrot.slane %v2882, %v2909
        %v2911 = vlaneseq
        %v2912 = vshrl.u32 %v2911, 7
        %v2913 = vsub.s32 0, %v2912
        %v2914 = vrot.slane %v2883, %v2913
        %v2915 = vlaneseq
        %v2916 = vshrl.u32 %v2915, 7
        %v2917 = vsub.s32 0, %v2916
        %v2918 = vrot.slane %v2884, %v2917
        %v2919 = vlaneseq
        %v2920 = vshrl.u32 %v2919, 7
        %v2921 = vsub.s32 0, %v2920
        %v2922 = vrot.slane %v2885, %v2921
        %v2923 = vlaneseq
        %v2924 = vshrl.u32 %v2923, 7
        %v2925 = vsub.s32 0, %v2924
        %v2926 = vrot.slane %v2886, %v2925
        %v2936 = vsel %vm694, %v549, 0
        %2938 = vmatprep.subr.mxu0 0.0
        %2939 = vmatpush1.msra.mxu0 0.0
        %2940 = vmatprep.subr.mxu0 0.0
        %2941 = vmatpush1.msra.mxu0 0.0
        %2942 = vmatprep.subr.mxu0 0.0
        %2943 = vmatpush1.msra.mxu0 0.0
        %2944 = vmatprep.subr.mxu0 0.0
        %2945 = vmatpush1.msra.mxu0 0.0
        %2946 = vmatprep.subr.mxu0 0.0
        %2947 = vmatpush1.msra.mxu0 0.0
        %2948 = vmatprep.subr.mxu0 0.0
        %2949 = vmatpush1.msra.mxu0 0.0
        %2950 = vmatprep.subr.mxu0 0.0
        %2951 = vmatpush1.msra.mxu0 0.0
        %2952 = vmatprep.subr.mxu0 0.0
        %2953 = vmatpush1.msra.mxu0 0.0
        %2954 = vmatprep.subr.mxu0 0.0
        %2955 = vmatpush1.msra.mxu0 0.0
        %2956 = vmatprep.subr.mxu0 0.0
        %2957 = vmatpush1.msra.mxu0 0.0
        %2958 = vmatprep.subr.mxu0 0.0
        %2959 = vmatpush1.msra.mxu0 0.0
        %2960 = vmatprep.subr.mxu0 0.0
        %2961 = vmatpush1.msra.mxu0 0.0
        %2962 = vmatprep.subr.mxu0 0.0
        %2963 = vmatpush1.msra.mxu0 %v2850
        %2964 = vmatprep.subr.mxu0 0.0
        %2965 = vmatpush1.msra.mxu0 %v2849
        %2966 = vmatprep.subr.mxu0 0.0
        %2967 = vmatpush1.msra.mxu0 %v2848
        %2968 = vmatprep.subr.mxu0 0.0
        %2969 = vmatpush1.msra.mxu0 %v2847
        %2970 = vmatprep.subr.mxu0 0.0
        %2971 = vmatpush2.msra.mxu0 0.0
        %2972 = vmatprep.subr.mxu0 0.0
        %2973 = vmatpush2.msra.mxu0 0.0
        %2974 = vmatprep.subr.mxu0 0.0
        %2975 = vmatpush2.msra.mxu0 0.0
        %2976 = vmatprep.subr.mxu0 0.0
        %2977 = vmatpush2.msra.mxu0 0.0
        %2978 = vmatprep.subr.mxu0 0.0
        %2979 = vmatpush2.msra.mxu0 0.0
        %2980 = vmatprep.subr.mxu0 0.0
        %2981 = vmatpush2.msra.mxu0 0.0
        %2982 = vmatprep.subr.mxu0 0.0
        %2983 = vmatpush2.msra.mxu0 0.0
        %2984 = vmatprep.subr.mxu0 0.0
        %2985 = vmatpush2.msra.mxu0 0.0
        %2986 = vmatprep.subr.mxu0 0.0
        %2987 = vmatpush2.msra.mxu0 0.0
        %2988 = vmatprep.subr.mxu0 0.0
        %2989 = vmatpush2.msra.mxu0 0.0
        %2990 = vmatprep.subr.mxu0 0.0
        %2991 = vmatpush2.msra.mxu0 0.0
        %2992 = vmatprep.subr.mxu0 0.0
        %2993 = vmatpush2.msra.mxu0 0.0
        %2994 = vmatprep.subr.mxu0 0.0
        %2995 = vmatpush2.msra.mxu0 0.0
        %2996 = vmatprep.subr.mxu0 0.0
        %2997 = vmatpush2.msra.mxu0 0.0
        %2998 = vmatprep.subr.mxu0 0.0
        %2999 = vmatpush2.msra.mxu0 0.0
        %3000 = vmatprep.subr.mxu0 0.0
        %3001 = vmatpush2.msra.mxu0 0.0
        %3002 = vmatprep.mubr.f32.mxu0 0.0
        %3003 = vmatmul.mubr.f32.gmra.mxu0 %v2936
        %v3004 = vpop.f32.mrf.mxu0
        %v3005 = vadd.f32 %v2898, %v3004
        %v3006 = vpop.f32.mrf.mxu0
        %3007 = vdwg.mxu0
        %3008 = vmatprep.subr.mxu0 0.0
        %3009 = vmatpush1.msra.mxu0 0.0
        %3010 = vmatprep.subr.mxu0 0.0
        %3011 = vmatpush1.msra.mxu0 0.0
        %3012 = vmatprep.subr.mxu0 0.0
        %3013 = vmatpush1.msra.mxu0 0.0
        %3014 = vmatprep.subr.mxu0 0.0
        %3015 = vmatpush1.msra.mxu0 0.0
        %3016 = vmatprep.subr.mxu0 0.0
        %3017 = vmatpush1.msra.mxu0 0.0
        %3018 = vmatprep.subr.mxu0 0.0
        %3019 = vmatpush1.msra.mxu0 0.0
        %3020 = vmatprep.subr.mxu0 0.0
        %3021 = vmatpush1.msra.mxu0 0.0
        %3022 = vmatprep.subr.mxu0 0.0
        %3023 = vmatpush1.msra.mxu0 0.0
        %3024 = vmatprep.subr.mxu0 0.0
        %3025 = vmatpush1.msra.mxu0 0.0
        %3026 = vmatprep.subr.mxu0 0.0
        %3027 = vmatpush1.msra.mxu0 0.0
        %3028 = vmatprep.subr.mxu0 0.0
        %3029 = vmatpush1.msra.mxu0 0.0
        %3030 = vmatprep.subr.mxu0 0.0
        %3031 = vmatpush1.msra.mxu0 0.0
        %3032 = vmatprep.subr.mxu0 0.0
        %3033 = vmatpush1.msra.mxu0 %v2854
        %3034 = vmatprep.subr.mxu0 0.0
        %3035 = vmatpush1.msra.mxu0 %v2853
        %3036 = vmatprep.subr.mxu0 0.0
        %3037 = vmatpush1.msra.mxu0 %v2852
        %3038 = vmatprep.subr.mxu0 0.0
        %3039 = vmatpush1.msra.mxu0 %v2851
        %3040 = vmatprep.subr.mxu0 0.0
        %3041 = vmatpush2.msra.mxu0 0.0
        %3042 = vmatprep.subr.mxu0 0.0
        %3043 = vmatpush2.msra.mxu0 0.0
        %3044 = vmatprep.subr.mxu0 0.0
        %3045 = vmatpush2.msra.mxu0 0.0
        %3046 = vmatprep.subr.mxu0 0.0
        %3047 = vmatpush2.msra.mxu0 0.0
        %3048 = vmatprep.subr.mxu0 0.0
        %3049 = vmatpush2.msra.mxu0 0.0
        %3050 = vmatprep.subr.mxu0 0.0
        %3051 = vmatpush2.msra.mxu0 0.0
        %3052 = vmatprep.subr.mxu0 0.0
        %3053 = vmatpush2.msra.mxu0 0.0
        %3054 = vmatprep.subr.mxu0 0.0
        %3055 = vmatpush2.msra.mxu0 0.0
        %3056 = vmatprep.subr.mxu0 0.0
        %3057 = vmatpush2.msra.mxu0 0.0
        %3058 = vmatprep.subr.mxu0 0.0
        %3059 = vmatpush2.msra.mxu0 0.0
        %3060 = vmatprep.subr.mxu0 0.0
        %3061 = vmatpush2.msra.mxu0 0.0
        %3062 = vmatprep.subr.mxu0 0.0
        %3063 = vmatpush2.msra.mxu0 0.0
        %3064 = vmatprep.subr.mxu0 0.0
        %3065 = vmatpush2.msra.mxu0 0.0
        %3066 = vmatprep.subr.mxu0 0.0
        %3067 = vmatpush2.msra.mxu0 0.0
        %3068 = vmatprep.subr.mxu0 0.0
        %3069 = vmatpush2.msra.mxu0 0.0
        %3070 = vmatprep.subr.mxu0 0.0
        %3071 = vmatpush2.msra.mxu0 0.0
        %3072 = vmatprep.mubr.f32.mxu0 0.0
        %3073 = vmatmul.mubr.f32.gmra.mxu0 %v2936
        %v3074 = vpop.f32.mrf.mxu0
        %v3075 = vadd.f32 %v2902, %v3074
        %v3076 = vpop.f32.mrf.mxu0
        %3077 = vdwg.mxu0
        %3078 = vmatprep.subr.mxu0 0.0
        %3079 = vmatpush1.msra.mxu0 0.0
        %3080 = vmatprep.subr.mxu0 0.0
        %3081 = vmatpush1.msra.mxu0 0.0
        %3082 = vmatprep.subr.mxu0 0.0
        %3083 = vmatpush1.msra.mxu0 0.0
        %3084 = vmatprep.subr.mxu0 0.0
        %3085 = vmatpush1.msra.mxu0 0.0
        %3086 = vmatprep.subr.mxu0 0.0
        %3087 = vmatpush1.msra.mxu0 0.0
        %3088 = vmatprep.subr.mxu0 0.0
        %3089 = vmatpush1.msra.mxu0 0.0
        %3090 = vmatprep.subr.mxu0 0.0
        %3091 = vmatpush1.msra.mxu0 0.0
        %3092 = vmatprep.subr.mxu0 0.0
        %3093 = vmatpush1.msra.mxu0 0.0
        %3094 = vmatprep.subr.mxu0 0.0
        %3095 = vmatpush1.msra.mxu0 0.0
        %3096 = vmatprep.subr.mxu0 0.0
        %3097 = vmatpush1.msra.mxu0 0.0
        %3098 = vmatprep.subr.mxu0 0.0
        %3099 = vmatpush1.msra.mxu0 0.0
        %3100 = vmatprep.subr.mxu0 0.0
        %3101 = vmatpush1.msra.mxu0 0.0
        %3102 = vmatprep.subr.mxu0 0.0
        %3103 = vmatpush1.msra.mxu0 %v2858
        %3104 = vmatprep.subr.mxu0 0.0
        %3105 = vmatpush1.msra.mxu0 %v2857
        %3106 = vmatprep.subr.mxu0 0.0
        %3107 = vmatpush1.msra.mxu0 %v2856
        %3108 = vmatprep.subr.mxu0 0.0
        %3109 = vmatpush1.msra.mxu0 %v2855
        %3110 = vmatprep.subr.mxu0 0.0
        %3111 = vmatpush2.msra.mxu0 0.0
        %3112 = vmatprep.subr.mxu0 0.0
        %3113 = vmatpush2.msra.mxu0 0.0
        %3114 = vmatprep.subr.mxu0 0.0
        %3115 = vmatpush2.msra.mxu0 0.0
        %3116 = vmatprep.subr.mxu0 0.0
        %3117 = vmatpush2.msra.mxu0 0.0
        %3118 = vmatprep.subr.mxu0 0.0
        %3119 = vmatpush2.msra.mxu0 0.0
        %3120 = vmatprep.subr.mxu0 0.0
        %3121 = vmatpush2.msra.mxu0 0.0
        %3122 = vmatprep.subr.mxu0 0.0
        %3123 = vmatpush2.msra.mxu0 0.0
        %3124 = vmatprep.subr.mxu0 0.0
        %3125 = vmatpush2.msra.mxu0 0.0
        %3126 = vmatprep.subr.mxu0 0.0
        %3127 = vmatpush2.msra.mxu0 0.0
        %3128 = vmatprep.subr.mxu0 0.0
        %3129 = vmatpush2.msra.mxu0 0.0
        %3130 = vmatprep.subr.mxu0 0.0
        %3131 = vmatpush2.msra.mxu0 0.0
        %3132 = vmatprep.subr.mxu0 0.0
        %3133 = vmatpush2.msra.mxu0 0.0
        %3134 = vmatprep.subr.mxu0 0.0
        %3135 = vmatpush2.msra.mxu0 0.0
        %3136 = vmatprep.subr.mxu0 0.0
        %3137 = vmatpush2.msra.mxu0 0.0
        %3138 = vmatprep.subr.mxu0 0.0
        %3139 = vmatpush2.msra.mxu0 0.0
        %3140 = vmatprep.subr.mxu0 0.0
        %3141 = vmatpush2.msra.mxu0 0.0
        %3142 = vmatprep.mubr.f32.mxu0 0.0
        %3143 = vmatmul.mubr.f32.gmra.mxu0 %v2936
        %v3144 = vpop.f32.mrf.mxu0
        %v3145 = vadd.f32 %v2906, %v3144
        %v3146 = vpop.f32.mrf.mxu0
        %3147 = vdwg.mxu0
        %3148 = vmatprep.subr.mxu0 0.0
        %3149 = vmatpush1.msra.mxu0 0.0
        %3150 = vmatprep.subr.mxu0 0.0
        %3151 = vmatpush1.msra.mxu0 0.0
        %3152 = vmatprep.subr.mxu0 0.0
        %3153 = vmatpush1.msra.mxu0 0.0
        %3154 = vmatprep.subr.mxu0 0.0
        %3155 = vmatpush1.msra.mxu0 0.0
        %3156 = vmatprep.subr.mxu0 0.0
        %3157 = vmatpush1.msra.mxu0 0.0
        %3158 = vmatprep.subr.mxu0 0.0
        %3159 = vmatpush1.msra.mxu0 0.0
        %3160 = vmatprep.subr.mxu0 0.0
        %3161 = vmatpush1.msra.mxu0 0.0
        %3162 = vmatprep.subr.mxu0 0.0
        %3163 = vmatpush1.msra.mxu0 0.0
        %3164 = vmatprep.subr.mxu0 0.0
        %3165 = vmatpush1.msra.mxu0 0.0
        %3166 = vmatprep.subr.mxu0 0.0
        %3167 = vmatpush1.msra.mxu0 0.0
        %3168 = vmatprep.subr.mxu0 0.0
        %3169 = vmatpush1.msra.mxu0 0.0
        %3170 = vmatprep.subr.mxu0 0.0
        %3171 = vmatpush1.msra.mxu0 0.0
        %3172 = vmatprep.subr.mxu0 0.0
        %3173 = vmatpush1.msra.mxu0 %v2862
        %3174 = vmatprep.subr.mxu0 0.0
        %3175 = vmatpush1.msra.mxu0 %v2861
        %3176 = vmatprep.subr.mxu0 0.0
        %3177 = vmatpush1.msra.mxu0 %v2860
        %3178 = vmatprep.subr.mxu0 0.0
        %3179 = vmatpush1.msra.mxu0 %v2859
        %3180 = vmatprep.subr.mxu0 0.0
        %3181 = vmatpush2.msra.mxu0 0.0
        %3182 = vmatprep.subr.mxu0 0.0
        %3183 = vmatpush2.msra.mxu0 0.0
        %3184 = vmatprep.subr.mxu0 0.0
        %3185 = vmatpush2.msra.mxu0 0.0
        %3186 = vmatprep.subr.mxu0 0.0
        %3187 = vmatpush2.msra.mxu0 0.0
        %3188 = vmatprep.subr.mxu0 0.0
        %3189 = vmatpush2.msra.mxu0 0.0
        %3190 = vmatprep.subr.mxu0 0.0
        %3191 = vmatpush2.msra.mxu0 0.0
        %3192 = vmatprep.subr.mxu0 0.0
        %3193 = vmatpush2.msra.mxu0 0.0
        %3194 = vmatprep.subr.mxu0 0.0
        %3195 = vmatpush2.msra.mxu0 0.0
        %3196 = vmatprep.subr.mxu0 0.0
        %3197 = vmatpush2.msra.mxu0 0.0
        %3198 = vmatprep.subr.mxu0 0.0
        %3199 = vmatpush2.msra.mxu0 0.0
        %3200 = vmatprep.subr.mxu0 0.0
        %3201 = vmatpush2.msra.mxu0 0.0
        %3202 = vmatprep.subr.mxu0 0.0
        %3203 = vmatpush2.msra.mxu0 0.0
        %3204 = vmatprep.subr.mxu0 0.0
        %3205 = vmatpush2.msra.mxu0 0.0
        %3206 = vmatprep.subr.mxu0 0.0
        %3207 = vmatpush2.msra.mxu0 0.0
        %3208 = vmatprep.subr.mxu0 0.0
        %3209 = vmatpush2.msra.mxu0 0.0
        %3210 = vmatprep.subr.mxu0 0.0
        %3211 = vmatpush2.msra.mxu0 0.0
        %3212 = vmatprep.mubr.f32.mxu0 0.0
        %3213 = vmatmul.mubr.f32.gmra.mxu0 %v2936
        %v3214 = vpop.f32.mrf.mxu0
        %v3215 = vadd.f32 %v2910, %v3214
        %v3216 = vpop.f32.mrf.mxu0
        %3217 = vdwg.mxu0
        %3218 = vmatprep.subr.mxu0 0.0
        %3219 = vmatpush1.msra.mxu0 0.0
        %3220 = vmatprep.subr.mxu0 0.0
        %3221 = vmatpush1.msra.mxu0 0.0
        %3222 = vmatprep.subr.mxu0 0.0
        %3223 = vmatpush1.msra.mxu0 0.0
        %3224 = vmatprep.subr.mxu0 0.0
        %3225 = vmatpush1.msra.mxu0 0.0
        %3226 = vmatprep.subr.mxu0 0.0
        %3227 = vmatpush1.msra.mxu0 0.0
        %3228 = vmatprep.subr.mxu0 0.0
        %3229 = vmatpush1.msra.mxu0 0.0
        %3230 = vmatprep.subr.mxu0 0.0
        %3231 = vmatpush1.msra.mxu0 0.0
        %3232 = vmatprep.subr.mxu0 0.0
        %3233 = vmatpush1.msra.mxu0 0.0
        %3234 = vmatprep.subr.mxu0 0.0
        %3235 = vmatpush1.msra.mxu0 0.0
        %3236 = vmatprep.subr.mxu0 0.0
        %3237 = vmatpush1.msra.mxu0 0.0
        %3238 = vmatprep.subr.mxu0 0.0
        %3239 = vmatpush1.msra.mxu0 0.0
        %3240 = vmatprep.subr.mxu0 0.0
        %3241 = vmatpush1.msra.mxu0 0.0
        %3242 = vmatprep.subr.mxu0 0.0
        %3243 = vmatpush1.msra.mxu0 %v2866
        %3244 = vmatprep.subr.mxu0 0.0
        %3245 = vmatpush1.msra.mxu0 %v2865
        %3246 = vmatprep.subr.mxu0 0.0
        %3247 = vmatpush1.msra.mxu0 %v2864
        %3248 = vmatprep.subr.mxu0 0.0
        %3249 = vmatpush1.msra.mxu0 %v2863
        %3250 = vmatprep.subr.mxu0 0.0
        %3251 = vmatpush2.msra.mxu0 0.0
        %3252 = vmatprep.subr.mxu0 0.0
        %3253 = vmatpush2.msra.mxu0 0.0
        %3254 = vmatprep.subr.mxu0 0.0
        %3255 = vmatpush2.msra.mxu0 0.0
        %3256 = vmatprep.subr.mxu0 0.0
        %3257 = vmatpush2.msra.mxu0 0.0
        %3258 = vmatprep.subr.mxu0 0.0
        %3259 = vmatpush2.msra.mxu0 0.0
        %3260 = vmatprep.subr.mxu0 0.0
        %3261 = vmatpush2.msra.mxu0 0.0
        %3262 = vmatprep.subr.mxu0 0.0
        %3263 = vmatpush2.msra.mxu0 0.0
        %3264 = vmatprep.subr.mxu0 0.0
        %3265 = vmatpush2.msra.mxu0 0.0
        %3266 = vmatprep.subr.mxu0 0.0
        %3267 = vmatpush2.msra.mxu0 0.0
        %3268 = vmatprep.subr.mxu0 0.0
        %3269 = vmatpush2.msra.mxu0 0.0
        %3270 = vmatprep.subr.mxu0 0.0
        %3271 = vmatpush2.msra.mxu0 0.0
        %3272 = vmatprep.subr.mxu0 0.0
        %3273 = vmatpush2.msra.mxu0 0.0
        %3274 = vmatprep.subr.mxu0 0.0
        %3275 = vmatpush2.msra.mxu0 0.0
        %3276 = vmatprep.subr.mxu0 0.0
        %3277 = vmatpush2.msra.mxu0 0.0
        %3278 = vmatprep.subr.mxu0 0.0
        %3279 = vmatpush2.msra.mxu0 0.0
        %3280 = vmatprep.subr.mxu0 0.0
        %3281 = vmatpush2.msra.mxu0 0.0
        %3282 = vmatprep.mubr.f32.mxu0 0.0
        %3283 = vmatmul.mubr.f32.gmra.mxu0 %v2936
        %v3284 = vpop.f32.mrf.mxu0
        %v3285 = vadd.f32 %v2914, %v3284
        %v3286 = vpop.f32.mrf.mxu0
        %3287 = vdwg.mxu0
        %3288 = vmatprep.subr.mxu0 0.0
        %3289 = vmatpush1.msra.mxu0 0.0
        %3290 = vmatprep.subr.mxu0 0.0
        %3291 = vmatpush1.msra.mxu0 0.0
        %3292 = vmatprep.subr.mxu0 0.0
        %3293 = vmatpush1.msra.mxu0 0.0
        %3294 = vmatprep.subr.mxu0 0.0
        %3295 = vmatpush1.msra.mxu0 0.0
        %3296 = vmatprep.subr.mxu0 0.0
        %3297 = vmatpush1.msra.mxu0 0.0
        %3298 = vmatprep.subr.mxu0 0.0
        %3299 = vmatpush1.msra.mxu0 0.0
        %3300 = vmatprep.subr.mxu0 0.0
        %3301 = vmatpush1.msra.mxu0 0.0
        %3302 = vmatprep.subr.mxu0 0.0
        %3303 = vmatpush1.msra.mxu0 0.0
        %3304 = vmatprep.subr.mxu0 0.0
        %3305 = vmatpush1.msra.mxu0 0.0
        %3306 = vmatprep.subr.mxu0 0.0
        %3307 = vmatpush1.msra.mxu0 0.0
        %3308 = vmatprep.subr.mxu0 0.0
        %3309 = vmatpush1.msra.mxu0 0.0
        %3310 = vmatprep.subr.mxu0 0.0
        %3311 = vmatpush1.msra.mxu0 0.0
        %3312 = vmatprep.subr.mxu0 0.0
        %3313 = vmatpush1.msra.mxu0 %v2870
        %3314 = vmatprep.subr.mxu0 0.0
        %3315 = vmatpush1.msra.mxu0 %v2869
        %3316 = vmatprep.subr.mxu0 0.0
        %3317 = vmatpush1.msra.mxu0 %v2868
        %3318 = vmatprep.subr.mxu0 0.0
        %3319 = vmatpush1.msra.mxu0 %v2867
        %3320 = vmatprep.subr.mxu0 0.0
        %3321 = vmatpush2.msra.mxu0 0.0
        %3322 = vmatprep.subr.mxu0 0.0
        %3323 = vmatpush2.msra.mxu0 0.0
        %3324 = vmatprep.subr.mxu0 0.0
        %3325 = vmatpush2.msra.mxu0 0.0
        %3326 = vmatprep.subr.mxu0 0.0
        %3327 = vmatpush2.msra.mxu0 0.0
        %3328 = vmatprep.subr.mxu0 0.0
        %3329 = vmatpush2.msra.mxu0 0.0
        %3330 = vmatprep.subr.mxu0 0.0
        %3331 = vmatpush2.msra.mxu0 0.0
        %3332 = vmatprep.subr.mxu0 0.0
        %3333 = vmatpush2.msra.mxu0 0.0
        %3334 = vmatprep.subr.mxu0 0.0
        %3335 = vmatpush2.msra.mxu0 0.0
        %3336 = vmatprep.subr.mxu0 0.0
        %3337 = vmatpush2.msra.mxu0 0.0
        %3338 = vmatprep.subr.mxu0 0.0
        %3339 = vmatpush2.msra.mxu0 0.0
        %3340 = vmatprep.subr.mxu0 0.0
        %3341 = vmatpush2.msra.mxu0 0.0
        %3342 = vmatprep.subr.mxu0 0.0
        %3343 = vmatpush2.msra.mxu0 0.0
        %3344 = vmatprep.subr.mxu0 0.0
        %3345 = vmatpush2.msra.mxu0 0.0
        %3346 = vmatprep.subr.mxu0 0.0
        %3347 = vmatpush2.msra.mxu0 0.0
        %3348 = vmatprep.subr.mxu0 0.0
        %3349 = vmatpush2.msra.mxu0 0.0
        %3350 = vmatprep.subr.mxu0 0.0
        %3351 = vmatpush2.msra.mxu0 0.0
        %3352 = vmatprep.mubr.f32.mxu0 0.0
        %3353 = vmatmul.mubr.f32.gmra.mxu0 %v2936
        %v3354 = vpop.f32.mrf.mxu0
        %v3355 = vadd.f32 %v2918, %v3354
        %v3356 = vpop.f32.mrf.mxu0
        %3357 = vdwg.mxu0
        %3358 = vmatprep.subr.mxu0 0.0
        %3359 = vmatpush1.msra.mxu0 0.0
        %3360 = vmatprep.subr.mxu0 0.0
        %3361 = vmatpush1.msra.mxu0 0.0
        %3362 = vmatprep.subr.mxu0 0.0
        %3363 = vmatpush1.msra.mxu0 0.0
        %3364 = vmatprep.subr.mxu0 0.0
        %3365 = vmatpush1.msra.mxu0 0.0
        %3366 = vmatprep.subr.mxu0 0.0
        %3367 = vmatpush1.msra.mxu0 0.0
        %3368 = vmatprep.subr.mxu0 0.0
        %3369 = vmatpush1.msra.mxu0 0.0
        %3370 = vmatprep.subr.mxu0 0.0
        %3371 = vmatpush1.msra.mxu0 0.0
        %3372 = vmatprep.subr.mxu0 0.0
        %3373 = vmatpush1.msra.mxu0 0.0
        %3374 = vmatprep.subr.mxu0 0.0
        %3375 = vmatpush1.msra.mxu0 0.0
        %3376 = vmatprep.subr.mxu0 0.0
        %3377 = vmatpush1.msra.mxu0 0.0
        %3378 = vmatprep.subr.mxu0 0.0
        %3379 = vmatpush1.msra.mxu0 0.0
        %3380 = vmatprep.subr.mxu0 0.0
        %3381 = vmatpush1.msra.mxu0 0.0
        %3382 = vmatprep.subr.mxu0 0.0
        %3383 = vmatpush1.msra.mxu0 %v2874
        %3384 = vmatprep.subr.mxu0 0.0
        %3385 = vmatpush1.msra.mxu0 %v2873
        %3386 = vmatprep.subr.mxu0 0.0
        %3387 = vmatpush1.msra.mxu0 %v2872
        %3388 = vmatprep.subr.mxu0 0.0
        %3389 = vmatpush1.msra.mxu0 %v2871
        %3390 = vmatprep.subr.mxu0 0.0
        %3391 = vmatpush2.msra.mxu0 0.0
        %3392 = vmatprep.subr.mxu0 0.0
        %3393 = vmatpush2.msra.mxu0 0.0
        %3394 = vmatprep.subr.mxu0 0.0
        %3395 = vmatpush2.msra.mxu0 0.0
        %3396 = vmatprep.subr.mxu0 0.0
        %3397 = vmatpush2.msra.mxu0 0.0
        %3398 = vmatprep.subr.mxu0 0.0
        %3399 = vmatpush2.msra.mxu0 0.0
        %3400 = vmatprep.subr.mxu0 0.0
        %3401 = vmatpush2.msra.mxu0 0.0
        %3402 = vmatprep.subr.mxu0 0.0
        %3403 = vmatpush2.msra.mxu0 0.0
        %3404 = vmatprep.subr.mxu0 0.0
        %3405 = vmatpush2.msra.mxu0 0.0
        %3406 = vmatprep.subr.mxu0 0.0
        %3407 = vmatpush2.msra.mxu0 0.0
        %3408 = vmatprep.subr.mxu0 0.0
        %3409 = vmatpush2.msra.mxu0 0.0
        %3410 = vmatprep.subr.mxu0 0.0
        %3411 = vmatpush2.msra.mxu0 0.0
        %3412 = vmatprep.subr.mxu0 0.0
        %3413 = vmatpush2.msra.mxu0 0.0
        %3414 = vmatprep.subr.mxu0 0.0
        %3415 = vmatpush2.msra.mxu0 0.0
        %3416 = vmatprep.subr.mxu0 0.0
        %3417 = vmatpush2.msra.mxu0 0.0
        %3418 = vmatprep.subr.mxu0 0.0
        %3419 = vmatpush2.msra.mxu0 0.0
        %3420 = vmatprep.subr.mxu0 0.0
        %3421 = vmatpush2.msra.mxu0 0.0
        %3422 = vmatprep.mubr.f32.mxu0 0.0
        %3423 = vmatmul.mubr.f32.gmra.mxu0 %v2936
        %v3424 = vpop.f32.mrf.mxu0
        %v3425 = vadd.f32 %v2922, %v3424
        %v3426 = vpop.f32.mrf.mxu0
        %3427 = vdwg.mxu0
        %3428 = vmatprep.subr.mxu0 0.0
        %3429 = vmatpush1.msra.mxu0 0.0
        %3430 = vmatprep.subr.mxu0 0.0
        %3431 = vmatpush1.msra.mxu0 0.0
        %3432 = vmatprep.subr.mxu0 0.0
        %3433 = vmatpush1.msra.mxu0 0.0
        %3434 = vmatprep.subr.mxu0 0.0
        %3435 = vmatpush1.msra.mxu0 0.0
        %3436 = vmatprep.subr.mxu0 0.0
        %3437 = vmatpush1.msra.mxu0 0.0
        %3438 = vmatprep.subr.mxu0 0.0
        %3439 = vmatpush1.msra.mxu0 0.0
        %3440 = vmatprep.subr.mxu0 0.0
        %3441 = vmatpush1.msra.mxu0 0.0
        %3442 = vmatprep.subr.mxu0 0.0
        %3443 = vmatpush1.msra.mxu0 0.0
        %3444 = vmatprep.subr.mxu0 0.0
        %3445 = vmatpush1.msra.mxu0 0.0
        %3446 = vmatprep.subr.mxu0 0.0
        %3447 = vmatpush1.msra.mxu0 0.0
        %3448 = vmatprep.subr.mxu0 0.0
        %3449 = vmatpush1.msra.mxu0 0.0
        %3450 = vmatprep.subr.mxu0 0.0
        %3451 = vmatpush1.msra.mxu0 0.0
        %3452 = vmatprep.subr.mxu0 0.0
        %3453 = vmatpush1.msra.mxu0 %v2878
        %3454 = vmatprep.subr.mxu0 0.0
        %3455 = vmatpush1.msra.mxu0 %v2877
        %3456 = vmatprep.subr.mxu0 0.0
        %3457 = vmatpush1.msra.mxu0 %v2876
        %3458 = vmatprep.subr.mxu0 0.0
        %3459 = vmatpush1.msra.mxu0 %v2875
        %3460 = vmatprep.subr.mxu0 0.0
        %3461 = vmatpush2.msra.mxu0 0.0
        %3462 = vmatprep.subr.mxu0 0.0
        %3463 = vmatpush2.msra.mxu0 0.0
        %3464 = vmatprep.subr.mxu0 0.0
        %3465 = vmatpush2.msra.mxu0 0.0
        %3466 = vmatprep.subr.mxu0 0.0
        %3467 = vmatpush2.msra.mxu0 0.0
        %3468 = vmatprep.subr.mxu0 0.0
        %3469 = vmatpush2.msra.mxu0 0.0
        %3470 = vmatprep.subr.mxu0 0.0
        %3471 = vmatpush2.msra.mxu0 0.0
        %3472 = vmatprep.subr.mxu0 0.0
        %3473 = vmatpush2.msra.mxu0 0.0
        %3474 = vmatprep.subr.mxu0 0.0
        %3475 = vmatpush2.msra.mxu0 0.0
        %3476 = vmatprep.subr.mxu0 0.0
        %3477 = vmatpush2.msra.mxu0 0.0
        %3478 = vmatprep.subr.mxu0 0.0
        %3479 = vmatpush2.msra.mxu0 0.0
        %3480 = vmatprep.subr.mxu0 0.0
        %3481 = vmatpush2.msra.mxu0 0.0
        %3482 = vmatprep.subr.mxu0 0.0
        %3483 = vmatpush2.msra.mxu0 0.0
        %3484 = vmatprep.subr.mxu0 0.0
        %3485 = vmatpush2.msra.mxu0 0.0
        %3486 = vmatprep.subr.mxu0 0.0
        %3487 = vmatpush2.msra.mxu0 0.0
        %3488 = vmatprep.subr.mxu0 0.0
        %3489 = vmatpush2.msra.mxu0 0.0
        %3490 = vmatprep.subr.mxu0 0.0
        %3491 = vmatpush2.msra.mxu0 0.0
        %3492 = vmatprep.mubr.f32.mxu0 0.0
        %3493 = vmatmul.mubr.f32.gmra.mxu0 %v2936
        %v3494 = vpop.f32.mrf.mxu0
        %v3495 = vadd.f32 %v2926, %v3494
        %v3496 = vpop.f32.mrf.mxu0
        %3497 = vdwg.mxu0
        %v3498 = vld [vmem:[%s11] sm:$0xff]
        %v3499 = vld [vmem:[%s11 + $0x8] sm:$0xff]
        %v3500 = vld [vmem:[%s11 + $0x10] sm:$0xff]
        %v3501 = vld [vmem:[%s11 + $0x18] sm:$0xff]
        %v3503 = vsel %vm1542, %v2634, 0
        %v3506 = vsel %vm1542, %v3005, 0
        %3508 = vmatprep.subr.mxu0 0.0
        %3509 = vmatpush1.xpose.msra.mxu0 0.0
        %3510 = vmatprep.subr.mxu0 0.0
        %3511 = vmatpush1.xpose.msra.mxu0 0.0
        %3512 = vmatprep.subr.mxu0 0.0
        %3513 = vmatpush1.xpose.msra.mxu0 0.0
        %3514 = vmatprep.subr.mxu0 0.0
        %3515 = vmatpush1.xpose.msra.mxu0 0.0
        %3516 = vmatprep.subr.mxu0 0.0
        %3517 = vmatpush1.xpose.msra.mxu0 0.0
        %3518 = vmatprep.subr.mxu0 0.0
        %3519 = vmatpush1.xpose.msra.mxu0 0.0
        %3520 = vmatprep.subr.mxu0 0.0
        %3521 = vmatpush1.xpose.msra.mxu0 0.0
        %3522 = vmatprep.subr.mxu0 0.0
        %3523 = vmatpush1.xpose.msra.mxu0 0.0
        %3524 = vmatprep.subr.mxu0 0.0
        %3525 = vmatpush1.xpose.msra.mxu0 0.0
        %3526 = vmatprep.subr.mxu0 0.0
        %3527 = vmatpush1.xpose.msra.mxu0 0.0
        %3528 = vmatprep.subr.mxu0 0.0
        %3529 = vmatpush1.xpose.msra.mxu0 0.0
        %3530 = vmatprep.subr.mxu0 0.0
        %3531 = vmatpush1.xpose.msra.mxu0 0.0
        %3532 = vmatprep.subr.mxu0 0.0
        %3533 = vmatpush1.xpose.msra.mxu0 0.0
        %3534 = vmatprep.subr.mxu0 0.0
        %3535 = vmatpush1.xpose.msra.mxu0 0.0
        %3536 = vmatprep.subr.mxu0 0.0
        %3537 = vmatpush1.xpose.msra.mxu0 0.0
        %3538 = vmatprep.subr.mxu0 0.0
        %3539 = vmatpush1.xpose.msra.mxu0 %v3506
        %3540 = vmatprep.subr.mxu0 0.0
        %3541 = vmatpush2.xpose.msra.mxu0 0.0
        %3542 = vmatprep.subr.mxu0 0.0
        %3543 = vmatpush2.xpose.msra.mxu0 0.0
        %3544 = vmatprep.subr.mxu0 0.0
        %3545 = vmatpush2.xpose.msra.mxu0 0.0
        %3546 = vmatprep.subr.mxu0 0.0
        %3547 = vmatpush2.xpose.msra.mxu0 0.0
        %3548 = vmatprep.subr.mxu0 0.0
        %3549 = vmatpush2.xpose.msra.mxu0 0.0
        %3550 = vmatprep.subr.mxu0 0.0
        %3551 = vmatpush2.xpose.msra.mxu0 0.0
        %3552 = vmatprep.subr.mxu0 0.0
        %3553 = vmatpush2.xpose.msra.mxu0 0.0
        %3554 = vmatprep.subr.mxu0 0.0
        %3555 = vmatpush2.xpose.msra.mxu0 0.0
        %3556 = vmatprep.subr.mxu0 0.0
        %3557 = vmatpush2.xpose.msra.mxu0 0.0
        %3558 = vmatprep.subr.mxu0 0.0
        %3559 = vmatpush2.xpose.msra.mxu0 0.0
        %3560 = vmatprep.subr.mxu0 0.0
        %3561 = vmatpush2.xpose.msra.mxu0 0.0
        %3562 = vmatprep.subr.mxu0 0.0
        %3563 = vmatpush2.xpose.msra.mxu0 0.0
        %3564 = vmatprep.subr.mxu0 0.0
        %3565 = vmatpush2.xpose.msra.mxu0 0.0
        %3566 = vmatprep.subr.mxu0 0.0
        %3567 = vmatpush2.xpose.msra.mxu0 0.0
        %3568 = vmatprep.subr.mxu0 0.0
        %3569 = vmatpush2.xpose.msra.mxu0 0.0
        %3570 = vmatprep.subr.mxu0 0.0
        %3571 = vmatpush2.xpose.msra.mxu0 0.0
        %3572 = vmatprep.mubr.f32.mxu0 0.0
        %3573 = vmatmul.mubr.f32.gmra.mxu0 %v3503
        %v3574 = vpop.f32.mrf.mxu0
        %v3575 = vadd.f32 0.0, %v3574
        %v3576 = vpop.f32.mrf.mxu0
        %3577 = vdwg.mxu0
        %v3579 = vsel %vm1542, %v2704, 0
        %v3582 = vsel %vm1542, %v3075, 0
        %3584 = vmatprep.subr.mxu0 0.0
        %3585 = vmatpush1.xpose.msra.mxu0 0.0
        %3586 = vmatprep.subr.mxu0 0.0
        %3587 = vmatpush1.xpose.msra.mxu0 0.0
        %3588 = vmatprep.subr.mxu0 0.0
        %3589 = vmatpush1.xpose.msra.mxu0 0.0
        %3590 = vmatprep.subr.mxu0 0.0
        %3591 = vmatpush1.xpose.msra.mxu0 0.0
        %3592 = vmatprep.subr.mxu0 0.0
        %3593 = vmatpush1.xpose.msra.mxu0 0.0
        %3594 = vmatprep.subr.mxu0 0.0
        %3595 = vmatpush1.xpose.msra.mxu0 0.0
        %3596 = vmatprep.subr.mxu0 0.0
        %3597 = vmatpush1.xpose.msra.mxu0 0.0
        %3598 = vmatprep.subr.mxu0 0.0
        %3599 = vmatpush1.xpose.msra.mxu0 0.0
        %3600 = vmatprep.subr.mxu0 0.0
        %3601 = vmatpush1.xpose.msra.mxu0 0.0
        %3602 = vmatprep.subr.mxu0 0.0
        %3603 = vmatpush1.xpose.msra.mxu0 0.0
        %3604 = vmatprep.subr.mxu0 0.0
        %3605 = vmatpush1.xpose.msra.mxu0 0.0
        %3606 = vmatprep.subr.mxu0 0.0
        %3607 = vmatpush1.xpose.msra.mxu0 0.0
        %3608 = vmatprep.subr.mxu0 0.0
        %3609 = vmatpush1.xpose.msra.mxu0 0.0
        %3610 = vmatprep.subr.mxu0 0.0
        %3611 = vmatpush1.xpose.msra.mxu0 0.0
        %3612 = vmatprep.subr.mxu0 0.0
        %3613 = vmatpush1.xpose.msra.mxu0 0.0
        %3614 = vmatprep.subr.mxu0 0.0
        %3615 = vmatpush1.xpose.msra.mxu0 %v3582
        %3616 = vmatprep.subr.mxu0 0.0
        %3617 = vmatpush2.xpose.msra.mxu0 0.0
        %3618 = vmatprep.subr.mxu0 0.0
        %3619 = vmatpush2.xpose.msra.mxu0 0.0
        %3620 = vmatprep.subr.mxu0 0.0
        %3621 = vmatpush2.xpose.msra.mxu0 0.0
        %3622 = vmatprep.subr.mxu0 0.0
        %3623 = vmatpush2.xpose.msra.mxu0 0.0
        %3624 = vmatprep.subr.mxu0 0.0
        %3625 = vmatpush2.xpose.msra.mxu0 0.0
        %3626 = vmatprep.subr.mxu0 0.0
        %3627 = vmatpush2.xpose.msra.mxu0 0.0
        %3628 = vmatprep.subr.mxu0 0.0
        %3629 = vmatpush2.xpose.msra.mxu0 0.0
        %3630 = vmatprep.subr.mxu0 0.0
        %3631 = vmatpush2.xpose.msra.mxu0 0.0
        %3632 = vmatprep.subr.mxu0 0.0
        %3633 = vmatpush2.xpose.msra.mxu0 0.0
        %3634 = vmatprep.subr.mxu0 0.0
        %3635 = vmatpush2.xpose.msra.mxu0 0.0
        %3636 = vmatprep.subr.mxu0 0.0
        %3637 = vmatpush2.xpose.msra.mxu0 0.0
        %3638 = vmatprep.subr.mxu0 0.0
        %3639 = vmatpush2.xpose.msra.mxu0 0.0
        %3640 = vmatprep.subr.mxu0 0.0
        %3641 = vmatpush2.xpose.msra.mxu0 0.0
        %3642 = vmatprep.subr.mxu0 0.0
        %3643 = vmatpush2.xpose.msra.mxu0 0.0
        %3644 = vmatprep.subr.mxu0 0.0
        %3645 = vmatpush2.xpose.msra.mxu0 0.0
        %3646 = vmatprep.subr.mxu0 0.0
        %3647 = vmatpush2.xpose.msra.mxu0 0.0
        %3648 = vmatprep.mubr.f32.mxu0 0.0
        %3649 = vmatmul.mubr.f32.gmra.mxu0 %v3579
        %v3650 = vpop.f32.mrf.mxu0
        %v3651 = vadd.f32 0.0, %v3650
        %v3652 = vpop.f32.mrf.mxu0
        %3653 = vdwg.mxu0
        %v3655 = vsel %vm1542, %v2774, 0
        %v3658 = vsel %vm1542, %v3145, 0
        %3660 = vmatprep.subr.mxu0 0.0
        %3661 = vmatpush1.xpose.msra.mxu0 0.0
        %3662 = vmatprep.subr.mxu0 0.0
        %3663 = vmatpush1.xpose.msra.mxu0 0.0
        %3664 = vmatprep.subr.mxu0 0.0
        %3665 = vmatpush1.xpose.msra.mxu0 0.0
        %3666 = vmatprep.subr.mxu0 0.0
        %3667 = vmatpush1.xpose.msra.mxu0 0.0
        %3668 = vmatprep.subr.mxu0 0.0
        %3669 = vmatpush1.xpose.msra.mxu0 0.0
        %3670 = vmatprep.subr.mxu0 0.0
        %3671 = vmatpush1.xpose.msra.mxu0 0.0
        %3672 = vmatprep.subr.mxu0 0.0
        %3673 = vmatpush1.xpose.msra.mxu0 0.0
        %3674 = vmatprep.subr.mxu0 0.0
        %3675 = vmatpush1.xpose.msra.mxu0 0.0
        %3676 = vmatprep.subr.mxu0 0.0
        %3677 = vmatpush1.xpose.msra.mxu0 0.0
        %3678 = vmatprep.subr.mxu0 0.0
        %3679 = vmatpush1.xpose.msra.mxu0 0.0
        %3680 = vmatprep.subr.mxu0 0.0
        %3681 = vmatpush1.xpose.msra.mxu0 0.0
        %3682 = vmatprep.subr.mxu0 0.0
        %3683 = vmatpush1.xpose.msra.mxu0 0.0
        %3684 = vmatprep.subr.mxu0 0.0
        %3685 = vmatpush1.xpose.msra.mxu0 0.0
        %3686 = vmatprep.subr.mxu0 0.0
        %3687 = vmatpush1.xpose.msra.mxu0 0.0
        %3688 = vmatprep.subr.mxu0 0.0
        %3689 = vmatpush1.xpose.msra.mxu0 0.0
        %3690 = vmatprep.subr.mxu0 0.0
        %3691 = vmatpush1.xpose.msra.mxu0 %v3658
        %3692 = vmatprep.subr.mxu0 0.0
        %3693 = vmatpush2.xpose.msra.mxu0 0.0
        %3694 = vmatprep.subr.mxu0 0.0
        %3695 = vmatpush2.xpose.msra.mxu0 0.0
        %3696 = vmatprep.subr.mxu0 0.0
        %3697 = vmatpush2.xpose.msra.mxu0 0.0
        %3698 = vmatprep.subr.mxu0 0.0
        %3699 = vmatpush2.xpose.msra.mxu0 0.0
        %3700 = vmatprep.subr.mxu0 0.0
        %3701 = vmatpush2.xpose.msra.mxu0 0.0
        %3702 = vmatprep.subr.mxu0 0.0
        %3703 = vmatpush2.xpose.msra.mxu0 0.0
        %3704 = vmatprep.subr.mxu0 0.0
        %3705 = vmatpush2.xpose.msra.mxu0 0.0
        %3706 = vmatprep.subr.mxu0 0.0
        %3707 = vmatpush2.xpose.msra.mxu0 0.0
        %3708 = vmatprep.subr.mxu0 0.0
        %3709 = vmatpush2.xpose.msra.mxu0 0.0
        %3710 = vmatprep.subr.mxu0 0.0
        %3711 = vmatpush2.xpose.msra.mxu0 0.0
        %3712 = vmatprep.subr.mxu0 0.0
        %3713 = vmatpush2.xpose.msra.mxu0 0.0
        %3714 = vmatprep.subr.mxu0 0.0
        %3715 = vmatpush2.xpose.msra.mxu0 0.0
        %3716 = vmatprep.subr.mxu0 0.0
        %3717 = vmatpush2.xpose.msra.mxu0 0.0
        %3718 = vmatprep.subr.mxu0 0.0
        %3719 = vmatpush2.xpose.msra.mxu0 0.0
        %3720 = vmatprep.subr.mxu0 0.0
        %3721 = vmatpush2.xpose.msra.mxu0 0.0
        %3722 = vmatprep.subr.mxu0 0.0
        %3723 = vmatpush2.xpose.msra.mxu0 0.0
        %3724 = vmatprep.mubr.f32.mxu0 0.0
        %3725 = vmatmul.mubr.f32.gmra.mxu0 %v3655
        %v3726 = vpop.f32.mrf.mxu0
        %v3727 = vadd.f32 0.0, %v3726
        %v3728 = vpop.f32.mrf.mxu0
        %3729 = vdwg.mxu0
        %v3731 = vsel %vm1542, %v2844, 0
        %v3734 = vsel %vm1542, %v3215, 0
        %3736 = vmatprep.subr.mxu0 0.0
        %3737 = vmatpush1.xpose.msra.mxu0 0.0
        %3738 = vmatprep.subr.mxu0 0.0
        %3739 = vmatpush1.xpose.msra.mxu0 0.0
        %3740 = vmatprep.subr.mxu0 0.0
        %3741 = vmatpush1.xpose.msra.mxu0 0.0
        %3742 = vmatprep.subr.mxu0 0.0
        %3743 = vmatpush1.xpose.msra.mxu0 0.0
        %3744 = vmatprep.subr.mxu0 0.0
        %3745 = vmatpush1.xpose.msra.mxu0 0.0
        %3746 = vmatprep.subr.mxu0 0.0
        %3747 = vmatpush1.xpose.msra.mxu0 0.0
        %3748 = vmatprep.subr.mxu0 0.0
        %3749 = vmatpush1.xpose.msra.mxu0 0.0
        %3750 = vmatprep.subr.mxu0 0.0
        %3751 = vmatpush1.xpose.msra.mxu0 0.0
        %3752 = vmatprep.subr.mxu0 0.0
        %3753 = vmatpush1.xpose.msra.mxu0 0.0
        %3754 = vmatprep.subr.mxu0 0.0
        %3755 = vmatpush1.xpose.msra.mxu0 0.0
        %3756 = vmatprep.subr.mxu0 0.0
        %3757 = vmatpush1.xpose.msra.mxu0 0.0
        %3758 = vmatprep.subr.mxu0 0.0
        %3759 = vmatpush1.xpose.msra.mxu0 0.0
        %3760 = vmatprep.subr.mxu0 0.0
        %3761 = vmatpush1.xpose.msra.mxu0 0.0
        %3762 = vmatprep.subr.mxu0 0.0
        %3763 = vmatpush1.xpose.msra.mxu0 0.0
        %3764 = vmatprep.subr.mxu0 0.0
        %3765 = vmatpush1.xpose.msra.mxu0 0.0
        %3766 = vmatprep.subr.mxu0 0.0
        %3767 = vmatpush1.xpose.msra.mxu0 %v3734
        %3768 = vmatprep.subr.mxu0 0.0
        %3769 = vmatpush2.xpose.msra.mxu0 0.0
        %3770 = vmatprep.subr.mxu0 0.0
        %3771 = vmatpush2.xpose.msra.mxu0 0.0
        %3772 = vmatprep.subr.mxu0 0.0
        %3773 = vmatpush2.xpose.msra.mxu0 0.0
        %3774 = vmatprep.subr.mxu0 0.0
        %3775 = vmatpush2.xpose.msra.mxu0 0.0
        %3776 = vmatprep.subr.mxu0 0.0
        %3777 = vmatpush2.xpose.msra.mxu0 0.0
        %3778 = vmatprep.subr.mxu0 0.0
        %3779 = vmatpush2.xpose.msra.mxu0 0.0
        %3780 = vmatprep.subr.mxu0 0.0
        %3781 = vmatpush2.xpose.msra.mxu0 0.0
        %3782 = vmatprep.subr.mxu0 0.0
        %3783 = vmatpush2.xpose.msra.mxu0 0.0
        %3784 = vmatprep.subr.mxu0 0.0
        %3785 = vmatpush2.xpose.msra.mxu0 0.0
        %3786 = vmatprep.subr.mxu0 0.0
        %3787 = vmatpush2.xpose.msra.mxu0 0.0
        %3788 = vmatprep.subr.mxu0 0.0
        %3789 = vmatpush2.xpose.msra.mxu0 0.0
        %3790 = vmatprep.subr.mxu0 0.0
        %3791 = vmatpush2.xpose.msra.mxu0 0.0
        %3792 = vmatprep.subr.mxu0 0.0
        %3793 = vmatpush2.xpose.msra.mxu0 0.0
        %3794 = vmatprep.subr.mxu0 0.0
        %3795 = vmatpush2.xpose.msra.mxu0 0.0
        %3796 = vmatprep.subr.mxu0 0.0
        %3797 = vmatpush2.xpose.msra.mxu0 0.0
        %3798 = vmatprep.subr.mxu0 0.0
        %3799 = vmatpush2.xpose.msra.mxu0 0.0
        %3800 = vmatprep.mubr.f32.mxu0 0.0
        %3801 = vmatmul.mubr.f32.gmra.mxu0 %v3731
        %v3802 = vpop.f32.mrf.mxu0
        %v3803 = vadd.f32 0.0, %v3802
        %v3804 = vpop.f32.mrf.mxu0
        %3805 = vdwg.mxu0
        %v3806 = vmul.f32 %v3575, 0.35355338
        %v3807 = vmul.f32 %v3651, 0.35355338
        %v3808 = vmul.f32 %v3727, 0.35355338
        %v3809 = vmul.f32 %v3803, 0.35355338
        %v3811 = vlaneseq
        %v3812 = vshrl.u32 %v3811, 7
        %v3813 = vsub.s32 0, %v3812
        %v3814 = vrot.slane %v551, %v3813
        %v3816 = vadd.f32 %v3806, %v3814
        %v3817 = vadd.f32 %v3807, %v3814
        %v3818 = vadd.f32 %v3808, %v3814
        %v3819 = vadd.f32 %v3809, %v3814
        %v3820 = vsel %vm1542, %v3816, -inf
        %3821 = vmax.xlane.f32.xlu0 %v3820
        %v3822 = vpop.xlane.xlu0 %3821
        %v3823 = vsel %vm1542, %v3817, -inf
        %3824 = vmax.xlane.f32.xlu0 %v3823
        %v3825 = vpop.xlane.xlu0 %3824
        %v3826 = vsel %vm1542, %v3818, -inf
        %3827 = vmax.xlane.f32.xlu0 %v3826
        %v3828 = vpop.xlane.xlu0 %3827
        %v3829 = vsel %vm1542, %v3819, -inf
        %3830 = vmax.xlane.f32.xlu0 %v3829
        %v3831 = vpop.xlane.xlu0 %3830
        %v3832 = vsub.f32 %v3816, %v3822
        %v3833 = vsub.f32 %v3817, %v3825
        %v3834 = vsub.f32 %v3818, %v3828
        %v3835 = vsub.f32 %v3819, %v3831
        %v3836 = vmul.f32 %v3832, 1.442695
        %v3837 = vpow.pop %v3836
        %v3838 = vmul.f32 %v3833, 1.442695
        %v3839 = vpow.pop %v3838
        %v3840 = vmul.f32 %v3834, 1.442695
        %v3841 = vpow.pop %v3840
        %v3842 = vmul.f32 %v3835, 1.442695
        %v3843 = vpow.pop %v3842
        %v3844 = vsel %vm1542, %v3837, 0.0
        %3845 = vadd.xlane.f32.xlu0 %v3844
        %v3846 = vpop.xlane.xlu0 %3845
        %v3847 = vsel %vm1542, %v3839, 0.0
        %3848 = vadd.xlane.f32.xlu0 %v3847
        %v3849 = vpop.xlane.xlu0 %3848
        %v3850 = vsel %vm1542, %v3841, 0.0
        %3851 = vadd.xlane.f32.xlu0 %v3850
        %v3852 = vpop.xlane.xlu0 %3851
        %v3853 = vsel %vm1542, %v3843, 0.0
        %3854 = vadd.xlane.f32.xlu0 %v3853
        %v3855 = vpop.xlane.xlu0 %3854
        %v3856 = vrcp.pop %v3846
        %v3857 = vrcp.pop %v3849
        %v3858 = vrcp.pop %v3852
        %v3859 = vrcp.pop %v3855
        %v3860 = vmul.f32 %v3837, %v3856
        %v3861 = vmul.f32 %v3839, %v3857
        %v3862 = vmul.f32 %v3841, %v3858
        %v3863 = vmul.f32 %v3843, %v3859
        %v3865 = vsel %vm1542, %v3860, 0
        %3867 = vmatprep.subr.mxu0 0.0
        %3868 = vmatpush1.msra.mxu0 0.0
        %3869 = vmatprep.subr.mxu0 0.0
        %3870 = vmatpush1.msra.mxu0 0.0
        %3871 = vmatprep.subr.mxu0 0.0
        %3872 = vmatpush1.msra.mxu0 0.0
        %3873 = vmatprep.subr.mxu0 0.0
        %3874 = vmatpush1.msra.mxu0 0.0
        %3875 = vmatprep.subr.mxu0 0.0
        %3876 = vmatpush1.msra.mxu0 0.0
        %3877 = vmatprep.subr.mxu0 0.0
        %3878 = vmatpush1.msra.mxu0 0.0
        %3879 = vmatprep.subr.mxu0 0.0
        %3880 = vmatpush1.msra.mxu0 0.0
        %3881 = vmatprep.subr.mxu0 0.0
        %3882 = vmatpush1.msra.mxu0 0.0
        %3883 = vmatprep.subr.mxu0 0.0
        %3884 = vmatpush1.msra.mxu0 0.0
        %3885 = vmatprep.subr.mxu0 0.0
        %3886 = vmatpush1.msra.mxu0 0.0
        %3887 = vmatprep.subr.mxu0 0.0
        %3888 = vmatpush1.msra.mxu0 0.0
        %3889 = vmatprep.subr.mxu0 0.0
        %3890 = vmatpush1.msra.mxu0 0.0
        %3891 = vmatprep.subr.mxu0 0.0
        %3892 = vmatpush1.msra.mxu0 0.0
        %3893 = vmatprep.subr.mxu0 0.0
        %3894 = vmatpush1.msra.mxu0 0.0
        %3895 = vmatprep.subr.mxu0 0.0
        %3896 = vmatpush1.msra.mxu0 0.0
        %3897 = vmatprep.subr.mxu0 0.0
        %3898 = vmatpush1.msra.mxu0 %v3285
        %3899 = vmatprep.subr.mxu0 0.0
        %3900 = vmatpush2.msra.mxu0 0.0
        %3901 = vmatprep.subr.mxu0 0.0
        %3902 = vmatpush2.msra.mxu0 0.0
        %3903 = vmatprep.subr.mxu0 0.0
        %3904 = vmatpush2.msra.mxu0 0.0
        %3905 = vmatprep.subr.mxu0 0.0
        %3906 = vmatpush2.msra.mxu0 0.0
        %3907 = vmatprep.subr.mxu0 0.0
        %3908 = vmatpush2.msra.mxu0 0.0
        %3909 = vmatprep.subr.mxu0 0.0
        %3910 = vmatpush2.msra.mxu0 0.0
        %3911 = vmatprep.subr.mxu0 0.0
        %3912 = vmatpush2.msra.mxu0 0.0
        %3913 = vmatprep.subr.mxu0 0.0
        %3914 = vmatpush2.msra.mxu0 0.0
        %3915 = vmatprep.subr.mxu0 0.0
        %3916 = vmatpush2.msra.mxu0 0.0
        %3917 = vmatprep.subr.mxu0 0.0
        %3918 = vmatpush2.msra.mxu0 0.0
        %3919 = vmatprep.subr.mxu0 0.0
        %3920 = vmatpush2.msra.mxu0 0.0
        %3921 = vmatprep.subr.mxu0 0.0
        %3922 = vmatpush2.msra.mxu0 0.0
        %3923 = vmatprep.subr.mxu0 0.0
        %3924 = vmatpush2.msra.mxu0 0.0
        %3925 = vmatprep.subr.mxu0 0.0
        %3926 = vmatpush2.msra.mxu0 0.0
        %3927 = vmatprep.subr.mxu0 0.0
        %3928 = vmatpush2.msra.mxu0 0.0
        %3929 = vmatprep.subr.mxu0 0.0
        %3930 = vmatpush2.msra.mxu0 0.0
        %3931 = vmatprep.mubr.f32.mxu0 0.0
        %3932 = vmatmul.mubr.f32.gmra.mxu0 %v3865
        %v3933 = vpop.f32.mrf.mxu0
        %v3934 = vadd.f32 0.0, %v3933
        %v3935 = vpop.f32.mrf.mxu0
        %3936 = vdwg.mxu0
        %v3938 = vsel %vm1542, %v3861, 0
        %3940 = vmatprep.subr.mxu0 0.0
        %3941 = vmatpush1.msra.mxu0 0.0
        %3942 = vmatprep.subr.mxu0 0.0
        %3943 = vmatpush1.msra.mxu0 0.0
        %3944 = vmatprep.subr.mxu0 0.0
        %3945 = vmatpush1.msra.mxu0 0.0
        %3946 = vmatprep.subr.mxu0 0.0
        %3947 = vmatpush1.msra.mxu0 0.0
        %3948 = vmatprep.subr.mxu0 0.0
        %3949 = vmatpush1.msra.mxu0 0.0
        %3950 = vmatprep.subr.mxu0 0.0
        %3951 = vmatpush1.msra.mxu0 0.0
        %3952 = vmatprep.subr.mxu0 0.0
        %3953 = vmatpush1.msra.mxu0 0.0
        %3954 = vmatprep.subr.mxu0 0.0
        %3955 = vmatpush1.msra.mxu0 0.0
        %3956 = vmatprep.subr.mxu0 0.0
        %3957 = vmatpush1.msra.mxu0 0.0
        %3958 = vmatprep.subr.mxu0 0.0
        %3959 = vmatpush1.msra.mxu0 0.0
        %3960 = vmatprep.subr.mxu0 0.0
        %3961 = vmatpush1.msra.mxu0 0.0
        %3962 = vmatprep.subr.mxu0 0.0
        %3963 = vmatpush1.msra.mxu0 0.0
        %3964 = vmatprep.subr.mxu0 0.0
        %3965 = vmatpush1.msra.mxu0 0.0
        %3966 = vmatprep.subr.mxu0 0.0
        %3967 = vmatpush1.msra.mxu0 0.0
        %3968 = vmatprep.subr.mxu0 0.0
        %3969 = vmatpush1.msra.mxu0 0.0
        %3970 = vmatprep.subr.mxu0 0.0
        %3971 = vmatpush1.msra.mxu0 %v3355
        %3972 = vmatprep.subr.mxu0 0.0
        %3973 = vmatpush2.msra.mxu0 0.0
        %3974 = vmatprep.subr.mxu0 0.0
        %3975 = vmatpush2.msra.mxu0 0.0
        %3976 = vmatprep.subr.mxu0 0.0
        %3977 = vmatpush2.msra.mxu0 0.0
        %3978 = vmatprep.subr.mxu0 0.0
        %3979 = vmatpush2.msra.mxu0 0.0
        %3980 = vmatprep.subr.mxu0 0.0
        %3981 = vmatpush2.msra.mxu0 0.0
        %3982 = vmatprep.subr.mxu0 0.0
        %3983 = vmatpush2.msra.mxu0 0.0
        %3984 = vmatprep.subr.mxu0 0.0
        %3985 = vmatpush2.msra.mxu0 0.0
        %3986 = vmatprep.subr.mxu0 0.0
        %3987 = vmatpush2.msra.mxu0 0.0
        %3988 = vmatprep.subr.mxu0 0.0
        %3989 = vmatpush2.msra.mxu0 0.0
        %3990 = vmatprep.subr.mxu0 0.0
        %3991 = vmatpush2.msra.mxu0 0.0
        %3992 = vmatprep.subr.mxu0 0.0
        %3993 = vmatpush2.msra.mxu0 0.0
        %3994 = vmatprep.subr.mxu0 0.0
        %3995 = vmatpush2.msra.mxu0 0.0
        %3996 = vmatprep.subr.mxu0 0.0
        %3997 = vmatpush2.msra.mxu0 0.0
        %3998 = vmatprep.subr.mxu0 0.0
        %3999 = vmatpush2.msra.mxu0 0.0
        %4000 = vmatprep.subr.mxu0 0.0
        %4001 = vmatpush2.msra.mxu0 0.0
        %4002 = vmatprep.subr.mxu0 0.0
        %4003 = vmatpush2.msra.mxu0 0.0
        %4004 = vmatprep.mubr.f32.mxu0 0.0
        %4005 = vmatmul.mubr.f32.gmra.mxu0 %v3938
        %v4006 = vpop.f32.mrf.mxu0
        %v4007 = vadd.f32 0.0, %v4006
        %v4008 = vpop.f32.mrf.mxu0
        %4009 = vdwg.mxu0
        %v4011 = vsel %vm1542, %v3862, 0
        %4013 = vmatprep.subr.mxu0 0.0
        %4014 = vmatpush1.msra.mxu0 0.0
        %4015 = vmatprep.subr.mxu0 0.0
        %4016 = vmatpush1.msra.mxu0 0.0
        %4017 = vmatprep.subr.mxu0 0.0
        %4018 = vmatpush1.msra.mxu0 0.0
        %4019 = vmatprep.subr.mxu0 0.0
        %4020 = vmatpush1.msra.mxu0 0.0
        %4021 = vmatprep.subr.mxu0 0.0
        %4022 = vmatpush1.msra.mxu0 0.0
        %4023 = vmatprep.subr.mxu0 0.0
        %4024 = vmatpush1.msra.mxu0 0.0
        %4025 = vmatprep.subr.mxu0 0.0
        %4026 = vmatpush1.msra.mxu0 0.0
        %4027 = vmatprep.subr.mxu0 0.0
        %4028 = vmatpush1.msra.mxu0 0.0
        %4029 = vmatprep.subr.mxu0 0.0
        %4030 = vmatpush1.msra.mxu0 0.0
        %4031 = vmatprep.subr.mxu0 0.0
        %4032 = vmatpush1.msra.mxu0 0.0
        %4033 = vmatprep.subr.mxu0 0.0
        %4034 = vmatpush1.msra.mxu0 0.0
        %4035 = vmatprep.subr.mxu0 0.0
        %4036 = vmatpush1.msra.mxu0 0.0
        %4037 = vmatprep.subr.mxu0 0.0
        %4038 = vmatpush1.msra.mxu0 0.0
        %4039 = vmatprep.subr.mxu0 0.0
        %4040 = vmatpush1.msra.mxu0 0.0
        %4041 = vmatprep.subr.mxu0 0.0
        %4042 = vmatpush1.msra.mxu0 0.0
        %4043 = vmatprep.subr.mxu0 0.0
        %4044 = vmatpush1.msra.mxu0 %v3425
        %4045 = vmatprep.subr.mxu0 0.0
        %4046 = vmatpush2.msra.mxu0 0.0
        %4047 = vmatprep.subr.mxu0 0.0
        %4048 = vmatpush2.msra.mxu0 0.0
        %4049 = vmatprep.subr.mxu0 0.0
        %4050 = vmatpush2.msra.mxu0 0.0
        %4051 = vmatprep.subr.mxu0 0.0
        %4052 = vmatpush2.msra.mxu0 0.0
        %4053 = vmatprep.subr.mxu0 0.0
        %4054 = vmatpush2.msra.mxu0 0.0
        %4055 = vmatprep.subr.mxu0 0.0
        %4056 = vmatpush2.msra.mxu0 0.0
        %4057 = vmatprep.subr.mxu0 0.0
        %4058 = vmatpush2.msra.mxu0 0.0
        %4059 = vmatprep.subr.mxu0 0.0
        %4060 = vmatpush2.msra.mxu0 0.0
        %4061 = vmatprep.subr.mxu0 0.0
        %4062 = vmatpush2.msra.mxu0 0.0
        %4063 = vmatprep.subr.mxu0 0.0
        %4064 = vmatpush2.msra.mxu0 0.0
        %4065 = vmatprep.subr.mxu0 0.0
        %4066 = vmatpush2.msra.mxu0 0.0
        %4067 = vmatprep.subr.mxu0 0.0
        %4068 = vmatpush2.msra.mxu0 0.0
        %4069 = vmatprep.subr.mxu0 0.0
        %4070 = vmatpush2.msra.mxu0 0.0
        %4071 = vmatprep.subr.mxu0 0.0
        %4072 = vmatpush2.msra.mxu0 0.0
        %4073 = vmatprep.subr.mxu0 0.0
        %4074 = vmatpush2.msra.mxu0 0.0
        %4075 = vmatprep.subr.mxu0 0.0
        %4076 = vmatpush2.msra.mxu0 0.0
        %4077 = vmatprep.mubr.f32.mxu0 0.0
        %4078 = vmatmul.mubr.f32.gmra.mxu0 %v4011
        %v4079 = vpop.f32.mrf.mxu0
        %v4080 = vadd.f32 0.0, %v4079
        %v4081 = vpop.f32.mrf.mxu0
        %4082 = vdwg.mxu0
        %v4084 = vsel %vm1542, %v3863, 0
        %4086 = vmatprep.subr.mxu0 0.0
        %4087 = vmatpush1.msra.mxu0 0.0
        %4088 = vmatprep.subr.mxu0 0.0
        %4089 = vmatpush1.msra.mxu0 0.0
        %4090 = vmatprep.subr.mxu0 0.0
        %4091 = vmatpush1.msra.mxu0 0.0
        %4092 = vmatprep.subr.mxu0 0.0
        %4093 = vmatpush1.msra.mxu0 0.0
        %4094 = vmatprep.subr.mxu0 0.0
        %4095 = vmatpush1.msra.mxu0 0.0
        %4096 = vmatprep.subr.mxu0 0.0
        %4097 = vmatpush1.msra.mxu0 0.0
        %4098 = vmatprep.subr.mxu0 0.0
        %4099 = vmatpush1.msra.mxu0 0.0
        %4100 = vmatprep.subr.mxu0 0.0
        %4101 = vmatpush1.msra.mxu0 0.0
        %4102 = vmatprep.subr.mxu0 0.0
        %4103 = vmatpush1.msra.mxu0 0.0
        %4104 = vmatprep.subr.mxu0 0.0
        %4105 = vmatpush1.msra.mxu0 0.0
        %4106 = vmatprep.subr.mxu0 0.0
        %4107 = vmatpush1.msra.mxu0 0.0
        %4108 = vmatprep.subr.mxu0 0.0
        %4109 = vmatpush1.msra.mxu0 0.0
        %4110 = vmatprep.subr.mxu0 0.0
        %4111 = vmatpush1.msra.mxu0 0.0
        %4112 = vmatprep.subr.mxu0 0.0
        %4113 = vmatpush1.msra.mxu0 0.0
        %4114 = vmatprep.subr.mxu0 0.0
        %4115 = vmatpush1.msra.mxu0 0.0
        %4116 = vmatprep.subr.mxu0 0.0
        %4117 = vmatpush1.msra.mxu0 %v3495
        %4118 = vmatprep.subr.mxu0 0.0
        %4119 = vmatpush2.msra.mxu0 0.0
        %4120 = vmatprep.subr.mxu0 0.0
        %4121 = vmatpush2.msra.mxu0 0.0
        %4122 = vmatprep.subr.mxu0 0.0
        %4123 = vmatpush2.msra.mxu0 0.0
        %4124 = vmatprep.subr.mxu0 0.0
        %4125 = vmatpush2.msra.mxu0 0.0
        %4126 = vmatprep.subr.mxu0 0.0
        %4127 = vmatpush2.msra.mxu0 0.0
        %4128 = vmatprep.subr.mxu0 0.0
        %4129 = vmatpush2.msra.mxu0 0.0
        %4130 = vmatprep.subr.mxu0 0.0
        %4131 = vmatpush2.msra.mxu0 0.0
        %4132 = vmatprep.subr.mxu0 0.0
        %4133 = vmatpush2.msra.mxu0 0.0
        %4134 = vmatprep.subr.mxu0 0.0
        %4135 = vmatpush2.msra.mxu0 0.0
        %4136 = vmatprep.subr.mxu0 0.0
        %4137 = vmatpush2.msra.mxu0 0.0
        %4138 = vmatprep.subr.mxu0 0.0
        %4139 = vmatpush2.msra.mxu0 0.0
        %4140 = vmatprep.subr.mxu0 0.0
        %4141 = vmatpush2.msra.mxu0 0.0
        %4142 = vmatprep.subr.mxu0 0.0
        %4143 = vmatpush2.msra.mxu0 0.0
        %4144 = vmatprep.subr.mxu0 0.0
        %4145 = vmatpush2.msra.mxu0 0.0
        %4146 = vmatprep.subr.mxu0 0.0
        %4147 = vmatpush2.msra.mxu0 0.0
        %4148 = vmatprep.subr.mxu0 0.0
        %4149 = vmatpush2.msra.mxu0 0.0
        %4150 = vmatprep.mubr.f32.mxu0 0.0
        %4151 = vmatmul.mubr.f32.gmra.mxu0 %v4084
        %v4152 = vpop.f32.mrf.mxu0
        %v4153 = vadd.f32 0.0, %v4152
        %v4154 = vpop.f32.mrf.mxu0
        %4155 = vdwg.mxu0
        %v4157 = vsel %vm1542, %v3934, 0
        %4159 = vmatprep.subr.mxu0 0.0
        %4160 = vmatpush1.msra.mxu0 0.0
        %4161 = vmatprep.subr.mxu0 0.0
        %4162 = vmatpush1.msra.mxu0 0.0
        %4163 = vmatprep.subr.mxu0 0.0
        %4164 = vmatpush1.msra.mxu0 0.0
        %4165 = vmatprep.subr.mxu0 0.0
        %4166 = vmatpush1.msra.mxu0 0.0
        %4167 = vmatprep.subr.mxu0 0.0
        %4168 = vmatpush1.msra.mxu0 0.0
        %4169 = vmatprep.subr.mxu0 0.0
        %4170 = vmatpush1.msra.mxu0 0.0
        %4171 = vmatprep.subr.mxu0 0.0
        %4172 = vmatpush1.msra.mxu0 0.0
        %4173 = vmatprep.subr.mxu0 0.0
        %4174 = vmatpush1.msra.mxu0 0.0
        %4175 = vmatprep.subr.mxu0 0.0
        %4176 = vmatpush1.msra.mxu0 0.0
        %4177 = vmatprep.subr.mxu0 0.0
        %4178 = vmatpush1.msra.mxu0 0.0
        %4179 = vmatprep.subr.mxu0 0.0
        %4180 = vmatpush1.msra.mxu0 0.0
        %4181 = vmatprep.subr.mxu0 0.0
        %4182 = vmatpush1.msra.mxu0 0.0
        %4183 = vmatprep.subr.mxu0 0.0
        %4184 = vmatpush1.msra.mxu0 0.0
        %4185 = vmatprep.subr.mxu0 0.0
        %4186 = vmatpush1.msra.mxu0 0.0
        %4187 = vmatprep.subr.mxu0 0.0
        %4188 = vmatpush1.msra.mxu0 0.0
        %4189 = vmatprep.subr.mxu0 0.0
        %4190 = vmatpush1.msra.mxu0 %v3498
        %4191 = vmatprep.subr.mxu0 0.0
        %4192 = vmatpush2.msra.mxu0 0.0
        %4193 = vmatprep.subr.mxu0 0.0
        %4194 = vmatpush2.msra.mxu0 0.0
        %4195 = vmatprep.subr.mxu0 0.0
        %4196 = vmatpush2.msra.mxu0 0.0
        %4197 = vmatprep.subr.mxu0 0.0
        %4198 = vmatpush2.msra.mxu0 0.0
        %4199 = vmatprep.subr.mxu0 0.0
        %4200 = vmatpush2.msra.mxu0 0.0
        %4201 = vmatprep.subr.mxu0 0.0
        %4202 = vmatpush2.msra.mxu0 0.0
        %4203 = vmatprep.subr.mxu0 0.0
        %4204 = vmatpush2.msra.mxu0 0.0
        %4205 = vmatprep.subr.mxu0 0.0
        %4206 = vmatpush2.msra.mxu0 0.0
        %4207 = vmatprep.subr.mxu0 0.0
        %4208 = vmatpush2.msra.mxu0 0.0
        %4209 = vmatprep.subr.mxu0 0.0
        %4210 = vmatpush2.msra.mxu0 0.0
        %4211 = vmatprep.subr.mxu0 0.0
        %4212 = vmatpush2.msra.mxu0 0.0
        %4213 = vmatprep.subr.mxu0 0.0
        %4214 = vmatpush2.msra.mxu0 0.0
        %4215 = vmatprep.subr.mxu0 0.0
        %4216 = vmatpush2.msra.mxu0 0.0
        %4217 = vmatprep.subr.mxu0 0.0
        %4218 = vmatpush2.msra.mxu0 0.0
        %4219 = vmatprep.subr.mxu0 0.0
        %4220 = vmatpush2.msra.mxu0 0.0
        %4221 = vmatprep.subr.mxu0 0.0
        %4222 = vmatpush2.msra.mxu0 0.0
        %4223 = vmatprep.mubr.f32.mxu0 0.0
        %4224 = vmatmul.mubr.f32.gmra.mxu0 %v4157
        %v4225 = vpop.f32.mrf.mxu0
        %v4226 = vadd.f32 0.0, %v4225
        %v4227 = vpop.f32.mrf.mxu0
        %4228 = vdwg.mxu0
        %v4230 = vsel %vm1542, %v4007, 0
        %4232 = vmatprep.subr.mxu0 0.0
        %4233 = vmatpush1.msra.mxu0 0.0
        %4234 = vmatprep.subr.mxu0 0.0
        %4235 = vmatpush1.msra.mxu0 0.0
        %4236 = vmatprep.subr.mxu0 0.0
        %4237 = vmatpush1.msra.mxu0 0.0
        %4238 = vmatprep.subr.mxu0 0.0
        %4239 = vmatpush1.msra.mxu0 0.0
        %4240 = vmatprep.subr.mxu0 0.0
        %4241 = vmatpush1.msra.mxu0 0.0
        %4242 = vmatprep.subr.mxu0 0.0
        %4243 = vmatpush1.msra.mxu0 0.0
        %4244 = vmatprep.subr.mxu0 0.0
        %4245 = vmatpush1.msra.mxu0 0.0
        %4246 = vmatprep.subr.mxu0 0.0
        %4247 = vmatpush1.msra.mxu0 0.0
        %4248 = vmatprep.subr.mxu0 0.0
        %4249 = vmatpush1.msra.mxu0 0.0
        %4250 = vmatprep.subr.mxu0 0.0
        %4251 = vmatpush1.msra.mxu0 0.0
        %4252 = vmatprep.subr.mxu0 0.0
        %4253 = vmatpush1.msra.mxu0 0.0
        %4254 = vmatprep.subr.mxu0 0.0
        %4255 = vmatpush1.msra.mxu0 0.0
        %4256 = vmatprep.subr.mxu0 0.0
        %4257 = vmatpush1.msra.mxu0 0.0
        %4258 = vmatprep.subr.mxu0 0.0
        %4259 = vmatpush1.msra.mxu0 0.0
        %4260 = vmatprep.subr.mxu0 0.0
        %4261 = vmatpush1.msra.mxu0 0.0
        %4262 = vmatprep.subr.mxu0 0.0
        %4263 = vmatpush1.msra.mxu0 %v3499
        %4264 = vmatprep.subr.mxu0 0.0
        %4265 = vmatpush2.msra.mxu0 0.0
        %4266 = vmatprep.subr.mxu0 0.0
        %4267 = vmatpush2.msra.mxu0 0.0
        %4268 = vmatprep.subr.mxu0 0.0
        %4269 = vmatpush2.msra.mxu0 0.0
        %4270 = vmatprep.subr.mxu0 0.0
        %4271 = vmatpush2.msra.mxu0 0.0
        %4272 = vmatprep.subr.mxu0 0.0
        %4273 = vmatpush2.msra.mxu0 0.0
        %4274 = vmatprep.subr.mxu0 0.0
        %4275 = vmatpush2.msra.mxu0 0.0
        %4276 = vmatprep.subr.mxu0 0.0
        %4277 = vmatpush2.msra.mxu0 0.0
        %4278 = vmatprep.subr.mxu0 0.0
        %4279 = vmatpush2.msra.mxu0 0.0
        %4280 = vmatprep.subr.mxu0 0.0
        %4281 = vmatpush2.msra.mxu0 0.0
        %4282 = vmatprep.subr.mxu0 0.0
        %4283 = vmatpush2.msra.mxu0 0.0
        %4284 = vmatprep.subr.mxu0 0.0
        %4285 = vmatpush2.msra.mxu0 0.0
        %4286 = vmatprep.subr.mxu0 0.0
        %4287 = vmatpush2.msra.mxu0 0.0
        %4288 = vmatprep.subr.mxu0 0.0
        %4289 = vmatpush2.msra.mxu0 0.0
        %4290 = vmatprep.subr.mxu0 0.0
        %4291 = vmatpush2.msra.mxu0 0.0
        %4292 = vmatprep.subr.mxu0 0.0
        %4293 = vmatpush2.msra.mxu0 0.0
        %4294 = vmatprep.subr.mxu0 0.0
        %4295 = vmatpush2.msra.mxu0 0.0
        %4296 = vmatprep.mubr.f32.mxu0 0.0
        %4297 = vmatmul.mubr.f32.gmra.mxu0 %v4230
        %v4298 = vpop.f32.mrf.mxu0
        %v4299 = vadd.f32 0.0, %v4298
        %v4300 = vpop.f32.mrf.mxu0
        %4301 = vdwg.mxu0
        %v4303 = vsel %vm1542, %v4080, 0
        %4305 = vmatprep.subr.mxu0 0.0
        %4306 = vmatpush1.msra.mxu0 0.0
        %4307 = vmatprep.subr.mxu0 0.0
        %4308 = vmatpush1.msra.mxu0 0.0
        %4309 = vmatprep.subr.mxu0 0.0
        %4310 = vmatpush1.msra.mxu0 0.0
        %4311 = vmatprep.subr.mxu0 0.0
        %4312 = vmatpush1.msra.mxu0 0.0
        %4313 = vmatprep.subr.mxu0 0.0
        %4314 = vmatpush1.msra.mxu0 0.0
        %4315 = vmatprep.subr.mxu0 0.0
        %4316 = vmatpush1.msra.mxu0 0.0
        %4317 = vmatprep.subr.mxu0 0.0
        %4318 = vmatpush1.msra.mxu0 0.0
        %4319 = vmatprep.subr.mxu0 0.0
        %4320 = vmatpush1.msra.mxu0 0.0
        %4321 = vmatprep.subr.mxu0 0.0
        %4322 = vmatpush1.msra.mxu0 0.0
        %4323 = vmatprep.subr.mxu0 0.0
        %4324 = vmatpush1.msra.mxu0 0.0
        %4325 = vmatprep.subr.mxu0 0.0
        %4326 = vmatpush1.msra.mxu0 0.0
        %4327 = vmatprep.subr.mxu0 0.0
        %4328 = vmatpush1.msra.mxu0 0.0
        %4329 = vmatprep.subr.mxu0 0.0
        %4330 = vmatpush1.msra.mxu0 0.0
        %4331 = vmatprep.subr.mxu0 0.0
        %4332 = vmatpush1.msra.mxu0 0.0
        %4333 = vmatprep.subr.mxu0 0.0
        %4334 = vmatpush1.msra.mxu0 0.0
        %4335 = vmatprep.subr.mxu0 0.0
        %4336 = vmatpush1.msra.mxu0 %v3500
        %4337 = vmatprep.subr.mxu0 0.0
        %4338 = vmatpush2.msra.mxu0 0.0
        %4339 = vmatprep.subr.mxu0 0.0
        %4340 = vmatpush2.msra.mxu0 0.0
        %4341 = vmatprep.subr.mxu0 0.0
        %4342 = vmatpush2.msra.mxu0 0.0
        %4343 = vmatprep.subr.mxu0 0.0
        %4344 = vmatpush2.msra.mxu0 0.0
        %4345 = vmatprep.subr.mxu0 0.0
        %4346 = vmatpush2.msra.mxu0 0.0
        %4347 = vmatprep.subr.mxu0 0.0
        %4348 = vmatpush2.msra.mxu0 0.0
        %4349 = vmatprep.subr.mxu0 0.0
        %4350 = vmatpush2.msra.mxu0 0.0
        %4351 = vmatprep.subr.mxu0 0.0
        %4352 = vmatpush2.msra.mxu0 0.0
        %4353 = vmatprep.subr.mxu0 0.0
        %4354 = vmatpush2.msra.mxu0 0.0
        %4355 = vmatprep.subr.mxu0 0.0
        %4356 = vmatpush2.msra.mxu0 0.0
        %4357 = vmatprep.subr.mxu0 0.0
        %4358 = vmatpush2.msra.mxu0 0.0
        %4359 = vmatprep.subr.mxu0 0.0
        %4360 = vmatpush2.msra.mxu0 0.0
        %4361 = vmatprep.subr.mxu0 0.0
        %4362 = vmatpush2.msra.mxu0 0.0
        %4363 = vmatprep.subr.mxu0 0.0
        %4364 = vmatpush2.msra.mxu0 0.0
        %4365 = vmatprep.subr.mxu0 0.0
        %4366 = vmatpush2.msra.mxu0 0.0
        %4367 = vmatprep.subr.mxu0 0.0
        %4368 = vmatpush2.msra.mxu0 0.0
        %4369 = vmatprep.mubr.f32.mxu0 0.0
        %4370 = vmatmul.mubr.f32.gmra.mxu0 %v4303
        %v4371 = vpop.f32.mrf.mxu0
        %v4372 = vadd.f32 0.0, %v4371
        %v4373 = vpop.f32.mrf.mxu0
        %4374 = vdwg.mxu0
        %v4376 = vsel %vm1542, %v4153, 0
        %4378 = vmatprep.subr.mxu0 0.0
        %4379 = vmatpush1.msra.mxu0 0.0
        %4380 = vmatprep.subr.mxu0 0.0
        %4381 = vmatpush1.msra.mxu0 0.0
        %4382 = vmatprep.subr.mxu0 0.0
        %4383 = vmatpush1.msra.mxu0 0.0
        %4384 = vmatprep.subr.mxu0 0.0
        %4385 = vmatpush1.msra.mxu0 0.0
        %4386 = vmatprep.subr.mxu0 0.0
        %4387 = vmatpush1.msra.mxu0 0.0
        %4388 = vmatprep.subr.mxu0 0.0
        %4389 = vmatpush1.msra.mxu0 0.0
        %4390 = vmatprep.subr.mxu0 0.0
        %4391 = vmatpush1.msra.mxu0 0.0
        %4392 = vmatprep.subr.mxu0 0.0
        %4393 = vmatpush1.msra.mxu0 0.0
        %4394 = vmatprep.subr.mxu0 0.0
        %4395 = vmatpush1.msra.mxu0 0.0
        %4396 = vmatprep.subr.mxu0 0.0
        %4397 = vmatpush1.msra.mxu0 0.0
        %4398 = vmatprep.subr.mxu0 0.0
        %4399 = vmatpush1.msra.mxu0 0.0
        %4400 = vmatprep.subr.mxu0 0.0
        %4401 = vmatpush1.msra.mxu0 0.0
        %4402 = vmatprep.subr.mxu0 0.0
        %4403 = vmatpush1.msra.mxu0 0.0
        %4404 = vmatprep.subr.mxu0 0.0
        %4405 = vmatpush1.msra.mxu0 0.0
        %4406 = vmatprep.subr.mxu0 0.0
        %4407 = vmatpush1.msra.mxu0 0.0
        %4408 = vmatprep.subr.mxu0 0.0
        %4409 = vmatpush1.msra.mxu0 %v3501
        %4410 = vmatprep.subr.mxu0 0.0
        %4411 = vmatpush2.msra.mxu0 0.0
        %4412 = vmatprep.subr.mxu0 0.0
        %4413 = vmatpush2.msra.mxu0 0.0
        %4414 = vmatprep.subr.mxu0 0.0
        %4415 = vmatpush2.msra.mxu0 0.0
        %4416 = vmatprep.subr.mxu0 0.0
        %4417 = vmatpush2.msra.mxu0 0.0
        %4418 = vmatprep.subr.mxu0 0.0
        %4419 = vmatpush2.msra.mxu0 0.0
        %4420 = vmatprep.subr.mxu0 0.0
        %4421 = vmatpush2.msra.mxu0 0.0
        %4422 = vmatprep.subr.mxu0 0.0
        %4423 = vmatpush2.msra.mxu0 0.0
        %4424 = vmatprep.subr.mxu0 0.0
        %4425 = vmatpush2.msra.mxu0 0.0
        %4426 = vmatprep.subr.mxu0 0.0
        %4427 = vmatpush2.msra.mxu0 0.0
        %4428 = vmatprep.subr.mxu0 0.0
        %4429 = vmatpush2.msra.mxu0 0.0
        %4430 = vmatprep.subr.mxu0 0.0
        %4431 = vmatpush2.msra.mxu0 0.0
        %4432 = vmatprep.subr.mxu0 0.0
        %4433 = vmatpush2.msra.mxu0 0.0
        %4434 = vmatprep.subr.mxu0 0.0
        %4435 = vmatpush2.msra.mxu0 0.0
        %4436 = vmatprep.subr.mxu0 0.0
        %4437 = vmatpush2.msra.mxu0 0.0
        %4438 = vmatprep.subr.mxu0 0.0
        %4439 = vmatpush2.msra.mxu0 0.0
        %4440 = vmatprep.subr.mxu0 0.0
        %4441 = vmatpush2.msra.mxu0 0.0
        %4442 = vmatprep.mubr.f32.mxu0 0.0
        %4443 = vmatmul.mubr.f32.gmra.mxu0 %v4376
        %v4444 = vpop.f32.mrf.mxu0
        %v4445 = vadd.f32 0.0, %v4444
        %v4446 = vpop.f32.mrf.mxu0
        %4447 = vdwg.mxu0
        %v4448 = vsel %vm694, %v4226, 0.0
        %v4449 = vsel %vm694, %v4299, 0.0
        %v4450 = vadd.f32 %v4448, %v4449
        %v4451 = vsel %vm694, %v4372, 0.0
        %v4452 = vadd.f32 %v4450, %v4451
        %v4453 = vsel %vm694, %v4445, 0.0
        %v4454 = vadd.f32 %v4452, %v4453
        %v4455 = vlaneseq
        %v4456 = vshrl.u32 %v4455, 7
        %v4457 = vsub.s32 0, %v4456
        %v4458 = vrot.slane %v559, %v4457
        %v4459 = vadd.f32 %v4454, %v4458
        %v4460 = vadd.f32 %v4459, %v2519
        %v4461 = vsel %vm694, %v4460, 0.0
        %4462 = vadd.xlane.f32.xlu0 %v4461
        %v4463 = vpop.xlane.xlu0 %4462
        %v4464 = vmul.f32 %v4463, %v2499
        %v4465 = vsub.f32 %v4460, %v4464
        %v4466 = vmul.f32 %v4465, %v4465
        %v4467 = vsel %vm694, %v4466, 0.0
        %4468 = vadd.xlane.f32.xlu0 %v4467
        %v4469 = vpop.xlane.xlu0 %4468
        %v4470 = vmul.f32 %v4469, %v2499
        %v4471 = vadd.f32 %v4470, 1e-05
        %v4472 = vrsqrt.pop %v4471
        %v4473 = vmul.f32 %v4465, %v4472
        %v4474 = vlaneseq
        %v4475 = vshrl.u32 %v4474, 7
        %v4476 = vsub.s32 0, %v4475
        %v4477 = vrot.slane %v554, %v4476
        %v4478 = vmul.f32 %v4473, %v4477
        %v4479 = vlaneseq
        %v4480 = vshrl.u32 %v4479, 7
        %v4481 = vsub.s32 0, %v4480
        %v4482 = vrot.slane %v555, %v4481
        %v4483 = vadd.f32 %v4478, %v4482
        %v4484 = vld [vmem:[%s12] sm:$0xff]
        %v4485 = vld [vmem:[%s12 + $0x8] sm:$0xff]
        %v4486 = vld [vmem:[%s12 + $0x10] sm:$0xff]
        %v4487 = vld [vmem:[%s12 + $0x18] sm:$0xff]
        %v4488 = vlaneseq
        %v4489 = vshrl.u32 %v4488, 7
        %v4490 = vsub.s32 0, %v4489
        %v4491 = vrot.slane %v560, %v4490
        %v4493 = vsel %vm694, %v4483, 0
        %4495 = vmatprep.subr.mxu0 0.0
        %4496 = vmatpush1.msra.mxu0 0.0
        %4497 = vmatprep.subr.mxu0 0.0
        %4498 = vmatpush1.msra.mxu0 0.0
        %4499 = vmatprep.subr.mxu0 0.0
        %4500 = vmatpush1.msra.mxu0 0.0
        %4501 = vmatprep.subr.mxu0 0.0
        %4502 = vmatpush1.msra.mxu0 0.0
        %4503 = vmatprep.subr.mxu0 0.0
        %4504 = vmatpush1.msra.mxu0 0.0
        %4505 = vmatprep.subr.mxu0 0.0
        %4506 = vmatpush1.msra.mxu0 0.0
        %4507 = vmatprep.subr.mxu0 0.0
        %4508 = vmatpush1.msra.mxu0 0.0
        %4509 = vmatprep.subr.mxu0 0.0
        %4510 = vmatpush1.msra.mxu0 0.0
        %4511 = vmatprep.subr.mxu0 0.0
        %4512 = vmatpush1.msra.mxu0 0.0
        %4513 = vmatprep.subr.mxu0 0.0
        %4514 = vmatpush1.msra.mxu0 0.0
        %4515 = vmatprep.subr.mxu0 0.0
        %4516 = vmatpush1.msra.mxu0 0.0
        %4517 = vmatprep.subr.mxu0 0.0
        %4518 = vmatpush1.msra.mxu0 0.0
        %4519 = vmatprep.subr.mxu0 0.0
        %4520 = vmatpush1.msra.mxu0 %v4487
        %4521 = vmatprep.subr.mxu0 0.0
        %4522 = vmatpush1.msra.mxu0 %v4486
        %4523 = vmatprep.subr.mxu0 0.0
        %4524 = vmatpush1.msra.mxu0 %v4485
        %4525 = vmatprep.subr.mxu0 0.0
        %4526 = vmatpush1.msra.mxu0 %v4484
        %4527 = vmatprep.subr.mxu0 0.0
        %4528 = vmatpush2.msra.mxu0 0.0
        %4529 = vmatprep.subr.mxu0 0.0
        %4530 = vmatpush2.msra.mxu0 0.0
        %4531 = vmatprep.subr.mxu0 0.0
        %4532 = vmatpush2.msra.mxu0 0.0
        %4533 = vmatprep.subr.mxu0 0.0
        %4534 = vmatpush2.msra.mxu0 0.0
        %4535 = vmatprep.subr.mxu0 0.0
        %4536 = vmatpush2.msra.mxu0 0.0
        %4537 = vmatprep.subr.mxu0 0.0
        %4538 = vmatpush2.msra.mxu0 0.0
        %4539 = vmatprep.subr.mxu0 0.0
        %4540 = vmatpush2.msra.mxu0 0.0
        %4541 = vmatprep.subr.mxu0 0.0
        %4542 = vmatpush2.msra.mxu0 0.0
        %4543 = vmatprep.subr.mxu0 0.0
        %4544 = vmatpush2.msra.mxu0 0.0
        %4545 = vmatprep.subr.mxu0 0.0
        %4546 = vmatpush2.msra.mxu0 0.0
        %4547 = vmatprep.subr.mxu0 0.0
        %4548 = vmatpush2.msra.mxu0 0.0
        %4549 = vmatprep.subr.mxu0 0.0
        %4550 = vmatpush2.msra.mxu0 0.0
        %4551 = vmatprep.subr.mxu0 0.0
        %4552 = vmatpush2.msra.mxu0 0.0
        %4553 = vmatprep.subr.mxu0 0.0
        %4554 = vmatpush2.msra.mxu0 0.0
        %4555 = vmatprep.subr.mxu0 0.0
        %4556 = vmatpush2.msra.mxu0 0.0
        %4557 = vmatprep.subr.mxu0 0.0
        %4558 = vmatpush2.msra.mxu0 0.0
        %4559 = vmatprep.mubr.f32.mxu0 0.0
        %4560 = vmatmul.mubr.f32.gmra.mxu0 %v4493
        %v4561 = vpop.f32.mrf.mxu0
        %v4562 = vadd.f32 %v4491, %v4561
        %v4563 = vpop.f32.mrf.mxu0
        %4564 = vdwg.mxu0
        %v4565 = vmax.f32 %v4562, 0.0
        %v4566 = vld [vmem:[%s13] sm:$0xff]
        %v4567 = vld [vmem:[%s13 + $0x8] sm:$0xff]
        %v4568 = vld [vmem:[%s13 + $0x10] sm:$0xff]
        %v4569 = vld [vmem:[%s13 + $0x18] sm:$0xff]
        %v4570 = vlaneseq
        %v4571 = vshrl.u32 %v4570, 7
        %v4572 = vsub.s32 0, %v4571
        %v4573 = vrot.slane %v561, %v4572
        %v4575 = vsel %vm694, %v4565, 0
        %4577 = vmatprep.subr.mxu0 0.0
        %4578 = vmatpush1.msra.mxu0 0.0
        %4579 = vmatprep.subr.mxu0 0.0
        %4580 = vmatpush1.msra.mxu0 0.0
        %4581 = vmatprep.subr.mxu0 0.0
        %4582 = vmatpush1.msra.mxu0 0.0
        %4583 = vmatprep.subr.mxu0 0.0
        %4584 = vmatpush1.msra.mxu0 0.0
        %4585 = vmatprep.subr.mxu0 0.0
        %4586 = vmatpush1.msra.mxu0 0.0
        %4587 = vmatprep.subr.mxu0 0.0
        %4588 = vmatpush1.msra.mxu0 0.0
        %4589 = vmatprep.subr.mxu0 0.0
        %4590 = vmatpush1.msra.mxu0 0.0
        %4591 = vmatprep.subr.mxu0 0.0
        %4592 = vmatpush1.msra.mxu0 0.0
        %4593 = vmatprep.subr.mxu0 0.0
        %4594 = vmatpush1.msra.mxu0 0.0
        %4595 = vmatprep.subr.mxu0 0.0
        %4596 = vmatpush1.msra.mxu0 0.0
        %4597 = vmatprep.subr.mxu0 0.0
        %4598 = vmatpush1.msra.mxu0 0.0
        %4599 = vmatprep.subr.mxu0 0.0
        %4600 = vmatpush1.msra.mxu0 0.0
        %4601 = vmatprep.subr.mxu0 0.0
        %4602 = vmatpush1.msra.mxu0 %v4569
        %4603 = vmatprep.subr.mxu0 0.0
        %4604 = vmatpush1.msra.mxu0 %v4568
        %4605 = vmatprep.subr.mxu0 0.0
        %4606 = vmatpush1.msra.mxu0 %v4567
        %4607 = vmatprep.subr.mxu0 0.0
        %4608 = vmatpush1.msra.mxu0 %v4566
        %4609 = vmatprep.subr.mxu0 0.0
        %4610 = vmatpush2.msra.mxu0 0.0
        %4611 = vmatprep.subr.mxu0 0.0
        %4612 = vmatpush2.msra.mxu0 0.0
        %4613 = vmatprep.subr.mxu0 0.0
        %4614 = vmatpush2.msra.mxu0 0.0
        %4615 = vmatprep.subr.mxu0 0.0
        %4616 = vmatpush2.msra.mxu0 0.0
        %4617 = vmatprep.subr.mxu0 0.0
        %4618 = vmatpush2.msra.mxu0 0.0
        %4619 = vmatprep.subr.mxu0 0.0
        %4620 = vmatpush2.msra.mxu0 0.0
        %4621 = vmatprep.subr.mxu0 0.0
        %4622 = vmatpush2.msra.mxu0 0.0
        %4623 = vmatprep.subr.mxu0 0.0
        %4624 = vmatpush2.msra.mxu0 0.0
        %4625 = vmatprep.subr.mxu0 0.0
        %4626 = vmatpush2.msra.mxu0 0.0
        %4627 = vmatprep.subr.mxu0 0.0
        %4628 = vmatpush2.msra.mxu0 0.0
        %4629 = vmatprep.subr.mxu0 0.0
        %4630 = vmatpush2.msra.mxu0 0.0
        %4631 = vmatprep.subr.mxu0 0.0
        %4632 = vmatpush2.msra.mxu0 0.0
        %4633 = vmatprep.subr.mxu0 0.0
        %4634 = vmatpush2.msra.mxu0 0.0
        %4635 = vmatprep.subr.mxu0 0.0
        %4636 = vmatpush2.msra.mxu0 0.0
        %4637 = vmatprep.subr.mxu0 0.0
        %4638 = vmatpush2.msra.mxu0 0.0
        %4639 = vmatprep.subr.mxu0 0.0
        %4640 = vmatpush2.msra.mxu0 0.0
        %4641 = vmatprep.mubr.f32.mxu0 0.0
        %4642 = vmatmul.mubr.f32.gmra.mxu0 %v4575
        %v4643 = vpop.f32.mrf.mxu0
        %v4644 = vadd.f32 %v4573, %v4643
        %v4645 = vpop.f32.mrf.mxu0
        %4646 = vdwg.mxu0
        %v4647 = vadd.f32 %v4644, %v4483
        %v4648 = vsel %vm694, %v4647, 0.0
        %4649 = vadd.xlane.f32.xlu0 %v4648
        %v4650 = vpop.xlane.xlu0 %4649
        %v4651 = vmul.f32 %v4650, %v2499
        %v4652 = vsub.f32 %v4647, %v4651
        %v4653 = vmul.f32 %v4652, %v4652
        %v4654 = vsel %vm694, %v4653, 0.0
        %4655 = vadd.xlane.f32.xlu0 %v4654
        %v4656 = vpop.xlane.xlu0 %4655
        %v4657 = vmul.f32 %v4656, %v2499
        %v4658 = vadd.f32 %v4657, 1e-05
        %v4659 = vrsqrt.pop %v4658
        %v4660 = vmul.f32 %v4652, %v4659
        %v4661 = vlaneseq
        %v4662 = vshrl.u32 %v4661, 7
        %v4663 = vsub.s32 0, %v4662
        %v4664 = vrot.slane %v556, %v4663
        %v4665 = vmul.f32 %v4660, %v4664
        %v4666 = vlaneseq
        %v4667 = vshrl.u32 %v4666, 7
        %v4668 = vsub.s32 0, %v4667
        %v4669 = vrot.slane %v557, %v4668
        %v4670 = vadd.f32 %v4665, %v4669
        %4671 = vst.msk [vmem:[%s536] sm:$0xff] %vm694, %v4670
        %s4672 = sand.u32 %s389, 1
        %s4673 = scalar_lea.sflag [#allocation3], %s4672
        %s4674 = sand.u32 %s389, 1
        %s4675 = smul.addr %s4674, 8
        %s4676 = scalar_lea.vmem [#allocation2], %s4675
        // Predicated region
        $region85: #{tpu_custom_call.1} parent=83 // pred_check
          %p4677 = pneg %p399
        $region86: #{tpu_custom_call.1} parent=83 // pred_check_branch
          %4679 = sbr.rel (%p4677) target = $region88
        $region87: #{tpu_custom_call.1} parent=83 // pred_region
          %s4681 = ssub.s32 128, 128
          %4682 = vsyncadd %s4673, %s4681
          %s4683 = smul.addr %s30, 128
          %s4684 = scalar_lea.hbm %s16, %s4683
          %s4686 = sshll.u32 %s4676, 4
          %s4687 = int_to_ptr.vmem [resolvable:$true] %s4686
          %4689 = dma.vmem_to_hbm [thread:$0]  %s4687, 128, %s4684, %s4673
        $region88: #{tpu_custom_call.1} parent=83 // pred_fallthru
          _
      $region84: #{tpu_custom_call.1} parent=5 // pred_fallthru
        _
      %p4690 = scmp.le.s32.totalorder 2, %s25
      // Predicated region
      $region89: #{tpu_custom_call.1} parent=5 // pred_check
        %p4691 = pneg %p4690
      $region90: #{tpu_custom_call.1} parent=5 // pred_check_branch
        %4693 = sbr.rel (%p4691) target = $region92
      $region91: #{tpu_custom_call.1} parent=5 // pred_region
        %s4694 = ssub.s32 %s25, 2
        // Predicated region
        $region93: #{tpu_custom_call.1} parent=91 // pred_check
          %p4695 = pneg %p405
        $region94: #{tpu_custom_call.1} parent=91 // pred_check_branch
          %4697 = sbr.rel (%p4695) target = $region96
        $region95: #{tpu_custom_call.1} parent=91 // pred_region
          %s4698 = sand.u32 %s390, 1
          %s4699 = scalar_lea.sflag [#allocation3], %s4698
          %s4700 = sand.u32 %s390, 1
          %s4701 = smul.addr %s4700, 8
          %s4702 = scalar_lea.vmem [#allocation2], %s4701
          %4703 = dma.done %s4699, 128
        $region96: #{tpu_custom_call.1} parent=91 // pred_fallthru
          _
      $region92: #{tpu_custom_call.1} parent=5 // pred_fallthru
        _
    $region6: #{tpu_custom_call.1} parent=1 // loop_footer
      %s29 = sadd.s32 1, %s25
    $region7: #{tpu_custom_call.1} parent=1 // loop_footer_branch
      %24 = sbr.rel target = $region3
    $region8: #{tpu_custom_call.1} parent=1 // loop_exit
      _
    %4704 = vsyncpa [#allocation3], 1
    %s4705 = scalar_lea.sflag [#allocation3], 1
    %4706 = vsyncpa %s4705, 1

</llo_original>
